<compile_context>
chip_gen: v5e
topology: v5e:2x2
jax: 0.10.0
libtpu: 0.0.40
codegen_flags: <defaults>
</compile_context>

<pallas_src>
import functools
import math

import jax
import jax.numpy as jnp
from jax.experimental import pallas as pl
from jax.experimental.pallas import tpu as pltpu


_VMEM_LIMIT = 32 * 1024 * 1024  # explicit scoped-VMEM budget (safe on v5e/v6e/v7x)


# ----------------------------------------------------------------------------
# Generic tiled matmul kernel (bf16 MXU operands, f32 accumulation, optional
# fused bias epilogue, selectable output dtype)
# ----------------------------------------------------------------------------

def _round_up(x, m):
    return (x + m - 1) // m * m


def _pick_tile(dim, cap, align):
    """Largest multiple of `align` that divides `dim`, is <= cap (>= align)."""
    t = max(align, min(dim, cap) // align * align)
    while t > align and dim % t:
        t -= align
    return t


def _pad2(x, shape):
    pr, pc = shape[0] - x.shape[0], shape[1] - x.shape[1]
    if pr or pc:
        x = jnp.pad(x, ((0, pr), (0, pc)))
    return x


def _mm_kernel(a_ref, b_ref, o_ref, acc_ref, *, trans_a, trans_b):
    @pl.when(pl.program_id(2) == 0)
    def _init():
        acc_ref[...] = jnp.zeros_like(acc_ref)

    dn = (((0 if trans_a else 1,), (1 if trans_b else 0,)), ((), ()))
    acc_ref[...] += jax.lax.dot_general(
        a_ref[...], b_ref[...], dn, preferred_element_type=jnp.float32)

    @pl.when(pl.program_id(2) == pl.num_programs(2) - 1)
    def _done():
        o_ref[...] = acc_ref[...].astype(o_ref.dtype)


def _mm_bias_kernel(a_ref, b_ref, bias_ref, o_ref, acc_ref, *, trans_a, trans_b):
    @pl.when(pl.program_id(2) == 0)
    def _init():
        acc_ref[...] = jnp.zeros_like(acc_ref)

    dn = (((0 if trans_a else 1,), (1 if trans_b else 0,)), ((), ()))
    acc_ref[...] += jax.lax.dot_general(
        a_ref[...], b_ref[...], dn, preferred_element_type=jnp.float32)

    @pl.when(pl.program_id(2) == pl.num_programs(2) - 1)
    def _done():
        o_ref[...] = (acc_ref[...] + bias_ref[...]).astype(o_ref.dtype)


def pallas_matmul(a, b, trans_a=False, trans_b=False, bias=None,
                  out_dtype=jnp.float32):
    """C[M,N] = A'[M,K] @ B'[K,N] (+ bias), A' = a or a.T, B' = b or b.T.

    Transposes are expressed via dot_general contraction dims inside the
    kernel (no HBM transpose).  Operands are cast to bf16 (no-op when already
    bf16, e.g. pre-padded weights); accumulation is f32.  Only lane axes are
    padded to 128; sublane-only axes are padded to 8.
    """
    if trans_a:
        K, M = a.shape
    else:
        M, K = a.shape
    if trans_b:
        N, K2 = b.shape
    else:
        K2, N = b.shape
    assert K == K2

    # Alignment per axis: lane axes need 128, sublane-only axes need 8.
    am = 128 if trans_a else 8
    ak = 128 if ((not trans_a) or trans_b) else 8
    Mp, Kp, Np = _round_up(M, am), _round_up(K, ak), _round_up(N, 128)

    TM = _pick_tile(Mp, 512, am)
    TN = _pick_tile(Np, 512, 128)
    TK = _pick_tile(Kp, 1024, ak)
    # v7x has 2 TensorCores: make sure the "parallel" (i, j) grid has >= 2
    # tiles whenever N is large enough to split into lane-aligned blocks.
    if (Mp // TM) * (Np // TN) == 1 and Np >= 256:
        TN = _pick_tile(Np, Np // 2, 128)

    a_shape = (Kp, Mp) if trans_a else (Mp, Kp)
    b_shape = (Np, Kp) if trans_b else (Kp, Np)
    a_p = _pad2(a.astype(jnp.bfloat16), a_shape)
    b_p = _pad2(b.astype(jnp.bfloat16), b_shape)

    if trans_a:
        a_spec = pl.BlockSpec((TK, TM), lambda i, j, k: (k, i))
    else:
        a_spec = pl.BlockSpec((TM, TK), lambda i, j, k: (i, k))
    if trans_b:
        b_spec = pl.BlockSpec((TN, TK), lambda i, j, k: (j, k))
    else:
        b_spec = pl.BlockSpec((TK, TN), lambda i, j, k: (k, j))

    if bias is None:
        kernel = functools.partial(_mm_kernel, trans_a=trans_a, trans_b=trans_b)
        operands = (a_p, b_p)
        in_specs = [a_spec, b_spec]
    else:
        bias_p = _pad2(bias.astype(jnp.float32), (1, Np))
        kernel = functools.partial(_mm_bias_kernel, trans_a=trans_a,
                                   trans_b=trans_b)
        operands = (a_p, b_p, bias_p)
        in_specs = [a_spec, b_spec,
                    pl.BlockSpec((1, TN), lambda i, j, k: (0, j))]

    out = pl.pallas_call(
        kernel,
        grid=(Mp // TM, Np // TN, Kp // TK),
        in_specs=in_specs,
        out_specs=pl.BlockSpec((TM, TN), lambda i, j, k: (i, j)),
        out_shape=jax.ShapeDtypeStruct((Mp, Np), out_dtype),
        scratch_shapes=[pltpu.VMEM((TM, TN), jnp.float32)],
        compiler_params=pltpu.CompilerParams(
            dimension_semantics=("parallel", "parallel", "arbitrary"),
            vmem_limit_bytes=_VMEM_LIMIT),
    )(*operands)
    if (Mp, Np) != (M, N):
        out = out[:M, :N]
    return out


# ----------------------------------------------------------------------------
# Differentiable dense layer: x @ w_pad + b_pad with pre-padded bf16 weights.
# Forward AND backward run as Pallas kernels; backward uses transposed
# contraction dims (no HBM transpose).  Output keeps the padded N (the only
# caller with N != Np slices outside).
# ----------------------------------------------------------------------------

def _dense_impl(x, w_pad, b_pad, out_dtype):
    Kp = w_pad.shape[0]
    if x.shape[1] != Kp:                           # e.g. input_proj K=16 -> 128
        x = jnp.pad(x, ((0, 0), (0, Kp - x.shape[1])))
    return pallas_matmul(x, w_pad, bias=b_pad, out_dtype=out_dtype)


@functools.partial(jax.custom_vjp, nondiff_argnums=(3,))
def dense_p(x, w_pad, b_pad, out_dtype):
    return _dense_impl(x, w_pad, b_pad, out_dtype)


def _dense_fwd_rule(x, w_pad, b_pad, out_dtype):
    return _dense_impl(x, w_pad, b_pad, out_dtype), (x, w_pad)


def _dense_bwd_rule(out_dtype, res, g):
    x, w_pad = res
    K = x.shape[1]
    # dx = g @ w^T  (transposed contraction, no HBM transpose)
    dx = pallas_matmul(g, w_pad, trans_b=True)[:, :K].astype(x.dtype)
    # dw / db are only needed if weights are differentiated (they are not in
    # the MCMC energy gradient) -> DCE'd by jit, but kept correct.
    dw = pallas_matmul(x, g, trans_a=True)
    dw = jnp.pad(dw, ((0, w_pad.shape[0] - K), (0, 0))).astype(w_pad.dtype)
    db = jnp.sum(g.astype(jnp.float32), axis=0, keepdims=True)
    return dx, dw, db


dense_p.defvjp(_dense_fwd_rule, _dense_bwd_rule)


def dense(x2d, w_pad, b_pad, out_dtype=jnp.float32):
    return dense_p(x2d, w_pad, b_pad, out_dtype)


# ----------------------------------------------------------------------------
# Fused multi-head attention kernels, head-major (B, H, T, hd) layout.
# Custom VJP (recompute-based backward) so the MCMC energy gradient also runs
# through Pallas kernels.  Inputs, outputs and residuals are bf16.
# ----------------------------------------------------------------------------

def _causal_mask(T):
    r = jax.lax.broadcasted_iota(jnp.int32, (T, T), 0)
    c = jax.lax.broadcasted_iota(jnp.int32, (T, T), 1)
    return r >= c


def _attn_fwd_kernel(q_ref, k_ref, v_ref, o_ref, *, scale):
    _, H, T, hd = q_ref.shape
    q, k, v = q_ref[0], k_ref[0], v_ref[0]           # (H, T, hd) bf16
    # head-batched scores: 'htd,hsd->hts'
    s = jax.lax.dot_general(q, k, (((2,), (2,)), ((0,), (0,))),
                            preferred_element_type=jnp.float32) * scale
    mask = _causal_mask(T)
    s = jnp.where(mask[None, :, :], s, -1e30)
    s = s - jnp.max(s, axis=-1, keepdims=True)
    p = jnp.exp(s)
    p = p * pl.reciprocal(jnp.sum(p, axis=-1, keepdims=True), approx=True)
    # 'hts,hsd->htd'
    o = jax.lax.dot_general(p.astype(jnp.bfloat16), v,
                            (((2,), (1,)), ((0,), (0,))),
                            preferred_element_type=jnp.float32)
    o_ref[0] = o.astype(o_ref.dtype)


def _attn_bwd_kernel(q_ref, k_ref, v_ref, g_ref, dq_ref, dk_ref, dv_ref, *,
                     scale):
    _, H, T, hd = q_ref.shape
    mask = _causal_mask(T)
    # Per-head 2-D dots (head slabs, no lane slicing / lane concatenates).
    for h in range(H):
        q, k, v, g = q_ref[0, h], k_ref[0, h], v_ref[0, h], g_ref[0, h]
        # recompute probabilities (identical to forward)
        s = jax.lax.dot_general(q, k, (((1,), (1,)), ((), ())),
                                preferred_element_type=jnp.float32) * scale
        s = jnp.where(mask, s, -1e30)
        s = s - jnp.max(s, axis=-1, keepdims=True)
        p = jnp.exp(s)
        p = p * pl.reciprocal(jnp.sum(p, axis=-1, keepdims=True), approx=True)
        pb = p.astype(jnp.bfloat16)
        # dV = P^T @ dO
        dv = jax.lax.dot_general(pb, g, (((0,), (0,)), ((), ())),
                                 preferred_element_type=jnp.float32)
        # dP = dO @ V^T ; softmax backward ; scale
        dp = jax.lax.dot_general(g, v, (((1,), (1,)), ((), ())),
                                 preferred_element_type=jnp.float32)
        ds = p * (dp - jnp.sum(dp * p, axis=-1, keepdims=True)) * scale
        dsb = ds.astype(jnp.bfloat16)
        dq = jnp.dot(dsb, k, preferred_element_type=jnp.float32)
        dk = jax.lax.dot_general(dsb, q, (((0,), (0,)), ((), ())),
                                 preferred_element_type=jnp.float32)
        dq_ref[0, h] = dq.astype(dq_ref.dtype)
        dk_ref[0, h] = dk.astype(dk_ref.dtype)
        dv_ref[0, h] = dv.astype(dv_ref.dtype)


def _attn_fwd_call(q, k, v):
    B, H, T, hd = q.shape
    scale = 1.0 / math.sqrt(hd)
    spec = pl.BlockSpec((1, H, T, hd), lambda b: (b, 0, 0, 0))
    return pl.pallas_call(
        functools.partial(_attn_fwd_kernel, scale=scale),
        grid=(B,),
        in_specs=[spec, spec, spec],
        out_specs=spec,
        out_shape=jax.ShapeDtypeStruct((B, H, T, hd), jnp.bfloat16),
        compiler_params=pltpu.CompilerParams(
            dimension_semantics=("parallel",),
            vmem_limit_bytes=_VMEM_LIMIT),
    )(q.astype(jnp.bfloat16), k.astype(jnp.bfloat16), v.astype(jnp.bfloat16))


def _attn_bwd_call(q, k, v, g):
    B, H, T, hd = q.shape
    scale = 1.0 / math.sqrt(hd)
    spec = pl.BlockSpec((1, H, T, hd), lambda b: (b, 0, 0, 0))
    sd = jax.ShapeDtypeStruct((B, H, T, hd), jnp.bfloat16)
    return pl.pallas_call(
        functools.partial(_attn_bwd_kernel, scale=scale),
        grid=(B,),
        in_specs=[spec, spec, spec, spec],
        out_specs=(spec, spec, spec),
        out_shape=(sd, sd, sd),
        compiler_params=pltpu.CompilerParams(
            dimension_semantics=("parallel",),
            vmem_limit_bytes=_VMEM_LIMIT),
    )(q.astype(jnp.bfloat16), k.astype(jnp.bfloat16),
      v.astype(jnp.bfloat16), g.astype(jnp.bfloat16))


@jax.custom_vjp
def fused_attention(q, k, v):
    return _attn_fwd_call(q, k, v)


def _fused_attention_fwd(q, k, v):
    return _attn_fwd_call(q, k, v), (q, k, v)   # bf16 residuals


def _fused_attention_bwd(res, g):
    q, k, v = res
    dq, dk, dv = _attn_bwd_call(q, k, v, g)
    return dq, dk, dv


fused_attention.defvjp(_fused_attention_fwd, _fused_attention_bwd)


# ----------------------------------------------------------------------------
# Tiled MSE reduction (SMEM scalar accumulator, big tiles -> few grid steps)
# ----------------------------------------------------------------------------

def _mse_kernel(a_ref, b_ref, o_ref):
    @pl.when(pl.program_id(0) == 0)
    def _init():
        o_ref[0, 0] = jnp.float32(0.0)

    d = a_ref[...] - b_ref[...]
    o_ref[0, 0] += jnp.sum(d * d)


def pallas_mse(a, b):
    n = a.size
    af = a.reshape(-1).astype(jnp.float32)
    bf = b.reshape(-1).astype(jnp.float32)
    lanes = 128
    rows = _round_up(-(-n // lanes), 8)
    tr = min(rows, 1024)
    rows = _round_up(rows, tr)
    total = rows * lanes
    af = jnp.pad(af, (0, total - n)).reshape(rows, lanes)
    bf = jnp.pad(bf, (0, total - n)).reshape(rows, lanes)
    s = pl.pallas_call(
        _mse_kernel,
        grid=(rows // tr,),
        in_specs=[pl.BlockSpec((tr, lanes), lambda i: (i, 0)),
                  pl.BlockSpec((tr, lanes), lambda i: (i, 0))],
        out_specs=pl.BlockSpec((1, 1), lambda i: (0, 0),
                               memory_space=pltpu.MemorySpace.SMEM),
        out_shape=jax.ShapeDtypeStruct((1, 1), jnp.float32),
        compiler_params=pltpu.CompilerParams(
            dimension_semantics=("arbitrary",),
            vmem_limit_bytes=_VMEM_LIMIT),
    )(af, bf)
    return s[0, 0] / n


# ----------------------------------------------------------------------------
# EBT AdaLN transformer (energy function), built on the Pallas kernels
# ----------------------------------------------------------------------------

def _rmsnorm(x, w, eps=1e-5):
    var = jnp.mean(x * x, axis=-1, keepdims=True)
    return x * jax.lax.rsqrt(var + eps) * w


def _modulate(x, shift, scale):
    return x * (1.0 + scale[:, None, :]) + shift[:, None, :]


def _attention(x, lp, n_heads):
    B, T, D = x.shape
    hd = D // n_heads
    qkv = dense(x.reshape(B * T, D), lp["wqkv"], lp["wqkv_b"],
                jnp.bfloat16)                               # (B*T, 3D) bf16
    qkv = qkv.reshape(B, T, 3, n_heads, hd)
    qkv = jnp.transpose(qkv, (2, 0, 3, 1, 4))               # (3, B, H, T, hd)
    o = fused_attention(qkv[0], qkv[1], qkv[2])             # (B, H, T, hd) bf16
    o = jnp.transpose(o, (0, 2, 1, 3)).reshape(B * T, D)
    y = dense(o, lp["wo"], lp["wo_b"], jnp.bfloat16)
    return y.reshape(B, T, D)


def _block(x, mod6, lp, n_heads):
    sa_sh, sa_sc, sa_g, mlp_sh, mlp_sc, mlp_g = jnp.split(mod6, 6, axis=-1)

    h = _modulate(_rmsnorm(x, lp["norm1"]), sa_sh, sa_sc)
    attn = _attention(h, lp, n_heads).astype(jnp.float32)
    x = x + sa_g[:, None, :] * attn

    h = _modulate(_rmsnorm(x, lp["norm2"]), mlp_sh, mlp_sc)
    B, T, D = h.shape
    h13 = dense(h.reshape(B * T, D), lp["w13"], lp["w13_b"],
                jnp.bfloat16)                               # fused w1/w3
    h1, h3 = jnp.split(h13, 2, axis=-1)
    ff = dense(jax.nn.silu(h1) * h3, lp["w2"], lp["w2_b"], jnp.bfloat16)
    x = x + mlp_g[:, None, :] * ff.reshape(B, T, D).astype(jnp.float32)
    return x


def transformer_energy(all_emb, c_vec, tp, n_heads, seq_len):
    """all_emb: (B, 2*(S+1), D); returns per-position energies for the
    predicted half of the sequence, (B, S+1, 1)."""
    B, T, D = all_emb.shape
    depth = len(tp["layers"])

    # One fused adaLN-modulation matmul per energy evaluation: silu(c) is
    # identical for every layer, so all layers' + the final layer's
    # modulation weights are concatenated along N.
    mod_all = dense(jax.nn.silu(c_vec), tp["ada_w"], tp["ada_b"],
                    jnp.float32)                            # (B, 6D*depth + 2D)

    x = all_emb
    for li, lp in enumerate(tp["layers"]):
        mod6 = mod_all[:, li * 6 * D:(li + 1) * 6 * D]
        x = _block(x, mod6, lp, n_heads)

    # Energy is only read from the predicted-sequence half (second S+1
    # positions) -> slice before the final norm/head to halve that work.
    x = x[:, seq_len + 1:, :]
    fmod = mod_all[:, depth * 6 * D:depth * 6 * D + 2 * D]
    shift, scale = jnp.split(fmod, 2, axis=-1)
    x = _modulate(_rmsnorm(x, tp["final_norm"]), shift, scale)
    # Energy head (D -> 1): a lane reduction (VPU/XLA), not a padded
    # 1-column MXU matmul.
    e = jnp.einsum("btd,d->bt", x, tp["head_w"]) + tp["head_b"]
    return e[..., None]


# ----------------------------------------------------------------------------
# DEBT forward (training): patchify -> input_proj -> MCMC refinement ->
#                          output_proj -> unpatchify -> MSE
# ----------------------------------------------------------------------------

def debt_forward(params, x_start, labels, cfg):
    B, C, H, W = x_start.shape
    p = cfg["patch_size"]
    seq_h, seq_w = cfg["seq_h"], cfg["seq_w"]
    D = cfg["embed_dim"]
    S = cfg["seq_len"]

    # patchify (glue, plain JAX)
    xp = x_start.reshape(B, C, seq_h, p, seq_w, p)
    xp = jnp.einsum("nchpwq->nhwcpq", xp).reshape(B, S, C * p * p)

    # input_proj (Pallas matmul with fused bias)
    real_emb = dense(xp.reshape(B * S, C * p * p), params["input_proj_w"],
                     params["input_proj_b"], jnp.float32).reshape(B, S, D)

    cond = params["y_emb"][labels]                       # (B, D)

    # corrupt_embeddings: 'random_noise' init (deterministic key)
    pred0 = jax.random.normal(jax.random.PRNGKey(1), real_emb.shape,
                              jnp.float32)

    alpha = jnp.maximum(params["alpha"], 1e-4)
    start = jnp.broadcast_to(params["start_token"][None], (B, 1, D))
    end = jnp.broadcast_to(params["end_token"][None], (B, 1, D))
    pos = params["pos_embed"]                            # (1, S+2, D)

    real_seq = jnp.concatenate([start, real_emb], axis=1) + pos[:, :S + 1, :]

    def energy_sum(pred, step):
        pred_seq = jnp.concatenate([pred, end], axis=1) + pos[:, 1:S + 2, :]
        all_emb = jnp.concatenate([real_seq, pred_seq], axis=1)
        c_vec = cond + params["mcmc_emb"][step]
        e = transformer_energy(all_emb, c_vec, params["transformer"],
                               cfg["num_heads"], S)
        # matches `energy_preds.reshape(-1, 1).sum()` of the reference
        return jnp.sum(e)

    # MCMC refinement: gradient descent on the energy w.r.t. pred embeddings.
    def body(step, pred):
        g = jax.grad(energy_sum)(pred, step)
        return pred - alpha * g

    pred_emb = jax.lax.fori_loop(0, cfg["mcmc_num_steps"], body, pred0)

    # output_proj (Pallas matmul with fused bias; N=16 -> slice padded lanes)
    pred_tok = dense(pred_emb.reshape(B * S, D), params["output_proj_w"],
                     params["output_proj_b"], jnp.float32)[:, :C * p * p]
    pred_tok = pred_tok.reshape(B, S, C * p * p)

    # unpatchify (glue, plain JAX)
    r = pred_tok.reshape(B, seq_h, seq_w, C, p, p)
    recon = jnp.einsum("nhwcpq->nchpwq", r).reshape(B, C, seq_h * p, seq_w * p)

    # MSE loss as a tiled Pallas reduction kernel
    return pallas_mse(recon, x_start)


# ----------------------------------------------------------------------------
# Deterministic parameter init.  Weights are stored pre-cast to bf16 and
# pre-padded to their (Kp, Np) kernel layout; biases as (1, Np) f32.
# QKV and w1/w3 are fused; all layers' adaLN weights are fused along N.
# ----------------------------------------------------------------------------

def _xavier(key, shape):
    fan_in, fan_out = shape[0], shape[-1]
    limit = math.sqrt(6.0 / (fan_in + fan_out))
    return jax.random.uniform(key, shape, jnp.float32, -limit, limit)


def _pad_w(w):
    K, N = w.shape
    return _pad2(w.astype(jnp.bfloat16),
                 (_round_up(K, 128), _round_up(N, 128)))


def _zero_bias(n):
    return jnp.zeros((1, _round_up(n, 128)), jnp.float32)


def init_params(seed, cfg):
    D = cfg["embed_dim"]
    S = cfg["seq_len"]
    TD = cfg["token_embed_dim"]
    Hf = int(cfg["mlp_ratio"] * D)
    depth = cfg["depth"]

    key = jax.random.PRNGKey(seed)
    keys = iter(jax.random.split(key, 64))

    def nxt():
        return next(keys)

    layers = []
    ada_ws = []
    for _ in range(depth):
        ada_ws.append(_xavier(nxt(), (D, 6 * D)))
        layers.append(dict(
            wqkv=_pad_w(_xavier(nxt(), (D, 3 * D))),      # fused Q/K/V
            wqkv_b=_zero_bias(3 * D),
            wo=_pad_w(_xavier(nxt(), (D, D))),
            wo_b=_zero_bias(D),
            w13=_pad_w(_xavier(nxt(), (D, 2 * Hf))),      # fused w1/w3
            w13_b=_zero_bias(2 * Hf),
            w2=_pad_w(_xavier(nxt(), (Hf, D))),
            w2_b=_zero_bias(D),
            norm1=jnp.ones((D,), jnp.float32),
            norm2=jnp.ones((D,), jnp.float32),
        ))
    ada_ws.append(_xavier(nxt(), (D, 2 * D)))             # final-layer adaLN
    ada_fused = jnp.concatenate(ada_ws, axis=1)           # (D, 6D*depth + 2D)

    transformer = dict(
        layers=layers,
        ada_w=_pad_w(ada_fused),
        ada_b=_zero_bias(ada_fused.shape[1]),
        final_norm=jnp.ones((D,), jnp.float32),
        head_w=_xavier(nxt(), (D, 1)).reshape(D),
        head_b=jnp.zeros((), jnp.float32),
    )

    params = dict(
        alpha=jnp.asarray(cfg["mcmc_step_size"], jnp.float32),
        y_emb=0.02 * jax.random.normal(nxt(), (cfg["class_num"] + 1, D),
                                       jnp.float32),
        pos_embed=0.02 * jax.random.normal(nxt(), (1, S + 2, D), jnp.float32),
        start_token=0.02 * jax.random.normal(nxt(), (1, D), jnp.float32),
        end_token=0.02 * jax.random.normal(nxt(), (1, D), jnp.float32),
        input_proj_w=_pad_w(_xavier(nxt(), (TD, D))),
        input_proj_b=_zero_bias(D),
        output_proj_w=_pad_w(_xavier(nxt(), (D, TD))),
        output_proj_b=_zero_bias(TD),
        mcmc_emb=0.02 * jax.random.normal(nxt(), (cfg["mcmc_num_steps"], D),
                                          jnp.float32),
        transformer=transformer,
    )
    return params


# ----------------------------------------------------------------------------

if __name__ == "__main__":
    cfg = dict(img_size=64, vae_stride=16, patch_size=1, embed_dim=128,
               depth=2, num_heads=4, mlp_ratio=4.0, class_num=10,
               mcmc_num_steps=2, mcmc_step_size=0.01)
    cfg["seq_h"] = cfg["seq_w"] = (cfg["img_size"] // cfg["vae_stride"]
                                   // cfg["patch_size"])
    cfg["seq_len"] = cfg["seq_h"] * cfg["seq_w"]
    cfg["token_embed_dim"] = 16 * cfg["patch_size"] ** 2

    params = init_params(0, cfg)

    key = jax.random.PRNGKey(0)
    kx, kl = jax.random.split(key)
    B = 2
    x_start = jax.random.normal(
        kx,
        (B, 16, cfg["seq_h"] * cfg["patch_size"],
         cfg["seq_w"] * cfg["patch_size"]),
        jnp.float32)
    labels = jax.random.randint(kl, (B,), 0, cfg["class_num"])

    # TODO(synk): Langevin-noise / dropout / autoregressive sampling paths of
    # the reference are not exercised by the training forward and are omitted.
    fwd = jax.jit(functools.partial(debt_forward, cfg=cfg))
    loss = fwd(params, x_start, labels)
    jax.block_until_ready(loss)
    print("KERNEL_OK")
</pallas_src>

<mosaic_0001>
module attributes {stable_mosaic.version = 11 : i64} {
  func.func @_mm_bias_kernel(%arg0: i32, %arg1: i32, %arg2: i32, %arg3: memref<32x128xbf16, #tpu.memory_space<vmem>>, %arg4: memref<128x128xbf16, #tpu.memory_space<vmem>>, %arg5: memref<1x128xf32, #tpu.memory_space<vmem>>, %arg6: memref<32x128xf32, #tpu.memory_space<vmem>>, %arg7: memref<32x128xf32, #tpu.memory_space<vmem>>) attributes {dimension_semantics = [#tpu.dimension_semantics<parallel>, #tpu.dimension_semantics<parallel>, #tpu.dimension_semantics<arbitrary>], iteration_bounds = array<i64: 1, 1, 1>, scalar_prefetch = 0 : i64, scratch_operands = 1 : i64, tpu.core_type = #tpu.core_type<tc>, window_params = [{transform_indices = @transform_0, window_bounds = array<i64: 32, 128>}, {transform_indices = @transform_1, window_bounds = array<i64: 128, 128>}, {transform_indices = @transform_2, window_bounds = array<i64: 1, 128>}, {transform_indices = @transform_3, window_bounds = array<i64: 32, 128>}]} {
    %c0_i32 = arith.constant 0 : i32
    %0 = arith.cmpi eq, %arg2, %c0_i32 : i32
    %1 = arith.extui %0 : i1 to i32
    %c0_i32_0 = arith.constant 0 : i32
    %2 = arith.cmpi ne, %1, %c0_i32_0 : i32
    scf.if %2 {
      %cst_10 = arith.constant 0.000000e+00 : f32
      %12 = vector.broadcast %cst_10 : f32 to vector<32x128xf32>
      %c0_11 = arith.constant 0 : index
      %c0_12 = arith.constant 0 : index
      %13 = vector.load %arg7[%c0_11, %c0_12] : memref<32x128xf32, #tpu.memory_space<vmem>>, vector<32x128xf32>
      tpu.vector_store %arg7[%c0_11, %c0_12], %12 {strides = array<i32>} : memref<32x128xf32, #tpu.memory_space<vmem>>, vector<32x128xf32>,
    } else {
    }
    %c0 = arith.constant 0 : index
    %c0_1 = arith.constant 0 : index
    %3 = vector.load %arg7[%c0, %c0_1] : memref<32x128xf32, #tpu.memory_space<vmem>>, vector<32x128xf32>
    %c0_2 = arith.constant 0 : index
    %c0_3 = arith.constant 0 : index
    %4 = vector.load %arg3[%c0_2, %c0_3] : memref<32x128xbf16, #tpu.memory_space<vmem>>, vector<32x128xbf16>
    %c0_4 = arith.constant 0 : index
    %c0_5 = arith.constant 0 : index
    %5 = vector.load %arg4[%c0_4, %c0_5] : memref<128x128xbf16, #tpu.memory_space<vmem>>, vector<128x128xbf16>
    %cst = arith.constant dense<0.000000e+00> : vector<32x128xf32>
    %6 = tpu.matmul %4, %5, %cst {dimension_numbers = #tpu.dot_dimension_numbers<[1], [0], [0], [1], [0, 0, 1, 1], [], []>} : vector<32x128xbf16>, vector<128x128xbf16>, vector<32x128xf32> -> vector<32x128xf32>
    %7 = arith.addf %3, %6 : vector<32x128xf32>
    %c0_6 = arith.constant 0 : index
    %c0_7 = arith.constant 0 : index
    %8 = vector.load %arg7[%c0_6, %c0_7] : memref<32x128xf32, #tpu.memory_space<vmem>>, vector<32x128xf32>
    tpu.vector_store %arg7[%c0_6, %c0_7], %7 {strides = array<i32>} : memref<32x128xf32, #tpu.memory_space<vmem>>, vector<32x128xf32>,
    %c0_i32_8 = arith.constant 0 : i32
    %9 = arith.cmpi eq, %arg2, %c0_i32_8 : i32
    %10 = arith.extui %9 : i1 to i32
    %c0_i32_9 = arith.constant 0 : i32
    %11 = arith.cmpi ne, %10, %c0_i32_9 : i32
    scf.if %11 {
      %c0_10 = arith.constant 0 : index
      %c0_11 = arith.constant 0 : index
      %12 = vector.load %arg7[%c0_10, %c0_11] : memref<32x128xf32, #tpu.memory_space<vmem>>, vector<32x128xf32>
      %c0_12 = arith.constant 0 : index
      %c0_13 = arith.constant 0 : index
      %13 = vector.load %arg5[%c0_12, %c0_13] : memref<1x128xf32, #tpu.memory_space<vmem>>, vector<1x128xf32>
      %14 = vector.broadcast %13 : vector<1x128xf32> to vector<32x128xf32>
      %15 = arith.addf %12, %14 : vector<32x128xf32>
      %c0_14 = arith.constant 0 : index
      %c0_15 = arith.constant 0 : index
      %16 = vector.load %arg6[%c0_14, %c0_15] : memref<32x128xf32, #tpu.memory_space<vmem>>, vector<32x128xf32>
      tpu.vector_store %arg6[%c0_14, %c0_15], %15 {strides = array<i32>} : memref<32x128xf32, #tpu.memory_space<vmem>>, vector<32x128xf32>,
    } else {
    }
    return
  }
  func.func @transform_0(%arg0: i32, %arg1: i32, %arg2: i32) -> (i32, i32) {
    %c0_i32 = arith.constant 0 : i32
    return %arg0, %arg2 : i32, i32
  }
  func.func @transform_1(%arg0: i32, %arg1: i32, %arg2: i32) -> (i32, i32) {
    %c0_i32 = arith.constant 0 : i32
    return %arg2, %arg1 : i32, i32
  }
  func.func @transform_2(%arg0: i32, %arg1: i32, %arg2: i32) -> (i32, i32) {
    %c0_i32 = arith.constant 0 : i32
    %c0_i32_0 = arith.constant 0 : i32
    return %c0_i32, %arg1 : i32, i32
  }
  func.func @transform_3(%arg0: i32, %arg1: i32, %arg2: i32) -> (i32, i32) {
    %c0_i32 = arith.constant 0 : i32
    return %arg0, %arg1 : i32, i32
  }
}

module attributes {stable_mosaic.version = 11 : i64} {
  func.func @_mm_bias_kernel(%arg0: i32, %arg1: i32, %arg2: i32, %arg3: memref<8x128xbf16, #tpu.memory_space<vmem>>, %arg4: memref<128x256xbf16, #tpu.memory_space<vmem>>, %arg5: memref<1x256xf32, #tpu.memory_space<vmem>>, %arg6: memref<8x256xf32, #tpu.memory_space<vmem>>, %arg7: memref<8x256xf32, #tpu.memory_space<vmem>>) attributes {dimension_semantics = [#tpu.dimension_semantics<parallel>, #tpu.dimension_semantics<parallel>, #tpu.dimension_semantics<arbitrary>], iteration_bounds = array<i64: 1, 7, 1>, scalar_prefetch = 0 : i64, scratch_operands = 1 : i64, tpu.core_type = #tpu.core_type<tc>, window_params = [{transform_indices = @transform_0, window_bounds = array<i64: 8, 128>}, {transform_indices = @transform_1, window_bounds = array<i64: 128, 256>}, {transform_indices = @transform_2, window_bounds = array<i64: 1, 256>}, {transform_indices = @transform_3, window_bounds = array<i64: 8, 256>}]} {
    %c0_i32 = arith.constant 0 : i32
    %0 = arith.cmpi eq, %arg2, %c0_i32 : i32
    %1 = arith.extui %0 : i1 to i32
    %c0_i32_0 = arith.constant 0 : i32
    %2 = arith.cmpi ne, %1, %c0_i32_0 : i32
    scf.if %2 {
      %cst_10 = arith.constant 0.000000e+00 : f32
      %12 = vector.broadcast %cst_10 : f32 to vector<8x256xf32>
      %c0_11 = arith.constant 0 : index
      %c0_12 = arith.constant 0 : index
      %13 = vector.load %arg7[%c0_11, %c0_12] : memref<8x256xf32, #tpu.memory_space<vmem>>, vector<8x256xf32>
      tpu.vector_store %arg7[%c0_11, %c0_12], %12 {strides = array<i32>} : memref<8x256xf32, #tpu.memory_space<vmem>>, vector<8x256xf32>,
    } else {
    }
    %c0 = arith.constant 0 : index
    %c0_1 = arith.constant 0 : index
    %3 = vector.load %arg7[%c0, %c0_1] : memref<8x256xf32, #tpu.memory_space<vmem>>, vector<8x256xf32>
    %c0_2 = arith.constant 0 : index
    %c0_3 = arith.constant 0 : index
    %4 = vector.load %arg3[%c0_2, %c0_3] : memref<8x128xbf16, #tpu.memory_space<vmem>>, vector<8x128xbf16>
    %c0_4 = arith.constant 0 : index
    %c0_5 = arith.constant 0 : index
    %5 = vector.load %arg4[%c0_4, %c0_5] : memref<128x256xbf16, #tpu.memory_space<vmem>>, vector<128x256xbf16>
    %cst = arith.constant dense<0.000000e+00> : vector<8x256xf32>
    %6 = tpu.matmul %4, %5, %cst {dimension_numbers = #tpu.dot_dimension_numbers<[1], [0], [0], [1], [0, 0, 1, 1], [], []>} : vector<8x128xbf16>, vector<128x256xbf16>, vector<8x256xf32> -> vector<8x256xf32>
    %7 = arith.addf %3, %6 : vector<8x256xf32>
    %c0_6 = arith.constant 0 : index
    %c0_7 = arith.constant 0 : index
    %8 = vector.load %arg7[%c0_6, %c0_7] : memref<8x256xf32, #tpu.memory_space<vmem>>, vector<8x256xf32>
    tpu.vector_store %arg7[%c0_6, %c0_7], %7 {strides = array<i32>} : memref<8x256xf32, #tpu.memory_space<vmem>>, vector<8x256xf32>,
    %c0_i32_8 = arith.constant 0 : i32
    %9 = arith.cmpi eq, %arg2, %c0_i32_8 : i32
    %10 = arith.extui %9 : i1 to i32
    %c0_i32_9 = arith.constant 0 : i32
    %11 = arith.cmpi ne, %10, %c0_i32_9 : i32
    scf.if %11 {
      %c0_10 = arith.constant 0 : index
      %c0_11 = arith.constant 0 : index
      %12 = vector.load %arg7[%c0_10, %c0_11] : memref<8x256xf32, #tpu.memory_space<vmem>>, vector<8x256xf32>
      %c0_12 = arith.constant 0 : index
      %c0_13 = arith.constant 0 : index
      %13 = vector.load %arg5[%c0_12, %c0_13] : memref<1x256xf32, #tpu.memory_space<vmem>>, vector<1x256xf32>
      %14 = vector.broadcast %13 : vector<1x256xf32> to vector<8x256xf32>
      %15 = arith.addf %12, %14 : vector<8x256xf32>
      %c0_14 = arith.constant 0 : index
      %c0_15 = arith.constant 0 : index
      %16 = vector.load %arg6[%c0_14, %c0_15] : memref<8x256xf32, #tpu.memory_space<vmem>>, vector<8x256xf32>
      tpu.vector_store %arg6[%c0_14, %c0_15], %15 {strides = array<i32>} : memref<8x256xf32, #tpu.memory_space<vmem>>, vector<8x256xf32>,
    } else {
    }
    return
  }
  func.func @transform_0(%arg0: i32, %arg1: i32, %arg2: i32) -> (i32, i32) {
    %c0_i32 = arith.constant 0 : i32
    return %arg0, %arg2 : i32, i32
  }
  func.func @transform_1(%arg0: i32, %arg1: i32, %arg2: i32) -> (i32, i32) {
    %c0_i32 = arith.constant 0 : i32
    return %arg2, %arg1 : i32, i32
  }
  func.func @transform_2(%arg0: i32, %arg1: i32, %arg2: i32) -> (i32, i32) {
    %c0_i32 = arith.constant 0 : i32
    %c0_i32_0 = arith.constant 0 : i32
    return %c0_i32, %arg1 : i32, i32
  }
  func.func @transform_3(%arg0: i32, %arg1: i32, %arg2: i32) -> (i32, i32) {
    %c0_i32 = arith.constant 0 : i32
    return %arg0, %arg1 : i32, i32
  }
}

module attributes {stable_mosaic.version = 11 : i64} {
  func.func @_mm_bias_kernel(%arg0: i32, %arg1: i32, %arg2: i32, %arg3: memref<72x128xbf16, #tpu.memory_space<vmem>>, %arg4: memref<128x128xbf16, #tpu.memory_space<vmem>>, %arg5: memref<1x128xf32, #tpu.memory_space<vmem>>, %arg6: memref<72x128xbf16, #tpu.memory_space<vmem>>, %arg7: memref<72x128xf32, #tpu.memory_space<vmem>>) attributes {dimension_semantics = [#tpu.dimension_semantics<parallel>, #tpu.dimension_semantics<parallel>, #tpu.dimension_semantics<arbitrary>], iteration_bounds = array<i64: 1, 3, 1>, scalar_prefetch = 0 : i64, scratch_operands = 1 : i64, tpu.core_type = #tpu.core_type<tc>, window_params = [{transform_indices = @transform_0, window_bounds = array<i64: 72, 128>}, {transform_indices = @transform_1, window_bounds = array<i64: 128, 128>}, {transform_indices = @transform_2, window_bounds = array<i64: 1, 128>}, {transform_indices = @transform_3, window_bounds = array<i64: 72, 128>}]} {
    %c0_i32 = arith.constant 0 : i32
    %0 = arith.cmpi eq, %arg2, %c0_i32 : i32
    %1 = arith.extui %0 : i1 to i32
    %c0_i32_0 = arith.constant 0 : i32
    %2 = arith.cmpi ne, %1, %c0_i32_0 : i32
    scf.if %2 {
      %cst_10 = arith.constant 0.000000e+00 : f32
      %12 = vector.broadcast %cst_10 : f32 to vector<72x128xf32>
      %c0_11 = arith.constant 0 : index
      %c0_12 = arith.constant 0 : index
      %13 = vector.load %arg7[%c0_11, %c0_12] : memref<72x128xf32, #tpu.memory_space<vmem>>, vector<72x128xf32>
      tpu.vector_store %arg7[%c0_11, %c0_12], %12 {strides = array<i32>} : memref<72x128xf32, #tpu.memory_space<vmem>>, vector<72x128xf32>,
    } else {
    }
    %c0 = arith.constant 0 : index
    %c0_1 = arith.constant 0 : index
    %3 = vector.load %arg7[%c0, %c0_1] : memref<72x128xf32, #tpu.memory_space<vmem>>, vector<72x128xf32>
    %c0_2 = arith.constant 0 : index
    %c0_3 = arith.constant 0 : index
    %4 = vector.load %arg3[%c0_2, %c0_3] : memref<72x128xbf16, #tpu.memory_space<vmem>>, vector<72x128xbf16>
    %c0_4 = arith.constant 0 : index
    %c0_5 = arith.constant 0 : index
    %5 = vector.load %arg4[%c0_4, %c0_5] : memref<128x128xbf16, #tpu.memory_space<vmem>>, vector<128x128xbf16>
    %cst = arith.constant dense<0.000000e+00> : vector<72x128xf32>
    %6 = tpu.matmul %4, %5, %cst {dimension_numbers = #tpu.dot_dimension_numbers<[1], [0], [0], [1], [0, 0, 1, 1], [], []>} : vector<72x128xbf16>, vector<128x128xbf16>, vector<72x128xf32> -> vector<72x128xf32>
    %7 = arith.addf %3, %6 : vector<72x128xf32>
    %c0_6 = arith.constant 0 : index
    %c0_7 = arith.constant 0 : index
    %8 = vector.load %arg7[%c0_6, %c0_7] : memref<72x128xf32, #tpu.memory_space<vmem>>, vector<72x128xf32>
    tpu.vector_store %arg7[%c0_6, %c0_7], %7 {strides = array<i32>} : memref<72x128xf32, #tpu.memory_space<vmem>>, vector<72x128xf32>,
    %c0_i32_8 = arith.constant 0 : i32
    %9 = arith.cmpi eq, %arg2, %c0_i32_8 : i32
    %10 = arith.extui %9 : i1 to i32
    %c0_i32_9 = arith.constant 0 : i32
    %11 = arith.cmpi ne, %10, %c0_i32_9 : i32
    scf.if %11 {
      %c0_10 = arith.constant 0 : index
      %c0_11 = arith.constant 0 : index
      %12 = vector.load %arg7[%c0_10, %c0_11] : memref<72x128xf32, #tpu.memory_space<vmem>>, vector<72x128xf32>
      %c0_12 = arith.constant 0 : index
      %c0_13 = arith.constant 0 : index
      %13 = vector.load %arg5[%c0_12, %c0_13] : memref<1x128xf32, #tpu.memory_space<vmem>>, vector<1x128xf32>
      %14 = vector.broadcast %13 : vector<1x128xf32> to vector<72x128xf32>
      %15 = arith.addf %12, %14 : vector<72x128xf32>
      %16 = arith.truncf %15 : vector<72x128xf32> to vector<72x128xbf16>
      %c0_14 = arith.constant 0 : index
      %c0_15 = arith.constant 0 : index
      %17 = vector.load %arg6[%c0_14, %c0_15] : memref<72x128xbf16, #tpu.memory_space<vmem>>, vector<72x128xbf16>
      tpu.vector_store %arg6[%c0_14, %c0_15], %16 {strides = array<i32>} : memref<72x128xbf16, #tpu.memory_space<vmem>>, vector<72x128xbf16>,
    } else {
    }
    return
  }
  func.func @transform_0(%arg0: i32, %arg1: i32, %arg2: i32) -> (i32, i32) {
    %c0_i32 = arith.constant 0 : i32
    return %arg0, %arg2 : i32, i32
  }
  func.func @transform_1(%arg0: i32, %arg1: i32, %arg2: i32) -> (i32, i32) {
    %c0_i32 = arith.constant 0 : i32
    return %arg2, %arg1 : i32, i32
  }
  func.func @transform_2(%arg0: i32, %arg1: i32, %arg2: i32) -> (i32, i32) {
    %c0_i32 = arith.constant 0 : i32
    %c0_i32_0 = arith.constant 0 : i32
    return %c0_i32, %arg1 : i32, i32
  }
  func.func @transform_3(%arg0: i32, %arg1: i32, %arg2: i32) -> (i32, i32) {
    %c0_i32 = arith.constant 0 : i32
    return %arg0, %arg1 : i32, i32
  }
}

module attributes {stable_mosaic.version = 11 : i64} {
  func.func @_attn_fwd_kernel(%arg0: i32, %arg1: memref<1x4x34x32xbf16, #tpu.memory_space<vmem>>, %arg2: memref<1x4x34x32xbf16, #tpu.memory_space<vmem>>, %arg3: memref<1x4x34x32xbf16, #tpu.memory_space<vmem>>, %arg4: memref<1x4x34x32xbf16, #tpu.memory_space<vmem>>) attributes {dimension_semantics = [#tpu.dimension_semantics<parallel>], iteration_bounds = array<i64: 2>, scalar_prefetch = 0 : i64, scratch_operands = 0 : i64, tpu.core_type = #tpu.core_type<tc>, window_params = [{transform_indices = @transform_0, window_bounds = array<i64: 1, 4, 34, 32>}, {transform_indices = @transform_1, window_bounds = array<i64: 1, 4, 34, 32>}, {transform_indices = @transform_2, window_bounds = array<i64: 1, 4, 34, 32>}, {transform_indices = @transform_3, window_bounds = array<i64: 1, 4, 34, 32>}]} {
    %c0 = arith.constant 0 : index
    %c0_0 = arith.constant 0 : index
    %c0_1 = arith.constant 0 : index
    %c0_2 = arith.constant 0 : index
    %0 = vector.load %arg1[%c0, %c0_0, %c0_1, %c0_2] : memref<1x4x34x32xbf16, #tpu.memory_space<vmem>>, vector<1x4x34x32xbf16>
    %1 = vector.shape_cast %0 : vector<1x4x34x32xbf16> to vector<4x34x32xbf16>
    %c0_3 = arith.constant 0 : index
    %c0_4 = arith.constant 0 : index
    %c0_5 = arith.constant 0 : index
    %c0_6 = arith.constant 0 : index
    %2 = vector.load %arg2[%c0_3, %c0_4, %c0_5, %c0_6] : memref<1x4x34x32xbf16, #tpu.memory_space<vmem>>, vector<1x4x34x32xbf16>
    %3 = vector.shape_cast %2 : vector<1x4x34x32xbf16> to vector<4x34x32xbf16>
    %c0_7 = arith.constant 0 : index
    %c0_8 = arith.constant 0 : index
    %c0_9 = arith.constant 0 : index
    %c0_10 = arith.constant 0 : index
    %4 = vector.load %arg3[%c0_7, %c0_8, %c0_9, %c0_10] : memref<1x4x34x32xbf16, #tpu.memory_space<vmem>>, vector<1x4x34x32xbf16>
    %5 = vector.shape_cast %4 : vector<1x4x34x32xbf16> to vector<4x34x32xbf16>
    %cst = arith.constant dense<0.000000e+00> : vector<4x34x34xf32>
    %6 = tpu.matmul %1, %3, %cst {dimension_numbers = #tpu.dot_dimension_numbers<[2], [2], [1], [1], [0, 0, 0, 1, 1, 1], [0], [0]>} : vector<4x34x32xbf16>, vector<4x34x32xbf16>, vector<4x34x34xf32> -> vector<4x34x34xf32>
    %cst_11 = arith.constant 0.176776692 : f32
    %7 = vector.broadcast %cst_11 : f32 to vector<4x34x34xf32>
    %8 = arith.mulf %6, %7 : vector<4x34x34xf32>
    %9 = tpu.iota {dimensions = array<i32: 0>} : vector<34x34xi32>
    %10 = tpu.iota {dimensions = array<i32: 1>} : vector<34x34xi32>
    %11 = arith.cmpi sge, %9, %10 : vector<34x34xi32>
    %12 = vector.shape_cast %11 : vector<34x34xi1> to vector<1x34x34xi1>
    %cst_12 = arith.constant -1.000000e+30 : f32
    %13 = vector.shape_cast %12 : vector<1x34x34xi1> to vector<1x34x34xi1>
    %14 = vector.broadcast %13 : vector<1x34x34xi1> to vector<4x34x34xi1>
    %15 = vector.broadcast %cst_12 : f32 to vector<4x34x34xf32>
    %16 = arith.select %14, %8, %15 : vector<4x34x34xi1>, vector<4x34x34xf32>
    %cst_13 = arith.constant dense<0xFF800000> : vector<4x34xf32>
    %17 = vector.multi_reduction <maximumf>, %16, %cst_13 [2] : vector<4x34x34xf32> to vector<4x34xf32>
    %18 = vector.shape_cast %17 : vector<4x34xf32> to vector<4x34x1xf32>
    %19 = vector.broadcast %18 : vector<4x34x1xf32> to vector<4x34x34xf32>
    %20 = arith.subf %16, %19 : vector<4x34x34xf32>
    %21 = math.exp %20 : vector<4x34x34xf32>
    %cst_14 = arith.constant dense<0.000000e+00> : vector<4x34xf32>
    %22 = vector.multi_reduction <add>, %21, %cst_14 [2] : vector<4x34x34xf32> to vector<4x34xf32>
    %23 = vector.shape_cast %22 : vector<4x34xf32> to vector<4x34x1xf32>
    %24 = tpu.reciprocal %23 {approx = true} : vector<4x34x1xf32> -> vector<4x34x1xf32>
    %25 = vector.broadcast %24 : vector<4x34x1xf32> to vector<4x34x34xf32>
    %26 = arith.mulf %21, %25 : vector<4x34x34xf32>
    %27 = arith.truncf %26 : vector<4x34x34xf32> to vector<4x34x34xbf16>
    %cst_15 = arith.constant dense<0.000000e+00> : vector<4x34x32xf32>
    %28 = tpu.matmul %27, %5, %cst_15 {dimension_numbers = #tpu.dot_dimension_numbers<[2], [1], [1], [2], [0, 0, 0, 1, 1, 2], [0], [0]>} : vector<4x34x34xbf16>, vector<4x34x32xbf16>, vector<4x34x32xf32> -> vector<4x34x32xf32>
    %29 = arith.truncf %28 : vector<4x34x32xf32> to vector<4x34x32xbf16>
    %c0_16 = arith.constant 0 : index
    %c0_17 = arith.constant 0 : index
    %c0_18 = arith.constant 0 : index
    %c0_19 = arith.constant 0 : index
    %30 = vector.load %arg4[%c0_16, %c0_17, %c0_18, %c0_19] : memref<1x4x34x32xbf16, #tpu.memory_space<vmem>>, vector<1x4x34x32xbf16>
    %31 = vector.shape_cast %30 : vector<1x4x34x32xbf16> to vector<4x34x32xbf16>
    %32 = vector.shape_cast %29 : vector<4x34x32xbf16> to vector<1x4x34x32xbf16>
    tpu.vector_store %arg4[%c0_16, %c0_17, %c0_18, %c0_19], %32 {strides = array<i32>} : memref<1x4x34x32xbf16, #tpu.memory_space<vmem>>, vector<1x4x34x32xbf16>,
    return
  }
  func.func @transform_0(%arg0: i32) -> (i32, i32, i32, i32) {
    %c0_i32 = arith.constant 0 : i32
    %c0_i32_0 = arith.constant 0 : i32
    %c0_i32_1 = arith.constant 0 : i32
    %c0_i32_2 = arith.constant 0 : i32
    return %arg0, %c0_i32, %c0_i32_0, %c0_i32_1 : i32, i32, i32, i32
  }
  func.func @transform_1(%arg0: i32) -> (i32, i32, i32, i32) {
    %c0_i32 = arith.constant 0 : i32
    %c0_i32_0 = arith.constant 0 : i32
    %c0_i32_1 = arith.constant 0 : i32
    %c0_i32_2 = arith.constant 0 : i32
    return %arg0, %c0_i32, %c0_i32_0, %c0_i32_1 : i32, i32, i32, i32
  }
  func.func @transform_2(%arg0: i32) -> (i32, i32, i32, i32) {
    %c0_i32 = arith.constant 0 : i32
    %c0_i32_0 = arith.constant 0 : i32
    %c0_i32_1 = arith.constant 0 : i32
    %c0_i32_2 = arith.constant 0 : i32
    return %arg0, %c0_i32, %c0_i32_0, %c0_i32_1 : i32, i32, i32, i32
  }
  func.func @transform_3(%arg0: i32) -> (i32, i32, i32, i32) {
    %c0_i32 = arith.constant 0 : i32
    %c0_i32_0 = arith.constant 0 : i32
    %c0_i32_1 = arith.constant 0 : i32
    %c0_i32_2 = arith.constant 0 : i32
    return %arg0, %c0_i32, %c0_i32_0, %c0_i32_1 : i32, i32, i32, i32
  }
}

module attributes {stable_mosaic.version = 11 : i64} {
  func.func @_mm_bias_kernel(%arg0: i32, %arg1: i32, %arg2: i32, %arg3: memref<72x128xbf16, #tpu.memory_space<vmem>>, %arg4: memref<128x128xbf16, #tpu.memory_space<vmem>>, %arg5: memref<1x128xf32, #tpu.memory_space<vmem>>, %arg6: memref<72x128xbf16, #tpu.memory_space<vmem>>, %arg7: memref<72x128xf32, #tpu.memory_space<vmem>>) attributes {dimension_semantics = [#tpu.dimension_semantics<parallel>, #tpu.dimension_semantics<parallel>, #tpu.dimension_semantics<arbitrary>], iteration_bounds = array<i64: 1, 1, 1>, scalar_prefetch = 0 : i64, scratch_operands = 1 : i64, tpu.core_type = #tpu.core_type<tc>, window_params = [{transform_indices = @transform_0, window_bounds = array<i64: 72, 128>}, {transform_indices = @transform_1, window_bounds = array<i64: 128, 128>}, {transform_indices = @transform_2, window_bounds = array<i64: 1, 128>}, {transform_indices = @transform_3, window_bounds = array<i64: 72, 128>}]} {
    %c0_i32 = arith.constant 0 : i32
    %0 = arith.cmpi eq, %arg2, %c0_i32 : i32
    %1 = arith.extui %0 : i1 to i32
    %c0_i32_0 = arith.constant 0 : i32
    %2 = arith.cmpi ne, %1, %c0_i32_0 : i32
    scf.if %2 {
      %cst_10 = arith.constant 0.000000e+00 : f32
      %12 = vector.broadcast %cst_10 : f32 to vector<72x128xf32>
      %c0_11 = arith.constant 0 : index
      %c0_12 = arith.constant 0 : index
      %13 = vector.load %arg7[%c0_11, %c0_12] : memref<72x128xf32, #tpu.memory_space<vmem>>, vector<72x128xf32>
      tpu.vector_store %arg7[%c0_11, %c0_12], %12 {strides = array<i32>} : memref<72x128xf32, #tpu.memory_space<vmem>>, vector<72x128xf32>,
    } else {
    }
    %c0 = arith.constant 0 : index
    %c0_1 = arith.constant 0 : index
    %3 = vector.load %arg7[%c0, %c0_1] : memref<72x128xf32, #tpu.memory_space<vmem>>, vector<72x128xf32>
    %c0_2 = arith.constant 0 : index
    %c0_3 = arith.constant 0 : index
    %4 = vector.load %arg3[%c0_2, %c0_3] : memref<72x128xbf16, #tpu.memory_space<vmem>>, vector<72x128xbf16>
    %c0_4 = arith.constant 0 : index
    %c0_5 = arith.constant 0 : index
    %5 = vector.load %arg4[%c0_4, %c0_5] : memref<128x128xbf16, #tpu.memory_space<vmem>>, vector<128x128xbf16>
    %cst = arith.constant dense<0.000000e+00> : vector<72x128xf32>
    %6 = tpu.matmul %4, %5, %cst {dimension_numbers = #tpu.dot_dimension_numbers<[1], [0], [0], [1], [0, 0, 1, 1], [], []>} : vector<72x128xbf16>, vector<128x128xbf16>, vector<72x128xf32> -> vector<72x128xf32>
    %7 = arith.addf %3, %6 : vector<72x128xf32>
    %c0_6 = arith.constant 0 : index
    %c0_7 = arith.constant 0 : index
    %8 = vector.load %arg7[%c0_6, %c0_7] : memref<72x128xf32, #tpu.memory_space<vmem>>, vector<72x128xf32>
    tpu.vector_store %arg7[%c0_6, %c0_7], %7 {strides = array<i32>} : memref<72x128xf32, #tpu.memory_space<vmem>>, vector<72x128xf32>,
    %c0_i32_8 = arith.constant 0 : i32
    %9 = arith.cmpi eq, %arg2, %c0_i32_8 : i32
    %10 = arith.extui %9 : i1 to i32
    %c0_i32_9 = arith.constant 0 : i32
    %11 = arith.cmpi ne, %10, %c0_i32_9 : i32
    scf.if %11 {
      %c0_10 = arith.constant 0 : index
      %c0_11 = arith.constant 0 : index
      %12 = vector.load %arg7[%c0_10, %c0_11] : memref<72x128xf32, #tpu.memory_space<vmem>>, vector<72x128xf32>
      %c0_12 = arith.constant 0 : index
      %c0_13 = arith.constant 0 : index
      %13 = vector.load %arg5[%c0_12, %c0_13] : memref<1x128xf32, #tpu.memory_space<vmem>>, vector<1x128xf32>
      %14 = vector.broadcast %13 : vector<1x128xf32> to vector<72x128xf32>
      %15 = arith.addf %12, %14 : vector<72x128xf32>
      %16 = arith.truncf %15 : vector<72x128xf32> to vector<72x128xbf16>
      %c0_14 = arith.constant 0 : index
      %c0_15 = arith.constant 0 : index
      %17 = vector.load %arg6[%c0_14, %c0_15] : memref<72x128xbf16, #tpu.memory_space<vmem>>, vector<72x128xbf16>
      tpu.vector_store %arg6[%c0_14, %c0_15], %16 {strides = array<i32>} : memref<72x128xbf16, #tpu.memory_space<vmem>>, vector<72x128xbf16>,
    } else {
    }
    return
  }
  func.func @transform_0(%arg0: i32, %arg1: i32, %arg2: i32) -> (i32, i32) {
    %c0_i32 = arith.constant 0 : i32
    return %arg0, %arg2 : i32, i32
  }
  func.func @transform_1(%arg0: i32, %arg1: i32, %arg2: i32) -> (i32, i32) {
    %c0_i32 = arith.constant 0 : i32
    return %arg2, %arg1 : i32, i32
  }
  func.func @transform_2(%arg0: i32, %arg1: i32, %arg2: i32) -> (i32, i32) {
    %c0_i32 = arith.constant 0 : i32
    %c0_i32_0 = arith.constant 0 : i32
    return %c0_i32, %arg1 : i32, i32
  }
  func.func @transform_3(%arg0: i32, %arg1: i32, %arg2: i32) -> (i32, i32) {
    %c0_i32 = arith.constant 0 : i32
    return %arg0, %arg1 : i32, i32
  }
}

module attributes {stable_mosaic.version = 11 : i64} {
  func.func @_mm_bias_kernel(%arg0: i32, %arg1: i32, %arg2: i32, %arg3: memref<72x128xbf16, #tpu.memory_space<vmem>>, %arg4: memref<128x512xbf16, #tpu.memory_space<vmem>>, %arg5: memref<1x512xf32, #tpu.memory_space<vmem>>, %arg6: memref<72x512xbf16, #tpu.memory_space<vmem>>, %arg7: memref<72x512xf32, #tpu.memory_space<vmem>>) attributes {dimension_semantics = [#tpu.dimension_semantics<parallel>, #tpu.dimension_semantics<parallel>, #tpu.dimension_semantics<arbitrary>], iteration_bounds = array<i64: 1, 2, 1>, scalar_prefetch = 0 : i64, scratch_operands = 1 : i64, tpu.core_type = #tpu.core_type<tc>, window_params = [{transform_indices = @transform_0, window_bounds = array<i64: 72, 128>}, {transform_indices = @transform_1, window_bounds = array<i64: 128, 512>}, {transform_indices = @transform_2, window_bounds = array<i64: 1, 512>}, {transform_indices = @transform_3, window_bounds = array<i64: 72, 512>}]} {
    %c0_i32 = arith.constant 0 : i32
    %0 = arith.cmpi eq, %arg2, %c0_i32 : i32
    %1 = arith.extui %0 : i1 to i32
    %c0_i32_0 = arith.constant 0 : i32
    %2 = arith.cmpi ne, %1, %c0_i32_0 : i32
    scf.if %2 {
      %cst_10 = arith.constant 0.000000e+00 : f32
      %12 = vector.broadcast %cst_10 : f32 to vector<72x512xf32>
      %c0_11 = arith.constant 0 : index
      %c0_12 = arith.constant 0 : index
      %13 = vector.load %arg7[%c0_11, %c0_12] : memref<72x512xf32, #tpu.memory_space<vmem>>, vector<72x512xf32>
      tpu.vector_store %arg7[%c0_11, %c0_12], %12 {strides = array<i32>} : memref<72x512xf32, #tpu.memory_space<vmem>>, vector<72x512xf32>,
    } else {
    }
    %c0 = arith.constant 0 : index
    %c0_1 = arith.constant 0 : index
    %3 = vector.load %arg7[%c0, %c0_1] : memref<72x512xf32, #tpu.memory_space<vmem>>, vector<72x512xf32>
    %c0_2 = arith.constant 0 : index
    %c0_3 = arith.constant 0 : index
    %4 = vector.load %arg3[%c0_2, %c0_3] : memref<72x128xbf16, #tpu.memory_space<vmem>>, vector<72x128xbf16>
    %c0_4 = arith.constant 0 : index
    %c0_5 = arith.constant 0 : index
    %5 = vector.load %arg4[%c0_4, %c0_5] : memref<128x512xbf16, #tpu.memory_space<vmem>>, vector<128x512xbf16>
    %cst = arith.constant dense<0.000000e+00> : vector<72x512xf32>
    %6 = tpu.matmul %4, %5, %cst {dimension_numbers = #tpu.dot_dimension_numbers<[1], [0], [0], [1], [0, 0, 1, 1], [], []>} : vector<72x128xbf16>, vector<128x512xbf16>, vector<72x512xf32> -> vector<72x512xf32>
    %7 = arith.addf %3, %6 : vector<72x512xf32>
    %c0_6 = arith.constant 0 : index
    %c0_7 = arith.constant 0 : index
    %8 = vector.load %arg7[%c0_6, %c0_7] : memref<72x512xf32, #tpu.memory_space<vmem>>, vector<72x512xf32>
    tpu.vector_store %arg7[%c0_6, %c0_7], %7 {strides = array<i32>} : memref<72x512xf32, #tpu.memory_space<vmem>>, vector<72x512xf32>,
    %c0_i32_8 = arith.constant 0 : i32
    %9 = arith.cmpi eq, %arg2, %c0_i32_8 : i32
    %10 = arith.extui %9 : i1 to i32
    %c0_i32_9 = arith.constant 0 : i32
    %11 = arith.cmpi ne, %10, %c0_i32_9 : i32
    scf.if %11 {
      %c0_10 = arith.constant 0 : index
      %c0_11 = arith.constant 0 : index
      %12 = vector.load %arg7[%c0_10, %c0_11] : memref<72x512xf32, #tpu.memory_space<vmem>>, vector<72x512xf32>
      %c0_12 = arith.constant 0 : index
      %c0_13 = arith.constant 0 : index
      %13 = vector.load %arg5[%c0_12, %c0_13] : memref<1x512xf32, #tpu.memory_space<vmem>>, vector<1x512xf32>
      %14 = vector.broadcast %13 : vector<1x512xf32> to vector<72x512xf32>
      %15 = arith.addf %12, %14 : vector<72x512xf32>
      %16 = arith.truncf %15 : vector<72x512xf32> to vector<72x512xbf16>
      %c0_14 = arith.constant 0 : index
      %c0_15 = arith.constant 0 : index
      %17 = vector.load %arg6[%c0_14, %c0_15] : memref<72x512xbf16, #tpu.memory_space<vmem>>, vector<72x512xbf16>
      tpu.vector_store %arg6[%c0_14, %c0_15], %16 {strides = array<i32>} : memref<72x512xbf16, #tpu.memory_space<vmem>>, vector<72x512xbf16>,
    } else {
    }
    return
  }
  func.func @transform_0(%arg0: i32, %arg1: i32, %arg2: i32) -> (i32, i32) {
    %c0_i32 = arith.constant 0 : i32
    return %arg0, %arg2 : i32, i32
  }
  func.func @transform_1(%arg0: i32, %arg1: i32, %arg2: i32) -> (i32, i32) {
    %c0_i32 = arith.constant 0 : i32
    return %arg2, %arg1 : i32, i32
  }
  func.func @transform_2(%arg0: i32, %arg1: i32, %arg2: i32) -> (i32, i32) {
    %c0_i32 = arith.constant 0 : i32
    %c0_i32_0 = arith.constant 0 : i32
    return %c0_i32, %arg1 : i32, i32
  }
  func.func @transform_3(%arg0: i32, %arg1: i32, %arg2: i32) -> (i32, i32) {
    %c0_i32 = arith.constant 0 : i32
    return %arg0, %arg1 : i32, i32
  }
}

module attributes {stable_mosaic.version = 11 : i64} {
  func.func @_mm_bias_kernel(%arg0: i32, %arg1: i32, %arg2: i32, %arg3: memref<72x512xbf16, #tpu.memory_space<vmem>>, %arg4: memref<512x128xbf16, #tpu.memory_space<vmem>>, %arg5: memref<1x128xf32, #tpu.memory_space<vmem>>, %arg6: memref<72x128xbf16, #tpu.memory_space<vmem>>, %arg7: memref<72x128xf32, #tpu.memory_space<vmem>>) attributes {dimension_semantics = [#tpu.dimension_semantics<parallel>, #tpu.dimension_semantics<parallel>, #tpu.dimension_semantics<arbitrary>], iteration_bounds = array<i64: 1, 1, 1>, scalar_prefetch = 0 : i64, scratch_operands = 1 : i64, tpu.core_type = #tpu.core_type<tc>, window_params = [{transform_indices = @transform_0, window_bounds = array<i64: 72, 512>}, {transform_indices = @transform_1, window_bounds = array<i64: 512, 128>}, {transform_indices = @transform_2, window_bounds = array<i64: 1, 128>}, {transform_indices = @transform_3, window_bounds = array<i64: 72, 128>}]} {
    %c0_i32 = arith.constant 0 : i32
    %0 = arith.cmpi eq, %arg2, %c0_i32 : i32
    %1 = arith.extui %0 : i1 to i32
    %c0_i32_0 = arith.constant 0 : i32
    %2 = arith.cmpi ne, %1, %c0_i32_0 : i32
    scf.if %2 {
      %cst_10 = arith.constant 0.000000e+00 : f32
      %12 = vector.broadcast %cst_10 : f32 to vector<72x128xf32>
      %c0_11 = arith.constant 0 : index
      %c0_12 = arith.constant 0 : index
      %13 = vector.load %arg7[%c0_11, %c0_12] : memref<72x128xf32, #tpu.memory_space<vmem>>, vector<72x128xf32>
      tpu.vector_store %arg7[%c0_11, %c0_12], %12 {strides = array<i32>} : memref<72x128xf32, #tpu.memory_space<vmem>>, vector<72x128xf32>,
    } else {
    }
    %c0 = arith.constant 0 : index
    %c0_1 = arith.constant 0 : index
    %3 = vector.load %arg7[%c0, %c0_1] : memref<72x128xf32, #tpu.memory_space<vmem>>, vector<72x128xf32>
    %c0_2 = arith.constant 0 : index
    %c0_3 = arith.constant 0 : index
    %4 = vector.load %arg3[%c0_2, %c0_3] : memref<72x512xbf16, #tpu.memory_space<vmem>>, vector<72x512xbf16>
    %c0_4 = arith.constant 0 : index
    %c0_5 = arith.constant 0 : index
    %5 = vector.load %arg4[%c0_4, %c0_5] : memref<512x128xbf16, #tpu.memory_space<vmem>>, vector<512x128xbf16>
    %cst = arith.constant dense<0.000000e+00> : vector<72x128xf32>
    %6 = tpu.matmul %4, %5, %cst {dimension_numbers = #tpu.dot_dimension_numbers<[1], [0], [0], [1], [0, 0, 1, 1], [], []>} : vector<72x512xbf16>, vector<512x128xbf16>, vector<72x128xf32> -> vector<72x128xf32>
    %7 = arith.addf %3, %6 : vector<72x128xf32>
    %c0_6 = arith.constant 0 : index
    %c0_7 = arith.constant 0 : index
    %8 = vector.load %arg7[%c0_6, %c0_7] : memref<72x128xf32, #tpu.memory_space<vmem>>, vector<72x128xf32>
    tpu.vector_store %arg7[%c0_6, %c0_7], %7 {strides = array<i32>} : memref<72x128xf32, #tpu.memory_space<vmem>>, vector<72x128xf32>,
    %c0_i32_8 = arith.constant 0 : i32
    %9 = arith.cmpi eq, %arg2, %c0_i32_8 : i32
    %10 = arith.extui %9 : i1 to i32
    %c0_i32_9 = arith.constant 0 : i32
    %11 = arith.cmpi ne, %10, %c0_i32_9 : i32
    scf.if %11 {
      %c0_10 = arith.constant 0 : index
      %c0_11 = arith.constant 0 : index
      %12 = vector.load %arg7[%c0_10, %c0_11] : memref<72x128xf32, #tpu.memory_space<vmem>>, vector<72x128xf32>
      %c0_12 = arith.constant 0 : index
      %c0_13 = arith.constant 0 : index
      %13 = vector.load %arg5[%c0_12, %c0_13] : memref<1x128xf32, #tpu.memory_space<vmem>>, vector<1x128xf32>
      %14 = vector.broadcast %13 : vector<1x128xf32> to vector<72x128xf32>
      %15 = arith.addf %12, %14 : vector<72x128xf32>
      %16 = arith.truncf %15 : vector<72x128xf32> to vector<72x128xbf16>
      %c0_14 = arith.constant 0 : index
      %c0_15 = arith.constant 0 : index
      %17 = vector.load %arg6[%c0_14, %c0_15] : memref<72x128xbf16, #tpu.memory_space<vmem>>, vector<72x128xbf16>
      tpu.vector_store %arg6[%c0_14, %c0_15], %16 {strides = array<i32>} : memref<72x128xbf16, #tpu.memory_space<vmem>>, vector<72x128xbf16>,
    } else {
    }
    return
  }
  func.func @transform_0(%arg0: i32, %arg1: i32, %arg2: i32) -> (i32, i32) {
    %c0_i32 = arith.constant 0 : i32
    return %arg0, %arg2 : i32, i32
  }
  func.func @transform_1(%arg0: i32, %arg1: i32, %arg2: i32) -> (i32, i32) {
    %c0_i32 = arith.constant 0 : i32
    return %arg2, %arg1 : i32, i32
  }
  func.func @transform_2(%arg0: i32, %arg1: i32, %arg2: i32) -> (i32, i32) {
    %c0_i32 = arith.constant 0 : i32
    %c0_i32_0 = arith.constant 0 : i32
    return %c0_i32, %arg1 : i32, i32
  }
  func.func @transform_3(%arg0: i32, %arg1: i32, %arg2: i32) -> (i32, i32) {
    %c0_i32 = arith.constant 0 : i32
    return %arg0, %arg1 : i32, i32
  }
}

module attributes {stable_mosaic.version = 11 : i64} {
  func.func @_mm_kernel(%arg0: i32, %arg1: i32, %arg2: i32, %arg3: memref<72x128xbf16, #tpu.memory_space<vmem>>, %arg4: memref<256x128xbf16, #tpu.memory_space<vmem>>, %arg5: memref<72x256xf32, #tpu.memory_space<vmem>>, %arg6: memref<72x256xf32, #tpu.memory_space<vmem>>) attributes {dimension_semantics = [#tpu.dimension_semantics<parallel>, #tpu.dimension_semantics<parallel>, #tpu.dimension_semantics<arbitrary>], iteration_bounds = array<i64: 1, 2, 1>, scalar_prefetch = 0 : i64, scratch_operands = 1 : i64, tpu.core_type = #tpu.core_type<tc>, window_params = [{transform_indices = @transform_0, window_bounds = array<i64: 72, 128>}, {transform_indices = @transform_1, window_bounds = array<i64: 256, 128>}, {transform_indices = @transform_2, window_bounds = array<i64: 72, 256>}]} {
    %c0_i32 = arith.constant 0 : i32
    %0 = arith.cmpi eq, %arg2, %c0_i32 : i32
    %1 = arith.extui %0 : i1 to i32
    %c0_i32_0 = arith.constant 0 : i32
    %2 = arith.cmpi ne, %1, %c0_i32_0 : i32
    scf.if %2 {
      %cst_10 = arith.constant 0.000000e+00 : f32
      %12 = vector.broadcast %cst_10 : f32 to vector<72x256xf32>
      %c0_11 = arith.constant 0 : index
      %c0_12 = arith.constant 0 : index
      %13 = vector.load %arg6[%c0_11, %c0_12] : memref<72x256xf32, #tpu.memory_space<vmem>>, vector<72x256xf32>
      tpu.vector_store %arg6[%c0_11, %c0_12], %12 {strides = array<i32>} : memref<72x256xf32, #tpu.memory_space<vmem>>, vector<72x256xf32>,
    } else {
    }
    %c0 = arith.constant 0 : index
    %c0_1 = arith.constant 0 : index
    %3 = vector.load %arg6[%c0, %c0_1] : memref<72x256xf32, #tpu.memory_space<vmem>>, vector<72x256xf32>
    %c0_2 = arith.constant 0 : index
    %c0_3 = arith.constant 0 : index
    %4 = vector.load %arg3[%c0_2, %c0_3] : memref<72x128xbf16, #tpu.memory_space<vmem>>, vector<72x128xbf16>
    %c0_4 = arith.constant 0 : index
    %c0_5 = arith.constant 0 : index
    %5 = vector.load %arg4[%c0_4, %c0_5] : memref<256x128xbf16, #tpu.memory_space<vmem>>, vector<256x128xbf16>
    %cst = arith.constant dense<0.000000e+00> : vector<72x256xf32>
    %6 = tpu.matmul %4, %5, %cst {dimension_numbers = #tpu.dot_dimension_numbers<[1], [1], [0], [0], [0, 0, 1, 0], [], []>} : vector<72x128xbf16>, vector<256x128xbf16>, vector<72x256xf32> -> vector<72x256xf32>
    %7 = arith.addf %3, %6 : vector<72x256xf32>
    %c0_6 = arith.constant 0 : index
    %c0_7 = arith.constant 0 : index
    %8 = vector.load %arg6[%c0_6, %c0_7] : memref<72x256xf32, #tpu.memory_space<vmem>>, vector<72x256xf32>
    tpu.vector_store %arg6[%c0_6, %c0_7], %7 {strides = array<i32>} : memref<72x256xf32, #tpu.memory_space<vmem>>, vector<72x256xf32>,
    %c0_i32_8 = arith.constant 0 : i32
    %9 = arith.cmpi eq, %arg2, %c0_i32_8 : i32
    %10 = arith.extui %9 : i1 to i32
    %c0_i32_9 = arith.constant 0 : i32
    %11 = arith.cmpi ne, %10, %c0_i32_9 : i32
    scf.if %11 {
      %c0_10 = arith.constant 0 : index
      %c0_11 = arith.constant 0 : index
      %12 = vector.load %arg6[%c0_10, %c0_11] : memref<72x256xf32, #tpu.memory_space<vmem>>, vector<72x256xf32>
      %c0_12 = arith.constant 0 : index
      %c0_13 = arith.constant 0 : index
      %13 = vector.load %arg5[%c0_12, %c0_13] : memref<72x256xf32, #tpu.memory_space<vmem>>, vector<72x256xf32>
      tpu.vector_store %arg5[%c0_12, %c0_13], %12 {strides = array<i32>} : memref<72x256xf32, #tpu.memory_space<vmem>>, vector<72x256xf32>,
    } else {
    }
    return
  }
  func.func @transform_0(%arg0: i32, %arg1: i32, %arg2: i32) -> (i32, i32) {
    %c0_i32 = arith.constant 0 : i32
    return %arg0, %arg2 : i32, i32
  }
  func.func @transform_1(%arg0: i32, %arg1: i32, %arg2: i32) -> (i32, i32) {
    %c0_i32 = arith.constant 0 : i32
    return %arg1, %arg2 : i32, i32
  }
  func.func @transform_2(%arg0: i32, %arg1: i32, %arg2: i32) -> (i32, i32) {
    %c0_i32 = arith.constant 0 : i32
    return %arg0, %arg1 : i32, i32
  }
}

module attributes {stable_mosaic.version = 11 : i64} {
  func.func @_mm_kernel(%arg0: i32, %arg1: i32, %arg2: i32, %arg3: memref<72x1024xbf16, #tpu.memory_space<vmem>>, %arg4: memref<128x1024xbf16, #tpu.memory_space<vmem>>, %arg5: memref<72x128xf32, #tpu.memory_space<vmem>>, %arg6: memref<72x128xf32, #tpu.memory_space<vmem>>) attributes {dimension_semantics = [#tpu.dimension_semantics<parallel>, #tpu.dimension_semantics<parallel>, #tpu.dimension_semantics<arbitrary>], iteration_bounds = array<i64: 1, 1, 1>, scalar_prefetch = 0 : i64, scratch_operands = 1 : i64, tpu.core_type = #tpu.core_type<tc>, window_params = [{transform_indices = @transform_0, window_bounds = array<i64: 72, 1024>}, {transform_indices = @transform_1, window_bounds = array<i64: 128, 1024>}, {transform_indices = @transform_2, window_bounds = array<i64: 72, 128>}]} {
    %c0_i32 = arith.constant 0 : i32
    %0 = arith.cmpi eq, %arg2, %c0_i32 : i32
    %1 = arith.extui %0 : i1 to i32
    %c0_i32_0 = arith.constant 0 : i32
    %2 = arith.cmpi ne, %1, %c0_i32_0 : i32
    scf.if %2 {
      %cst_10 = arith.constant 0.000000e+00 : f32
      %12 = vector.broadcast %cst_10 : f32 to vector<72x128xf32>
      %c0_11 = arith.constant 0 : index
      %c0_12 = arith.constant 0 : index
      %13 = vector.load %arg6[%c0_11, %c0_12] : memref<72x128xf32, #tpu.memory_space<vmem>>, vector<72x128xf32>
      tpu.vector_store %arg6[%c0_11, %c0_12], %12 {strides = array<i32>} : memref<72x128xf32, #tpu.memory_space<vmem>>, vector<72x128xf32>,
    } else {
    }
    %c0 = arith.constant 0 : index
    %c0_1 = arith.constant 0 : index
    %3 = vector.load %arg6[%c0, %c0_1] : memref<72x128xf32, #tpu.memory_space<vmem>>, vector<72x128xf32>
    %c0_2 = arith.constant 0 : index
    %c0_3 = arith.constant 0 : index
    %4 = vector.load %arg3[%c0_2, %c0_3] : memref<72x1024xbf16, #tpu.memory_space<vmem>>, vector<72x1024xbf16>
    %c0_4 = arith.constant 0 : index
    %c0_5 = arith.constant 0 : index
    %5 = vector.load %arg4[%c0_4, %c0_5] : memref<128x1024xbf16, #tpu.memory_space<vmem>>, vector<128x1024xbf16>
    %cst = arith.constant dense<0.000000e+00> : vector<72x128xf32>
    %6 = tpu.matmul %4, %5, %cst {dimension_numbers = #tpu.dot_dimension_numbers<[1], [1], [0], [0], [0, 0, 1, 0], [], []>} : vector<72x1024xbf16>, vector<128x1024xbf16>, vector<72x128xf32> -> vector<72x128xf32>
    %7 = arith.addf %3, %6 : vector<72x128xf32>
    %c0_6 = arith.constant 0 : index
    %c0_7 = arith.constant 0 : index
    %8 = vector.load %arg6[%c0_6, %c0_7] : memref<72x128xf32, #tpu.memory_space<vmem>>, vector<72x128xf32>
    tpu.vector_store %arg6[%c0_6, %c0_7], %7 {strides = array<i32>} : memref<72x128xf32, #tpu.memory_space<vmem>>, vector<72x128xf32>,
    %c0_i32_8 = arith.constant 0 : i32
    %9 = arith.cmpi eq, %arg2, %c0_i32_8 : i32
    %10 = arith.extui %9 : i1 to i32
    %c0_i32_9 = arith.constant 0 : i32
    %11 = arith.cmpi ne, %10, %c0_i32_9 : i32
    scf.if %11 {
      %c0_10 = arith.constant 0 : index
      %c0_11 = arith.constant 0 : index
      %12 = vector.load %arg6[%c0_10, %c0_11] : memref<72x128xf32, #tpu.memory_space<vmem>>, vector<72x128xf32>
      %c0_12 = arith.constant 0 : index
      %c0_13 = arith.constant 0 : index
      %13 = vector.load %arg5[%c0_12, %c0_13] : memref<72x128xf32, #tpu.memory_space<vmem>>, vector<72x128xf32>
      tpu.vector_store %arg5[%c0_12, %c0_13], %12 {strides = array<i32>} : memref<72x128xf32, #tpu.memory_space<vmem>>, vector<72x128xf32>,
    } else {
    }
    return
  }
  func.func @transform_0(%arg0: i32, %arg1: i32, %arg2: i32) -> (i32, i32) {
    %c0_i32 = arith.constant 0 : i32
    return %arg0, %arg2 : i32, i32
  }
  func.func @transform_1(%arg0: i32, %arg1: i32, %arg2: i32) -> (i32, i32) {
    %c0_i32 = arith.constant 0 : i32
    return %arg1, %arg2 : i32, i32
  }
  func.func @transform_2(%arg0: i32, %arg1: i32, %arg2: i32) -> (i32, i32) {
    %c0_i32 = arith.constant 0 : i32
    return %arg0, %arg1 : i32, i32
  }
}

module attributes {stable_mosaic.version = 11 : i64} {
  func.func @_mm_kernel(%arg0: i32, %arg1: i32, %arg2: i32, %arg3: memref<72x128xbf16, #tpu.memory_space<vmem>>, %arg4: memref<128x128xbf16, #tpu.memory_space<vmem>>, %arg5: memref<72x128xf32, #tpu.memory_space<vmem>>, %arg6: memref<72x128xf32, #tpu.memory_space<vmem>>) attributes {dimension_semantics = [#tpu.dimension_semantics<parallel>, #tpu.dimension_semantics<parallel>, #tpu.dimension_semantics<arbitrary>], iteration_bounds = array<i64: 1, 1, 1>, scalar_prefetch = 0 : i64, scratch_operands = 1 : i64, tpu.core_type = #tpu.core_type<tc>, window_params = [{transform_indices = @transform_0, window_bounds = array<i64: 72, 128>}, {transform_indices = @transform_1, window_bounds = array<i64: 128, 128>}, {transform_indices = @transform_2, window_bounds = array<i64: 72, 128>}]} {
    %c0_i32 = arith.constant 0 : i32
    %0 = arith.cmpi eq, %arg2, %c0_i32 : i32
    %1 = arith.extui %0 : i1 to i32
    %c0_i32_0 = arith.constant 0 : i32
    %2 = arith.cmpi ne, %1, %c0_i32_0 : i32
    scf.if %2 {
      %cst_10 = arith.constant 0.000000e+00 : f32
      %12 = vector.broadcast %cst_10 : f32 to vector<72x128xf32>
      %c0_11 = arith.constant 0 : index
      %c0_12 = arith.constant 0 : index
      %13 = vector.load %arg6[%c0_11, %c0_12] : memref<72x128xf32, #tpu.memory_space<vmem>>, vector<72x128xf32>
      tpu.vector_store %arg6[%c0_11, %c0_12], %12 {strides = array<i32>} : memref<72x128xf32, #tpu.memory_space<vmem>>, vector<72x128xf32>,
    } else {
    }
    %c0 = arith.constant 0 : index
    %c0_1 = arith.constant 0 : index
    %3 = vector.load %arg6[%c0, %c0_1] : memref<72x128xf32, #tpu.memory_space<vmem>>, vector<72x128xf32>
    %c0_2 = arith.constant 0 : index
    %c0_3 = arith.constant 0 : index
    %4 = vector.load %arg3[%c0_2, %c0_3] : memref<72x128xbf16, #tpu.memory_space<vmem>>, vector<72x128xbf16>
    %c0_4 = arith.constant 0 : index
    %c0_5 = arith.constant 0 : index
    %5 = vector.load %arg4[%c0_4, %c0_5] : memref<128x128xbf16, #tpu.memory_space<vmem>>, vector<128x128xbf16>
    %cst = arith.constant dense<0.000000e+00> : vector<72x128xf32>
    %6 = tpu.matmul %4, %5, %cst {dimension_numbers = #tpu.dot_dimension_numbers<[1], [1], [0], [0], [0, 0, 1, 0], [], []>} : vector<72x128xbf16>, vector<128x128xbf16>, vector<72x128xf32> -> vector<72x128xf32>
    %7 = arith.addf %3, %6 : vector<72x128xf32>
    %c0_6 = arith.constant 0 : index
    %c0_7 = arith.constant 0 : index
    %8 = vector.load %arg6[%c0_6, %c0_7] : memref<72x128xf32, #tpu.memory_space<vmem>>, vector<72x128xf32>
    tpu.vector_store %arg6[%c0_6, %c0_7], %7 {strides = array<i32>} : memref<72x128xf32, #tpu.memory_space<vmem>>, vector<72x128xf32>,
    %c0_i32_8 = arith.constant 0 : i32
    %9 = arith.cmpi eq, %arg2, %c0_i32_8 : i32
    %10 = arith.extui %9 : i1 to i32
    %c0_i32_9 = arith.constant 0 : i32
    %11 = arith.cmpi ne, %10, %c0_i32_9 : i32
    scf.if %11 {
      %c0_10 = arith.constant 0 : index
      %c0_11 = arith.constant 0 : index
      %12 = vector.load %arg6[%c0_10, %c0_11] : memref<72x128xf32, #tpu.memory_space<vmem>>, vector<72x128xf32>
      %c0_12 = arith.constant 0 : index
      %c0_13 = arith.constant 0 : index
      %13 = vector.load %arg5[%c0_12, %c0_13] : memref<72x128xf32, #tpu.memory_space<vmem>>, vector<72x128xf32>
      tpu.vector_store %arg5[%c0_12, %c0_13], %12 {strides = array<i32>} : memref<72x128xf32, #tpu.memory_space<vmem>>, vector<72x128xf32>,
    } else {
    }
    return
  }
  func.func @transform_0(%arg0: i32, %arg1: i32, %arg2: i32) -> (i32, i32) {
    %c0_i32 = arith.constant 0 : i32
    return %arg0, %arg2 : i32, i32
  }
  func.func @transform_1(%arg0: i32, %arg1: i32, %arg2: i32) -> (i32, i32) {
    %c0_i32 = arith.constant 0 : i32
    return %arg1, %arg2 : i32, i32
  }
  func.func @transform_2(%arg0: i32, %arg1: i32, %arg2: i32) -> (i32, i32) {
    %c0_i32 = arith.constant 0 : i32
    return %arg0, %arg1 : i32, i32
  }
}

module attributes {stable_mosaic.version = 11 : i64} {
  func.func @_attn_bwd_kernel(%arg0: i32, %arg1: memref<1x4x34x32xbf16, #tpu.memory_space<vmem>>, %arg2: memref<1x4x34x32xbf16, #tpu.memory_space<vmem>>, %arg3: memref<1x4x34x32xbf16, #tpu.memory_space<vmem>>, %arg4: memref<1x4x34x32xbf16, #tpu.memory_space<vmem>>, %arg5: memref<1x4x34x32xbf16, #tpu.memory_space<vmem>>, %arg6: memref<1x4x34x32xbf16, #tpu.memory_space<vmem>>, %arg7: memref<1x4x34x32xbf16, #tpu.memory_space<vmem>>) attributes {dimension_semantics = [#tpu.dimension_semantics<parallel>], iteration_bounds = array<i64: 2>, scalar_prefetch = 0 : i64, scratch_operands = 0 : i64, tpu.core_type = #tpu.core_type<tc>, window_params = [{transform_indices = @transform_0, window_bounds = array<i64: 1, 4, 34, 32>}, {transform_indices = @transform_1, window_bounds = array<i64: 1, 4, 34, 32>}, {transform_indices = @transform_2, window_bounds = array<i64: 1, 4, 34, 32>}, {transform_indices = @transform_3, window_bounds = array<i64: 1, 4, 34, 32>}, {transform_indices = @transform_4, window_bounds = array<i64: 1, 4, 34, 32>}, {transform_indices = @transform_5, window_bounds = array<i64: 1, 4, 34, 32>}, {transform_indices = @transform_6, window_bounds = array<i64: 1, 4, 34, 32>}]} {
    %0 = tpu.iota {dimensions = array<i32: 0>} : vector<34x34xi32>
    %1 = tpu.iota {dimensions = array<i32: 1>} : vector<34x34xi32>
    %2 = arith.cmpi sge, %0, %1 : vector<34x34xi32>
    %c0 = arith.constant 0 : index
    %c0_0 = arith.constant 0 : index
    %c0_1 = arith.constant 0 : index
    %c0_2 = arith.constant 0 : index
    %3 = vector.load %arg1[%c0, %c0_0, %c0_1, %c0_2] : memref<1x4x34x32xbf16, #tpu.memory_space<vmem>>, vector<1x1x34x32xbf16>
    %4 = vector.shape_cast %3 : vector<1x1x34x32xbf16> to vector<34x32xbf16>
    %c0_3 = arith.constant 0 : index
    %c0_4 = arith.constant 0 : index
    %c0_5 = arith.constant 0 : index
    %c0_6 = arith.constant 0 : index
    %5 = vector.load %arg2[%c0_3, %c0_4, %c0_5, %c0_6] : memref<1x4x34x32xbf16, #tpu.memory_space<vmem>>, vector<1x1x34x32xbf16>
    %6 = vector.shape_cast %5 : vector<1x1x34x32xbf16> to vector<34x32xbf16>
    %c0_7 = arith.constant 0 : index
    %c0_8 = arith.constant 0 : index
    %c0_9 = arith.constant 0 : index
    %c0_10 = arith.constant 0 : index
    %7 = vector.load %arg3[%c0_7, %c0_8, %c0_9, %c0_10] : memref<1x4x34x32xbf16, #tpu.memory_space<vmem>>, vector<1x1x34x32xbf16>
    %8 = vector.shape_cast %7 : vector<1x1x34x32xbf16> to vector<34x32xbf16>
    %c0_11 = arith.constant 0 : index
    %c0_12 = arith.constant 0 : index
    %c0_13 = arith.constant 0 : index
    %c0_14 = arith.constant 0 : index
    %9 = vector.load %arg4[%c0_11, %c0_12, %c0_13, %c0_14] : memref<1x4x34x32xbf16, #tpu.memory_space<vmem>>, vector<1x1x34x32xbf16>
    %10 = vector.shape_cast %9 : vector<1x1x34x32xbf16> to vector<34x32xbf16>
    %cst = arith.constant dense<0.000000e+00> : vector<34x34xf32>
    %11 = tpu.matmul %4, %6, %cst {dimension_numbers = #tpu.dot_dimension_numbers<[1], [1], [0], [0], [0, 0, 1, 0], [], []>} : vector<34x32xbf16>, vector<34x32xbf16>, vector<34x34xf32> -> vector<34x34xf32>
    %cst_15 = arith.constant 0.176776692 : f32
    %12 = vector.broadcast %cst_15 : f32 to vector<34x34xf32>
    %13 = arith.mulf %11, %12 : vector<34x34xf32>
    %cst_16 = arith.constant -1.000000e+30 : f32
    %14 = vector.broadcast %cst_16 : f32 to vector<34x34xf32>
    %15 = arith.select %2, %13, %14 : vector<34x34xi1>, vector<34x34xf32>
    %cst_17 = arith.constant dense<0xFF800000> : vector<34xf32>
    %16 = vector.multi_reduction <maximumf>, %15, %cst_17 [1] : vector<34x34xf32> to vector<34xf32>
    %17 = vector.shape_cast %16 : vector<34xf32> to vector<34x1xf32>
    %18 = vector.broadcast %17 : vector<34x1xf32> to vector<34x34xf32>
    %19 = arith.subf %15, %18 : vector<34x34xf32>
    %20 = math.exp %19 : vector<34x34xf32>
    %cst_18 = arith.constant dense<0.000000e+00> : vector<34xf32>
    %21 = vector.multi_reduction <add>, %20, %cst_18 [1] : vector<34x34xf32> to vector<34xf32>
    %22 = vector.shape_cast %21 : vector<34xf32> to vector<34x1xf32>
    %23 = tpu.reciprocal %22 {approx = true} : vector<34x1xf32> -> vector<34x1xf32>
    %24 = vector.broadcast %23 : vector<34x1xf32> to vector<34x34xf32>
    %25 = arith.mulf %20, %24 : vector<34x34xf32>
    %26 = arith.truncf %25 : vector<34x34xf32> to vector<34x34xbf16>
    %cst_19 = arith.constant dense<0.000000e+00> : vector<34x32xf32>
    %27 = tpu.matmul %26, %10, %cst_19 {dimension_numbers = #tpu.dot_dimension_numbers<[0], [0], [1], [1], [0, 1, 1, 1], [], []>} : vector<34x34xbf16>, vector<34x32xbf16>, vector<34x32xf32> -> vector<34x32xf32>
    %cst_20 = arith.constant dense<0.000000e+00> : vector<34x34xf32>
    %28 = tpu.matmul %10, %8, %cst_20 {dimension_numbers = #tpu.dot_dimension_numbers<[1], [1], [0], [0], [0, 0, 1, 0], [], []>} : vector<34x32xbf16>, vector<34x32xbf16>, vector<34x34xf32> -> vector<34x34xf32>
    %29 = arith.mulf %28, %25 : vector<34x34xf32>
    %cst_21 = arith.constant dense<0.000000e+00> : vector<34xf32>
    %30 = vector.multi_reduction <add>, %29, %cst_21 [1] : vector<34x34xf32> to vector<34xf32>
    %31 = vector.shape_cast %30 : vector<34xf32> to vector<34x1xf32>
    %32 = vector.broadcast %31 : vector<34x1xf32> to vector<34x34xf32>
    %33 = arith.subf %28, %32 : vector<34x34xf32>
    %34 = arith.mulf %25, %33 : vector<34x34xf32>
    %cst_22 = arith.constant 0.176776692 : f32
    %35 = vector.broadcast %cst_22 : f32 to vector<34x34xf32>
    %36 = arith.mulf %34, %35 : vector<34x34xf32>
    %37 = arith.truncf %36 : vector<34x34xf32> to vector<34x34xbf16>
    %cst_23 = arith.constant dense<0.000000e+00> : vector<34x32xf32>
    %38 = tpu.matmul %37, %6, %cst_23 {dimension_numbers = #tpu.dot_dimension_numbers<[1], [0], [0], [1], [0, 0, 1, 1], [], []>} : vector<34x34xbf16>, vector<34x32xbf16>, vector<34x32xf32> -> vector<34x32xf32>
    %cst_24 = arith.constant dense<0.000000e+00> : vector<34x32xf32>
    %39 = tpu.matmul %37, %4, %cst_24 {dimension_numbers = #tpu.dot_dimension_numbers<[0], [0], [1], [1], [0, 1, 1, 1], [], []>} : vector<34x34xbf16>, vector<34x32xbf16>, vector<34x32xf32> -> vector<34x32xf32>
    %40 = arith.truncf %38 : vector<34x32xf32> to vector<34x32xbf16>
    %c0_25 = arith.constant 0 : index
    %c0_26 = arith.constant 0 : index
    %c0_27 = arith.constant 0 : index
    %c0_28 = arith.constant 0 : index
    %41 = vector.load %arg5[%c0_25, %c0_26, %c0_27, %c0_28] : memref<1x4x34x32xbf16, #tpu.memory_space<vmem>>, vector<1x1x34x32xbf16>
    %42 = vector.shape_cast %41 : vector<1x1x34x32xbf16> to vector<34x32xbf16>
    %43 = vector.shape_cast %40 : vector<34x32xbf16> to vector<1x1x34x32xbf16>
    tpu.vector_store %arg5[%c0_25, %c0_26, %c0_27, %c0_28], %43 {strides = array<i32>} : memref<1x4x34x32xbf16, #tpu.memory_space<vmem>>, vector<1x1x34x32xbf16>,
    %44 = arith.truncf %39 : vector<34x32xf32> to vector<34x32xbf16>
    %c0_29 = arith.constant 0 : index
    %c0_30 = arith.constant 0 : index
    %c0_31 = arith.constant 0 : index
    %c0_32 = arith.constant 0 : index
    %45 = vector.load %arg6[%c0_29, %c0_30, %c0_31, %c0_32] : memref<1x4x34x32xbf16, #tpu.memory_space<vmem>>, vector<1x1x34x32xbf16>
    %46 = vector.shape_cast %45 : vector<1x1x34x32xbf16> to vector<34x32xbf16>
    %47 = vector.shape_cast %44 : vector<34x32xbf16> to vector<1x1x34x32xbf16>
    tpu.vector_store %arg6[%c0_29, %c0_30, %c0_31, %c0_32], %47 {strides = array<i32>} : memref<1x4x34x32xbf16, #tpu.memory_space<vmem>>, vector<1x1x34x32xbf16>,
    %48 = arith.truncf %27 : vector<34x32xf32> to vector<34x32xbf16>
    %c0_33 = arith.constant 0 : index
    %c0_34 = arith.constant 0 : index
    %c0_35 = arith.constant 0 : index
    %c0_36 = arith.constant 0 : index
    %49 = vector.load %arg7[%c0_33, %c0_34, %c0_35, %c0_36] : memref<1x4x34x32xbf16, #tpu.memory_space<vmem>>, vector<1x1x34x32xbf16>
    %50 = vector.shape_cast %49 : vector<1x1x34x32xbf16> to vector<34x32xbf16>
    %51 = vector.shape_cast %48 : vector<34x32xbf16> to vector<1x1x34x32xbf16>
    tpu.vector_store %arg7[%c0_33, %c0_34, %c0_35, %c0_36], %51 {strides = array<i32>} : memref<1x4x34x32xbf16, #tpu.memory_space<vmem>>, vector<1x1x34x32xbf16>,
    %c0_37 = arith.constant 0 : index
    %c1 = arith.constant 1 : index
    %c0_38 = arith.constant 0 : index
    %c0_39 = arith.constant 0 : index
    %52 = vector.load %arg1[%c0_37, %c1, %c0_38, %c0_39] : memref<1x4x34x32xbf16, #tpu.memory_space<vmem>>, vector<1x1x34x32xbf16>
    %53 = vector.shape_cast %52 : vector<1x1x34x32xbf16> to vector<34x32xbf16>
    %c0_40 = arith.constant 0 : index
    %c1_41 = arith.constant 1 : index
    %c0_42 = arith.constant 0 : index
    %c0_43 = arith.constant 0 : index
    %54 = vector.load %arg2[%c0_40, %c1_41, %c0_42, %c0_43] : memref<1x4x34x32xbf16, #tpu.memory_space<vmem>>, vector<1x1x34x32xbf16>
    %55 = vector.shape_cast %54 : vector<1x1x34x32xbf16> to vector<34x32xbf16>
    %c0_44 = arith.constant 0 : index
    %c1_45 = arith.constant 1 : index
    %c0_46 = arith.constant 0 : index
    %c0_47 = arith.constant 0 : index
    %56 = vector.load %arg3[%c0_44, %c1_45, %c0_46, %c0_47] : memref<1x4x34x32xbf16, #tpu.memory_space<vmem>>, vector<1x1x34x32xbf16>
    %57 = vector.shape_cast %56 : vector<1x1x34x32xbf16> to vector<34x32xbf16>
    %c0_48 = arith.constant 0 : index
    %c1_49 = arith.constant 1 : index
    %c0_50 = arith.constant 0 : index
    %c0_51 = arith.constant 0 : index
    %58 = vector.load %arg4[%c0_48, %c1_49, %c0_50, %c0_51] : memref<1x4x34x32xbf16, #tpu.memory_space<vmem>>, vector<1x1x34x32xbf16>
    %59 = vector.shape_cast %58 : vector<1x1x34x32xbf16> to vector<34x32xbf16>
    %cst_52 = arith.constant dense<0.000000e+00> : vector<34x34xf32>
    %60 = tpu.matmul %53, %55, %cst_52 {dimension_numbers = #tpu.dot_dimension_numbers<[1], [1], [0], [0], [0, 0, 1, 0], [], []>} : vector<34x32xbf16>, vector<34x32xbf16>, vector<34x34xf32> -> vector<34x34xf32>
    %cst_53 = arith.constant 0.176776692 : f32
    %61 = vector.broadcast %cst_53 : f32 to vector<34x34xf32>
    %62 = arith.mulf %60, %61 : vector<34x34xf32>
    %cst_54 = arith.constant -1.000000e+30 : f32
    %63 = vector.broadcast %cst_54 : f32 to vector<34x34xf32>
    %64 = arith.select %2, %62, %63 : vector<34x34xi1>, vector<34x34xf32>
    %cst_55 = arith.constant dense<0xFF800000> : vector<34xf32>
    %65 = vector.multi_reduction <maximumf>, %64, %cst_55 [1] : vector<34x34xf32> to vector<34xf32>
    %66 = vector.shape_cast %65 : vector<34xf32> to vector<34x1xf32>
    %67 = vector.broadcast %66 : vector<34x1xf32> to vector<34x34xf32>
    %68 = arith.subf %64, %67 : vector<34x34xf32>
    %69 = math.exp %68 : vector<34x34xf32>
    %cst_56 = arith.constant dense<0.000000e+00> : vector<34xf32>
    %70 = vector.multi_reduction <add>, %69, %cst_56 [1] : vector<34x34xf32> to vector<34xf32>
    %71 = vector.shape_cast %70 : vector<34xf32> to vector<34x1xf32>
    %72 = tpu.reciprocal %71 {approx = true} : vector<34x1xf32> -> vector<34x1xf32>
    %73 = vector.broadcast %72 : vector<34x1xf32> to vector<34x34xf32>
    %74 = arith.mulf %69, %73 : vector<34x34xf32>
    %75 = arith.truncf %74 : vector<34x34xf32> to vector<34x34xbf16>
    %cst_57 = arith.constant dense<0.000000e+00> : vector<34x32xf32>
    %76 = tpu.matmul %75, %59, %cst_57 {dimension_numbers = #tpu.dot_dimension_numbers<[0], [0], [1], [1], [0, 1, 1, 1], [], []>} : vector<34x34xbf16>, vector<34x32xbf16>, vector<34x32xf32> -> vector<34x32xf32>
    %cst_58 = arith.constant dense<0.000000e+00> : vector<34x34xf32>
    %77 = tpu.matmul %59, %57, %cst_58 {dimension_numbers = #tpu.dot_dimension_numbers<[1], [1], [0], [0], [0, 0, 1, 0], [], []>} : vector<34x32xbf16>, vector<34x32xbf16>, vector<34x34xf32> -> vector<34x34xf32>
    %78 = arith.mulf %77, %74 : vector<34x34xf32>
    %cst_59 = arith.constant dense<0.000000e+00> : vector<34xf32>
    %79 = vector.multi_reduction <add>, %78, %cst_59 [1] : vector<34x34xf32> to vector<34xf32>
    %80 = vector.shape_cast %79 : vector<34xf32> to vector<34x1xf32>
    %81 = vector.broadcast %80 : vector<34x1xf32> to vector<34x34xf32>
    %82 = arith.subf %77, %81 : vector<34x34xf32>
    %83 = arith.mulf %74, %82 : vector<34x34xf32>
    %cst_60 = arith.constant 0.176776692 : f32
    %84 = vector.broadcast %cst_60 : f32 to vector<34x34xf32>
    %85 = arith.mulf %83, %84 : vector<34x34xf32>
    %86 = arith.truncf %85 : vector<34x34xf32> to vector<34x34xbf16>
    %cst_61 = arith.constant dense<0.000000e+00> : vector<34x32xf32>
    %87 = tpu.matmul %86, %55, %cst_61 {dimension_numbers = #tpu.dot_dimension_numbers<[1], [0], [0], [1], [0, 0, 1, 1], [], []>} : vector<34x34xbf16>, vector<34x32xbf16>, vector<34x32xf32> -> vector<34x32xf32>
    %cst_62 = arith.constant dense<0.000000e+00> : vector<34x32xf32>
    %88 = tpu.matmul %86, %53, %cst_62 {dimension_numbers = #tpu.dot_dimension_numbers<[0], [0], [1], [1], [0, 1, 1, 1], [], []>} : vector<34x34xbf16>, vector<34x32xbf16>, vector<34x32xf32> -> vector<34x32xf32>
    %89 = arith.truncf %87 : vector<34x32xf32> to vector<34x32xbf16>
    %c0_63 = arith.constant 0 : index
    %c1_64 = arith.constant 1 : index
    %c0_65 = arith.constant 0 : index
    %c0_66 = arith.constant 0 : index
    %90 = vector.load %arg5[%c0_63, %c1_64, %c0_65, %c0_66] : memref<1x4x34x32xbf16, #tpu.memory_space<vmem>>, vector<1x1x34x32xbf16>
    %91 = vector.shape_cast %90 : vector<1x1x34x32xbf16> to vector<34x32xbf16>
    %92 = vector.shape_cast %89 : vector<34x32xbf16> to vector<1x1x34x32xbf16>
    tpu.vector_store %arg5[%c0_63, %c1_64, %c0_65, %c0_66], %92 {strides = array<i32>} : memref<1x4x34x32xbf16, #tpu.memory_space<vmem>>, vector<1x1x34x32xbf16>,
    %93 = arith.truncf %88 : vector<34x32xf32> to vector<34x32xbf16>
    %c0_67 = arith.constant 0 : index
    %c1_68 = arith.constant 1 : index
    %c0_69 = arith.constant 0 : index
    %c0_70 = arith.constant 0 : index
    %94 = vector.load %arg6[%c0_67, %c1_68, %c0_69, %c0_70] : memref<1x4x34x32xbf16, #tpu.memory_space<vmem>>, vector<1x1x34x32xbf16>
    %95 = vector.shape_cast %94 : vector<1x1x34x32xbf16> to vector<34x32xbf16>
    %96 = vector.shape_cast %93 : vector<34x32xbf16> to vector<1x1x34x32xbf16>
    tpu.vector_store %arg6[%c0_67, %c1_68, %c0_69, %c0_70], %96 {strides = array<i32>} : memref<1x4x34x32xbf16, #tpu.memory_space<vmem>>, vector<1x1x34x32xbf16>,
    %97 = arith.truncf %76 : vector<34x32xf32> to vector<34x32xbf16>
    %c0_71 = arith.constant 0 : index
    %c1_72 = arith.constant 1 : index
    %c0_73 = arith.constant 0 : index
    %c0_74 = arith.constant 0 : index
    %98 = vector.load %arg7[%c0_71, %c1_72, %c0_73, %c0_74] : memref<1x4x34x32xbf16, #tpu.memory_space<vmem>>, vector<1x1x34x32xbf16>
    %99 = vector.shape_cast %98 : vector<1x1x34x32xbf16> to vector<34x32xbf16>
    %100 = vector.shape_cast %97 : vector<34x32xbf16> to vector<1x1x34x32xbf16>
    tpu.vector_store %arg7[%c0_71, %c1_72, %c0_73, %c0_74], %100 {strides = array<i32>} : memref<1x4x34x32xbf16, #tpu.memory_space<vmem>>, vector<1x1x34x32xbf16>,
    %c0_75 = arith.constant 0 : index
    %c2 = arith.constant 2 : index
    %c0_76 = arith.constant 0 : index
    %c0_77 = arith.constant 0 : index
    %101 = vector.load %arg1[%c0_75, %c2, %c0_76, %c0_77] : memref<1x4x34x32xbf16, #tpu.memory_space<vmem>>, vector<1x1x34x32xbf16>
    %102 = vector.shape_cast %101 : vector<1x1x34x32xbf16> to vector<34x32xbf16>
    %c0_78 = arith.constant 0 : index
    %c2_79 = arith.constant 2 : index
    %c0_80 = arith.constant 0 : index
    %c0_81 = arith.constant 0 : index
    %103 = vector.load %arg2[%c0_78, %c2_79, %c0_80, %c0_81] : memref<1x4x34x32xbf16, #tpu.memory_space<vmem>>, vector<1x1x34x32xbf16>
    %104 = vector.shape_cast %103 : vector<1x1x34x32xbf16> to vector<34x32xbf16>
    %c0_82 = arith.constant 0 : index
    %c2_83 = arith.constant 2 : index
    %c0_84 = arith.constant 0 : index
    %c0_85 = arith.constant 0 : index
    %105 = vector.load %arg3[%c0_82, %c2_83, %c0_84, %c0_85] : memref<1x4x34x32xbf16, #tpu.memory_space<vmem>>, vector<1x1x34x32xbf16>
    %106 = vector.shape_cast %105 : vector<1x1x34x32xbf16> to vector<34x32xbf16>
    %c0_86 = arith.constant 0 : index
    %c2_87 = arith.constant 2 : index
    %c0_88 = arith.constant 0 : index
    %c0_89 = arith.constant 0 : index
    %107 = vector.load %arg4[%c0_86, %c2_87, %c0_88, %c0_89] : memref<1x4x34x32xbf16, #tpu.memory_space<vmem>>, vector<1x1x34x32xbf16>
    %108 = vector.shape_cast %107 : vector<1x1x34x32xbf16> to vector<34x32xbf16>
    %cst_90 = arith.constant dense<0.000000e+00> : vector<34x34xf32>
    %109 = tpu.matmul %102, %104, %cst_90 {dimension_numbers = #tpu.dot_dimension_numbers<[1], [1], [0], [0], [0, 0, 1, 0], [], []>} : vector<34x32xbf16>, vector<34x32xbf16>, vector<34x34xf32> -> vector<34x34xf32>
    %cst_91 = arith.constant 0.176776692 : f32
    %110 = vector.broadcast %cst_91 : f32 to vector<34x34xf32>
    %111 = arith.mulf %109, %110 : vector<34x34xf32>
    %cst_92 = arith.constant -1.000000e+30 : f32
    %112 = vector.broadcast %cst_92 : f32 to vector<34x34xf32>
    %113 = arith.select %2, %111, %112 : vector<34x34xi1>, vector<34x34xf32>
    %cst_93 = arith.constant dense<0xFF800000> : vector<34xf32>
    %114 = vector.multi_reduction <maximumf>, %113, %cst_93 [1] : vector<34x34xf32> to vector<34xf32>
    %115 = vector.shape_cast %114 : vector<34xf32> to vector<34x1xf32>
    %116 = vector.broadcast %115 : vector<34x1xf32> to vector<34x34xf32>
    %117 = arith.subf %113, %116 : vector<34x34xf32>
    %118 = math.exp %117 : vector<34x34xf32>
    %cst_94 = arith.constant dense<0.000000e+00> : vector<34xf32>
    %119 = vector.multi_reduction <add>, %118, %cst_94 [1] : vector<34x34xf32> to vector<34xf32>
    %120 = vector.shape_cast %119 : vector<34xf32> to vector<34x1xf32>
    %121 = tpu.reciprocal %120 {approx = true} : vector<34x1xf32> -> vector<34x1xf32>
    %122 = vector.broadcast %121 : vector<34x1xf32> to vector<34x34xf32>
    %123 = arith.mulf %118, %122 : vector<34x34xf32>
    %124 = arith.truncf %123 : vector<34x34xf32> to vector<34x34xbf16>
    %cst_95 = arith.constant dense<0.000000e+00> : vector<34x32xf32>
    %125 = tpu.matmul %124, %108, %cst_95 {dimension_numbers = #tpu.dot_dimension_numbers<[0], [0], [1], [1], [0, 1, 1, 1], [], []>} : vector<34x34xbf16>, vector<34x32xbf16>, vector<34x32xf32> -> vector<34x32xf32>
    %cst_96 = arith.constant dense<0.000000e+00> : vector<34x34xf32>
    %126 = tpu.matmul %108, %106, %cst_96 {dimension_numbers = #tpu.dot_dimension_numbers<[1], [1], [0], [0], [0, 0, 1, 0], [], []>} : vector<34x32xbf16>, vector<34x32xbf16>, vector<34x34xf32> -> vector<34x34xf32>
    %127 = arith.mulf %126, %123 : vector<34x34xf32>
    %cst_97 = arith.constant dense<0.000000e+00> : vector<34xf32>
    %128 = vector.multi_reduction <add>, %127, %cst_97 [1] : vector<34x34xf32> to vector<34xf32>
    %129 = vector.shape_cast %128 : vector<34xf32> to vector<34x1xf32>
    %130 = vector.broadcast %129 : vector<34x1xf32> to vector<34x34xf32>
    %131 = arith.subf %126, %130 : vector<34x34xf32>
    %132 = arith.mulf %123, %131 : vector<34x34xf32>
    %cst_98 = arith.constant 0.176776692 : f32
    %133 = vector.broadcast %cst_98 : f32 to vector<34x34xf32>
    %134 = arith.mulf %132, %133 : vector<34x34xf32>
    %135 = arith.truncf %134 : vector<34x34xf32> to vector<34x34xbf16>
    %cst_99 = arith.constant dense<0.000000e+00> : vector<34x32xf32>
    %136 = tpu.matmul %135, %104, %cst_99 {dimension_numbers = #tpu.dot_dimension_numbers<[1], [0], [0], [1], [0, 0, 1, 1], [], []>} : vector<34x34xbf16>, vector<34x32xbf16>, vector<34x32xf32> -> vector<34x32xf32>
    %cst_100 = arith.constant dense<0.000000e+00> : vector<34x32xf32>
    %137 = tpu.matmul %135, %102, %cst_100 {dimension_numbers = #tpu.dot_dimension_numbers<[0], [0], [1], [1], [0, 1, 1, 1], [], []>} : vector<34x34xbf16>, vector<34x32xbf16>, vector<34x32xf32> -> vector<34x32xf32>
    %138 = arith.truncf %136 : vector<34x32xf32> to vector<34x32xbf16>
    %c0_101 = arith.constant 0 : index
    %c2_102 = arith.constant 2 : index
    %c0_103 = arith.constant 0 : index
    %c0_104 = arith.constant 0 : index
    %139 = vector.load %arg5[%c0_101, %c2_102, %c0_103, %c0_104] : memref<1x4x34x32xbf16, #tpu.memory_space<vmem>>, vector<1x1x34x32xbf16>
    %140 = vector.shape_cast %139 : vector<1x1x34x32xbf16> to vector<34x32xbf16>
    %141 = vector.shape_cast %138 : vector<34x32xbf16> to vector<1x1x34x32xbf16>
    tpu.vector_store %arg5[%c0_101, %c2_102, %c0_103, %c0_104], %141 {strides = array<i32>} : memref<1x4x34x32xbf16, #tpu.memory_space<vmem>>, vector<1x1x34x32xbf16>,
    %142 = arith.truncf %137 : vector<34x32xf32> to vector<34x32xbf16>
    %c0_105 = arith.constant 0 : index
    %c2_106 = arith.constant 2 : index
    %c0_107 = arith.constant 0 : index
    %c0_108 = arith.constant 0 : index
    %143 = vector.load %arg6[%c0_105, %c2_106, %c0_107, %c0_108] : memref<1x4x34x32xbf16, #tpu.memory_space<vmem>>, vector<1x1x34x32xbf16>
    %144 = vector.shape_cast %143 : vector<1x1x34x32xbf16> to vector<34x32xbf16>
    %145 = vector.shape_cast %142 : vector<34x32xbf16> to vector<1x1x34x32xbf16>
    tpu.vector_store %arg6[%c0_105, %c2_106, %c0_107, %c0_108], %145 {strides = array<i32>} : memref<1x4x34x32xbf16, #tpu.memory_space<vmem>>, vector<1x1x34x32xbf16>,
    %146 = arith.truncf %125 : vector<34x32xf32> to vector<34x32xbf16>
    %c0_109 = arith.constant 0 : index
    %c2_110 = arith.constant 2 : index
    %c0_111 = arith.constant 0 : index
    %c0_112 = arith.constant 0 : index
    %147 = vector.load %arg7[%c0_109, %c2_110, %c0_111, %c0_112] : memref<1x4x34x32xbf16, #tpu.memory_space<vmem>>, vector<1x1x34x32xbf16>
    %148 = vector.shape_cast %147 : vector<1x1x34x32xbf16> to vector<34x32xbf16>
    %149 = vector.shape_cast %146 : vector<34x32xbf16> to vector<1x1x34x32xbf16>
    tpu.vector_store %arg7[%c0_109, %c2_110, %c0_111, %c0_112], %149 {strides = array<i32>} : memref<1x4x34x32xbf16, #tpu.memory_space<vmem>>, vector<1x1x34x32xbf16>,
    %c0_113 = arith.constant 0 : index
    %c3 = arith.constant 3 : index
    %c0_114 = arith.constant 0 : index
    %c0_115 = arith.constant 0 : index
    %150 = vector.load %arg1[%c0_113, %c3, %c0_114, %c0_115] : memref<1x4x34x32xbf16, #tpu.memory_space<vmem>>, vector<1x1x34x32xbf16>
    %151 = vector.shape_cast %150 : vector<1x1x34x32xbf16> to vector<34x32xbf16>
    %c0_116 = arith.constant 0 : index
    %c3_117 = arith.constant 3 : index
    %c0_118 = arith.constant 0 : index
    %c0_119 = arith.constant 0 : index
    %152 = vector.load %arg2[%c0_116, %c3_117, %c0_118, %c0_119] : memref<1x4x34x32xbf16, #tpu.memory_space<vmem>>, vector<1x1x34x32xbf16>
    %153 = vector.shape_cast %152 : vector<1x1x34x32xbf16> to vector<34x32xbf16>
    %c0_120 = arith.constant 0 : index
    %c3_121 = arith.constant 3 : index
    %c0_122 = arith.constant 0 : index
    %c0_123 = arith.constant 0 : index
    %154 = vector.load %arg3[%c0_120, %c3_121, %c0_122, %c0_123] : memref<1x4x34x32xbf16, #tpu.memory_space<vmem>>, vector<1x1x34x32xbf16>
    %155 = vector.shape_cast %154 : vector<1x1x34x32xbf16> to vector<34x32xbf16>
    %c0_124 = arith.constant 0 : index
    %c3_125 = arith.constant 3 : index
    %c0_126 = arith.constant 0 : index
    %c0_127 = arith.constant 0 : index
    %156 = vector.load %arg4[%c0_124, %c3_125, %c0_126, %c0_127] : memref<1x4x34x32xbf16, #tpu.memory_space<vmem>>, vector<1x1x34x32xbf16>
    %157 = vector.shape_cast %156 : vector<1x1x34x32xbf16> to vector<34x32xbf16>
    %cst_128 = arith.constant dense<0.000000e+00> : vector<34x34xf32>
    %158 = tpu.matmul %151, %153, %cst_128 {dimension_numbers = #tpu.dot_dimension_numbers<[1], [1], [0], [0], [0, 0, 1, 0], [], []>} : vector<34x32xbf16>, vector<34x32xbf16>, vector<34x34xf32> -> vector<34x34xf32>
    %cst_129 = arith.constant 0.176776692 : f32
    %159 = vector.broadcast %cst_129 : f32 to vector<34x34xf32>
    %160 = arith.mulf %158, %159 : vector<34x34xf32>
    %cst_130 = arith.constant -1.000000e+30 : f32
    %161 = vector.broadcast %cst_130 : f32 to vector<34x34xf32>
    %162 = arith.select %2, %160, %161 : vector<34x34xi1>, vector<34x34xf32>
    %cst_131 = arith.constant dense<0xFF800000> : vector<34xf32>
    %163 = vector.multi_reduction <maximumf>, %162, %cst_131 [1] : vector<34x34xf32> to vector<34xf32>
    %164 = vector.shape_cast %163 : vector<34xf32> to vector<34x1xf32>
    %165 = vector.broadcast %164 : vector<34x1xf32> to vector<34x34xf32>
    %166 = arith.subf %162, %165 : vector<34x34xf32>
    %167 = math.exp %166 : vector<34x34xf32>
    %cst_132 = arith.constant dense<0.000000e+00> : vector<34xf32>
    %168 = vector.multi_reduction <add>, %167, %cst_132 [1] : vector<34x34xf32> to vector<34xf32>
    %169 = vector.shape_cast %168 : vector<34xf32> to vector<34x1xf32>
    %170 = tpu.reciprocal %169 {approx = true} : vector<34x1xf32> -> vector<34x1xf32>
    %171 = vector.broadcast %170 : vector<34x1xf32> to vector<34x34xf32>
    %172 = arith.mulf %167, %171 : vector<34x34xf32>
    %173 = arith.truncf %172 : vector<34x34xf32> to vector<34x34xbf16>
    %cst_133 = arith.constant dense<0.000000e+00> : vector<34x32xf32>
    %174 = tpu.matmul %173, %157, %cst_133 {dimension_numbers = #tpu.dot_dimension_numbers<[0], [0], [1], [1], [0, 1, 1, 1], [], []>} : vector<34x34xbf16>, vector<34x32xbf16>, vector<34x32xf32> -> vector<34x32xf32>
    %cst_134 = arith.constant dense<0.000000e+00> : vector<34x34xf32>
    %175 = tpu.matmul %157, %155, %cst_134 {dimension_numbers = #tpu.dot_dimension_numbers<[1], [1], [0], [0], [0, 0, 1, 0], [], []>} : vector<34x32xbf16>, vector<34x32xbf16>, vector<34x34xf32> -> vector<34x34xf32>
    %176 = arith.mulf %175, %172 : vector<34x34xf32>
    %cst_135 = arith.constant dense<0.000000e+00> : vector<34xf32>
    %177 = vector.multi_reduction <add>, %176, %cst_135 [1] : vector<34x34xf32> to vector<34xf32>
    %178 = vector.shape_cast %177 : vector<34xf32> to vector<34x1xf32>
    %179 = vector.broadcast %178 : vector<34x1xf32> to vector<34x34xf32>
    %180 = arith.subf %175, %179 : vector<34x34xf32>
    %181 = arith.mulf %172, %180 : vector<34x34xf32>
    %cst_136 = arith.constant 0.176776692 : f32
    %182 = vector.broadcast %cst_136 : f32 to vector<34x34xf32>
    %183 = arith.mulf %181, %182 : vector<34x34xf32>
    %184 = arith.truncf %183 : vector<34x34xf32> to vector<34x34xbf16>
    %cst_137 = arith.constant dense<0.000000e+00> : vector<34x32xf32>
    %185 = tpu.matmul %184, %153, %cst_137 {dimension_numbers = #tpu.dot_dimension_numbers<[1], [0], [0], [1], [0, 0, 1, 1], [], []>} : vector<34x34xbf16>, vector<34x32xbf16>, vector<34x32xf32> -> vector<34x32xf32>
    %cst_138 = arith.constant dense<0.000000e+00> : vector<34x32xf32>
    %186 = tpu.matmul %184, %151, %cst_138 {dimension_numbers = #tpu.dot_dimension_numbers<[0], [0], [1], [1], [0, 1, 1, 1], [], []>} : vector<34x34xbf16>, vector<34x32xbf16>, vector<34x32xf32> -> vector<34x32xf32>
    %187 = arith.truncf %185 : vector<34x32xf32> to vector<34x32xbf16>
    %c0_139 = arith.constant 0 : index
    %c3_140 = arith.constant 3 : index
    %c0_141 = arith.constant 0 : index
    %c0_142 = arith.constant 0 : index
    %188 = vector.load %arg5[%c0_139, %c3_140, %c0_141, %c0_142] : memref<1x4x34x32xbf16, #tpu.memory_space<vmem>>, vector<1x1x34x32xbf16>
    %189 = vector.shape_cast %188 : vector<1x1x34x32xbf16> to vector<34x32xbf16>
    %190 = vector.shape_cast %187 : vector<34x32xbf16> to vector<1x1x34x32xbf16>
    tpu.vector_store %arg5[%c0_139, %c3_140, %c0_141, %c0_142], %190 {strides = array<i32>} : memref<1x4x34x32xbf16, #tpu.memory_space<vmem>>, vector<1x1x34x32xbf16>,
    %191 = arith.truncf %186 : vector<34x32xf32> to vector<34x32xbf16>
    %c0_143 = arith.constant 0 : index
    %c3_144 = arith.constant 3 : index
    %c0_145 = arith.constant 0 : index
    %c0_146 = arith.constant 0 : index
    %192 = vector.load %arg6[%c0_143, %c3_144, %c0_145, %c0_146] : memref<1x4x34x32xbf16, #tpu.memory_space<vmem>>, vector<1x1x34x32xbf16>
    %193 = vector.shape_cast %192 : vector<1x1x34x32xbf16> to vector<34x32xbf16>
    %194 = vector.shape_cast %191 : vector<34x32xbf16> to vector<1x1x34x32xbf16>
    tpu.vector_store %arg6[%c0_143, %c3_144, %c0_145, %c0_146], %194 {strides = array<i32>} : memref<1x4x34x32xbf16, #tpu.memory_space<vmem>>, vector<1x1x34x32xbf16>,
    %195 = arith.truncf %174 : vector<34x32xf32> to vector<34x32xbf16>
    %c0_147 = arith.constant 0 : index
    %c3_148 = arith.constant 3 : index
    %c0_149 = arith.constant 0 : index
    %c0_150 = arith.constant 0 : index
    %196 = vector.load %arg7[%c0_147, %c3_148, %c0_149, %c0_150] : memref<1x4x34x32xbf16, #tpu.memory_space<vmem>>, vector<1x1x34x32xbf16>
    %197 = vector.shape_cast %196 : vector<1x1x34x32xbf16> to vector<34x32xbf16>
    %198 = vector.shape_cast %195 : vector<34x32xbf16> to vector<1x1x34x32xbf16>
    tpu.vector_store %arg7[%c0_147, %c3_148, %c0_149, %c0_150], %198 {strides = array<i32>} : memref<1x4x34x32xbf16, #tpu.memory_space<vmem>>, vector<1x1x34x32xbf16>,
    return
  }
  func.func @transform_0(%arg0: i32) -> (i32, i32, i32, i32) {
    %c0_i32 = arith.constant 0 : i32
    %c0_i32_0 = arith.constant 0 : i32
    %c0_i32_1 = arith.constant 0 : i32
    %c0_i32_2 = arith.constant 0 : i32
    return %arg0, %c0_i32, %c0_i32_0, %c0_i32_1 : i32, i32, i32, i32
  }
  func.func @transform_1(%arg0: i32) -> (i32, i32, i32, i32) {
    %c0_i32 = arith.constant 0 : i32
    %c0_i32_0 = arith.constant 0 : i32
    %c0_i32_1 = arith.constant 0 : i32
    %c0_i32_2 = arith.constant 0 : i32
    return %arg0, %c0_i32, %c0_i32_0, %c0_i32_1 : i32, i32, i32, i32
  }
  func.func @transform_2(%arg0: i32) -> (i32, i32, i32, i32) {
    %c0_i32 = arith.constant 0 : i32
    %c0_i32_0 = arith.constant 0 : i32
    %c0_i32_1 = arith.constant 0 : i32
    %c0_i32_2 = arith.constant 0 : i32
    return %arg0, %c0_i32, %c0_i32_0, %c0_i32_1 : i32, i32, i32, i32
  }
  func.func @transform_3(%arg0: i32) -> (i32, i32, i32, i32) {
    %c0_i32 = arith.constant 0 : i32
    %c0_i32_0 = arith.constant 0 : i32
    %c0_i32_1 = arith.constant 0 : i32
    %c0_i32_2 = arith.constant 0 : i32
    return %arg0, %c0_i32, %c0_i32_0, %c0_i32_1 : i32, i32, i32, i32
  }
  func.func @transform_4(%arg0: i32) -> (i32, i32, i32, i32) {
    %c0_i32 = arith.constant 0 : i32
    %c0_i32_0 = arith.constant 0 : i32
    %c0_i32_1 = arith.constant 0 : i32
    %c0_i32_2 = arith.constant 0 : i32
    return %arg0, %c0_i32, %c0_i32_0, %c0_i32_1 : i32, i32, i32, i32
  }
  func.func @transform_5(%arg0: i32) -> (i32, i32, i32, i32) {
    %c0_i32 = arith.constant 0 : i32
    %c0_i32_0 = arith.constant 0 : i32
    %c0_i32_1 = arith.constant 0 : i32
    %c0_i32_2 = arith.constant 0 : i32
    return %arg0, %c0_i32, %c0_i32_0, %c0_i32_1 : i32, i32, i32, i32
  }
  func.func @transform_6(%arg0: i32) -> (i32, i32, i32, i32) {
    %c0_i32 = arith.constant 0 : i32
    %c0_i32_0 = arith.constant 0 : i32
    %c0_i32_1 = arith.constant 0 : i32
    %c0_i32_2 = arith.constant 0 : i32
    return %arg0, %c0_i32, %c0_i32_0, %c0_i32_1 : i32, i32, i32, i32
  }
}

module attributes {stable_mosaic.version = 11 : i64} {
  func.func @_mm_kernel(%arg0: i32, %arg1: i32, %arg2: i32, %arg3: memref<72x384xbf16, #tpu.memory_space<vmem>>, %arg4: memref<128x384xbf16, #tpu.memory_space<vmem>>, %arg5: memref<72x128xf32, #tpu.memory_space<vmem>>, %arg6: memref<72x128xf32, #tpu.memory_space<vmem>>) attributes {dimension_semantics = [#tpu.dimension_semantics<parallel>, #tpu.dimension_semantics<parallel>, #tpu.dimension_semantics<arbitrary>], iteration_bounds = array<i64: 1, 1, 1>, scalar_prefetch = 0 : i64, scratch_operands = 1 : i64, tpu.core_type = #tpu.core_type<tc>, window_params = [{transform_indices = @transform_0, window_bounds = array<i64: 72, 384>}, {transform_indices = @transform_1, window_bounds = array<i64: 128, 384>}, {transform_indices = @transform_2, window_bounds = array<i64: 72, 128>}]} {
    %c0_i32 = arith.constant 0 : i32
    %0 = arith.cmpi eq, %arg2, %c0_i32 : i32
    %1 = arith.extui %0 : i1 to i32
    %c0_i32_0 = arith.constant 0 : i32
    %2 = arith.cmpi ne, %1, %c0_i32_0 : i32
    scf.if %2 {
      %cst_10 = arith.constant 0.000000e+00 : f32
      %12 = vector.broadcast %cst_10 : f32 to vector<72x128xf32>
      %c0_11 = arith.constant 0 : index
      %c0_12 = arith.constant 0 : index
      %13 = vector.load %arg6[%c0_11, %c0_12] : memref<72x128xf32, #tpu.memory_space<vmem>>, vector<72x128xf32>
      tpu.vector_store %arg6[%c0_11, %c0_12], %12 {strides = array<i32>} : memref<72x128xf32, #tpu.memory_space<vmem>>, vector<72x128xf32>,
    } else {
    }
    %c0 = arith.constant 0 : index
    %c0_1 = arith.constant 0 : index
    %3 = vector.load %arg6[%c0, %c0_1] : memref<72x128xf32, #tpu.memory_space<vmem>>, vector<72x128xf32>
    %c0_2 = arith.constant 0 : index
    %c0_3 = arith.constant 0 : index
    %4 = vector.load %arg3[%c0_2, %c0_3] : memref<72x384xbf16, #tpu.memory_space<vmem>>, vector<72x384xbf16>
    %c0_4 = arith.constant 0 : index
    %c0_5 = arith.constant 0 : index
    %5 = vector.load %arg4[%c0_4, %c0_5] : memref<128x384xbf16, #tpu.memory_space<vmem>>, vector<128x384xbf16>
    %cst = arith.constant dense<0.000000e+00> : vector<72x128xf32>
    %6 = tpu.matmul %4, %5, %cst {dimension_numbers = #tpu.dot_dimension_numbers<[1], [1], [0], [0], [0, 0, 1, 0], [], []>} : vector<72x384xbf16>, vector<128x384xbf16>, vector<72x128xf32> -> vector<72x128xf32>
    %7 = arith.addf %3, %6 : vector<72x128xf32>
    %c0_6 = arith.constant 0 : index
    %c0_7 = arith.constant 0 : index
    %8 = vector.load %arg6[%c0_6, %c0_7] : memref<72x128xf32, #tpu.memory_space<vmem>>, vector<72x128xf32>
    tpu.vector_store %arg6[%c0_6, %c0_7], %7 {strides = array<i32>} : memref<72x128xf32, #tpu.memory_space<vmem>>, vector<72x128xf32>,
    %c0_i32_8 = arith.constant 0 : i32
    %9 = arith.cmpi eq, %arg2, %c0_i32_8 : i32
    %10 = arith.extui %9 : i1 to i32
    %c0_i32_9 = arith.constant 0 : i32
    %11 = arith.cmpi ne, %10, %c0_i32_9 : i32
    scf.if %11 {
      %c0_10 = arith.constant 0 : index
      %c0_11 = arith.constant 0 : index
      %12 = vector.load %arg6[%c0_10, %c0_11] : memref<72x128xf32, #tpu.memory_space<vmem>>, vector<72x128xf32>
      %c0_12 = arith.constant 0 : index
      %c0_13 = arith.constant 0 : index
      %13 = vector.load %arg5[%c0_12, %c0_13] : memref<72x128xf32, #tpu.memory_space<vmem>>, vector<72x128xf32>
      tpu.vector_store %arg5[%c0_12, %c0_13], %12 {strides = array<i32>} : memref<72x128xf32, #tpu.memory_space<vmem>>, vector<72x128xf32>,
    } else {
    }
    return
  }
  func.func @transform_0(%arg0: i32, %arg1: i32, %arg2: i32) -> (i32, i32) {
    %c0_i32 = arith.constant 0 : i32
    return %arg0, %arg2 : i32, i32
  }
  func.func @transform_1(%arg0: i32, %arg1: i32, %arg2: i32) -> (i32, i32) {
    %c0_i32 = arith.constant 0 : i32
    return %arg1, %arg2 : i32, i32
  }
  func.func @transform_2(%arg0: i32, %arg1: i32, %arg2: i32) -> (i32, i32) {
    %c0_i32 = arith.constant 0 : i32
    return %arg0, %arg1 : i32, i32
  }
}

module attributes {stable_mosaic.version = 11 : i64} {
  func.func @_mse_kernel(%arg0: i32, %arg1: memref<8x128xf32, #tpu.memory_space<vmem>>, %arg2: memref<8x128xf32, #tpu.memory_space<vmem>>, %arg3: memref<1x1xf32, #tpu.memory_space<smem>>) attributes {dimension_semantics = [#tpu.dimension_semantics<arbitrary>], iteration_bounds = array<i64: 1>, scalar_prefetch = 0 : i64, scratch_operands = 0 : i64, tpu.core_type = #tpu.core_type<tc>, window_params = [{transform_indices = @transform_0, window_bounds = array<i64: 8, 128>}, {transform_indices = @transform_1, window_bounds = array<i64: 8, 128>}, {transform_indices = @transform_2, window_bounds = array<i64: 1, 1>}]} {
    %c0_i32 = arith.constant 0 : i32
    %0 = arith.cmpi eq, %arg0, %c0_i32 : i32
    %1 = arith.extui %0 : i1 to i32
    %c0_i32_0 = arith.constant 0 : i32
    %2 = arith.cmpi ne, %1, %c0_i32_0 : i32
    scf.if %2 {
      %cst_8 = arith.constant 0.000000e+00 : f32
      %c0_9 = arith.constant 0 : index
      %c0_10 = arith.constant 0 : index
      %14 = memref.load %arg3[%c0_9, %c0_10] : memref<1x1xf32, #tpu.memory_space<smem>>
      memref.store %cst_8, %arg3[%c0_9, %c0_10] : memref<1x1xf32, #tpu.memory_space<smem>>
    } else {
    }
    %c0 = arith.constant 0 : index
    %c0_1 = arith.constant 0 : index
    %3 = vector.load %arg1[%c0, %c0_1] : memref<8x128xf32, #tpu.memory_space<vmem>>, vector<8x128xf32>
    %c0_2 = arith.constant 0 : index
    %c0_3 = arith.constant 0 : index
    %4 = vector.load %arg2[%c0_2, %c0_3] : memref<8x128xf32, #tpu.memory_space<vmem>>, vector<8x128xf32>
    %5 = arith.subf %3, %4 : vector<8x128xf32>
    %c0_4 = arith.constant 0 : index
    %c0_5 = arith.constant 0 : index
    %6 = memref.load %arg3[%c0_4, %c0_5] : memref<1x1xf32, #tpu.memory_space<smem>>
    %7 = arith.mulf %5, %5 : vector<8x128xf32>
    %8 = vector.shape_cast %7 : vector<8x128xf32> to vector<1x8x128xf32>
    %cst = arith.constant dense<0.000000e+00> : vector<1xf32>
    %9 = vector.multi_reduction <add>, %8, %cst [1, 2] : vector<1x8x128xf32> to vector<1xf32>
    %10 = vector.shape_cast %9 : vector<1xf32> to vector<1x1x1xf32>
    %11 = vector.extract %10[0, 0, 0] : f32 from vector<1x1x1xf32>
    %12 = arith.addf %6, %11 : f32
    %c0_6 = arith.constant 0 : index
    %c0_7 = arith.constant 0 : index
    %13 = memref.load %arg3[%c0_6, %c0_7] : memref<1x1xf32, #tpu.memory_space<smem>>
    memref.store %12, %arg3[%c0_6, %c0_7] : memref<1x1xf32, #tpu.memory_space<smem>>
    return
  }
  func.func @transform_0(%arg0: i32) -> (i32, i32) {
    %c0_i32 = arith.constant 0 : i32
    %c0_i32_0 = arith.constant 0 : i32
    return %arg0, %c0_i32 : i32, i32
  }
  func.func @transform_1(%arg0: i32) -> (i32, i32) {
    %c0_i32 = arith.constant 0 : i32
    %c0_i32_0 = arith.constant 0 : i32
    return %arg0, %c0_i32 : i32, i32
  }
  func.func @transform_2(%arg0: i32) -> (i32, i32) {
    %c0_i32 = arith.constant 0 : i32
    %c0_i32_0 = arith.constant 0 : i32
    %c0_i32_1 = arith.constant 0 : i32
    return %c0_i32, %c0_i32_0 : i32, i32
  }
}

</mosaic_0001>

<llo_original>
// kernel: mul.1800
$region0: #{mul.1800}
  #allocation0 [shape = 's32[1]{0}', space=sflag, size = 0x4, scoped, tag = 'scoped memory for mul.1800']
  %s0 = inlined_call_operand.vmem [shape: f32[2,128], index: 0, kind: input, shape index: {}]
  %s1 = inlined_call_operand.vmem [shape: f32[2,34,128], index: 1, kind: output, shape index: {}]
  // Predicated region
  $region2: #{mul.1800} parent=0 // pred_check
    _
  $region3: #{mul.1800} parent=0 // pred_check_branch
    %3 = sbr.rel (0) target = $region5
  $region4: #{mul.1800} parent=0 // pred_region
    _
  $region5: #{mul.1800} parent=0 // pred_fallthru
    _
  %v4 = vld [vmem:[%s0] ss:$0 sm:$0xff]
  %5 = vst [vmem:[%s1] sm:$0xff] %v4
  %s6 = scalar_lea.vmem %s0, 1
  %v7 = vld [vmem:[%s6] ss:$0 sm:$0xff]
  %s8 = scalar_lea.vmem %s1, 40
  %9 = vst [vmem:[%s8] sm:$0xff] %v7
  %s10 = scalar_lea.vmem %s1, 8
  %11 = vst [vmem:[%s10] sm:$0xff] %v4
  %s12 = scalar_lea.vmem %s1, 48
  %13 = vst [vmem:[%s12] sm:$0xff] %v7
  %s14 = scalar_lea.vmem %s1, 16
  %15 = vst [vmem:[%s14] sm:$0xff] %v4
  %s16 = scalar_lea.vmem %s1, 56
  %17 = vst [vmem:[%s16] sm:$0xff] %v7
  %s18 = scalar_lea.vmem %s1, 24
  %19 = vst [vmem:[%s18] sm:$0xff] %v4
  %s20 = scalar_lea.vmem %s1, 64
  %21 = vst [vmem:[%s20] sm:$0xff] %v7
  %s22 = scalar_lea.vmem %s1, 32
  %23 = vst [vmem:[%s22] sm:$0xff] %v4
  %s24 = scalar_lea.vmem %s1, 72
  %25 = vst [vmem:[%s24] sm:$0xff] %v7

// kernel: jvp__.121
$region0: #{jvp__.121}
  #allocation0 [shape = 'u32[]', space=smem, size = 0x4, offset = 0x4, fixed_abs, tag = 'smem constant byte address 0x4 - core index']
  #allocation1 [shape = 'u32[72,128]{1,0:T(1,128)}', space=vmem, size = 0x9000, scoped, tag = 'internal scratch']
  #allocation2 [shape = 'f32[8,256]{1,0:T(8,128)}', space=vmem, size = 0x2000, scoped, tag = 'scratch operand']
  %s0 = inlined_call_operand.vmem [shape: bf16[8,128], index: 0, kind: input, shape index: {}]
  %s1 = inlined_call_operand.hbm [shape: bf16[128,1792], index: 1, kind: input, shape index: {}]
  %s2 = inlined_call_operand.vmem [shape: f32[1,1792], index: 2, kind: input, shape index: {}]
  %s3 = inlined_call_operand.vmem [shape: f32[8,1792], index: 3, kind: output, shape index: {}]
  %s4 = sld [smem:[#allocation0]]
  $region57: #{jvp__.121} parent=0
    _
  %s6 = ssub.s32 1, %s4
  %s7 = scalar_select 0, %s6, %s4
  $region1: #{jvp__.121} parent=0
    #allocation3 [shape = 'u8[131072]{0}', space=vmem, size = 0x20000, scoped, tag = 'input window, operand 1']
    #allocation4 [shape = 's32[2]{0}', space=sflag, size = 0x8, scoped, tag = 'scoped memory for jvp__.121']
    %8 = vsyncpa [#allocation4], 0
    %s9 = scalar_lea.sflag [#allocation4], 1
    %10 = vsyncpa %s9, 0
    loop: start=0, step=1, limit=9
    $region2: #{jvp__.121} parent=1 // loop_pre_header
      _
    $region3: #{jvp__.121} parent=1 // loop_header
      %s12 = sphi 0, %s16
      %p13 = scmp.ge.s32.totalorder %s12, 9
      %s19 = sphi 0, %s38
      %s20 = sphi 0, %s34
      %s21 = sphi 0, %s30
      %s22 = sphi 0, %s19
      %s23 = sphi 0, %s20
      %s24 = sphi 0, %s21
      %s25 = sphi 0, %s22
      %s26 = sphi 0, %s23
      %s27 = sphi 0, %s24
      %s43 = sphi 0, %s45
      %s46 = sphi 0, %s43
      %s47 = sphi 0, %s46
      %s63 = sphi 0, %s47
      %s71 = sphi 0, %s73
      %s74 = sphi 0, %s71
      %s75 = sphi 0, %s74
      %s91 = sphi 0, %s75
      %s97 = sphi 0, %s99
      %s100 = sphi 0, %s97
      %s101 = sphi 0, %s100
      %s117 = sphi 0, %s101
      %s125 = sphi 0, %s127
      %s128 = sphi 0, %s125
      %s129 = sphi 0, %s128
      %s145 = sphi 0, %s129
    $region4: #{jvp__.121} parent=1 // loop_header_branch
      %15 = sbr.rel (%p13) target = $region8
    $region5: #{jvp__.121} parent=1 // loop_body
      %s17 = ssub.s32 %s12, 1
      %s18 = ssub.s32 %s12, 2
      %s28 = sadd.s32 1, %s21
      %p29 = scmp.ge.s32.totalorder %s28, 1
      %s30 = scalar_select %p29, 0, %s28
      %s31 = sadd.s32 1, %s20
      %s32 = scalar_select %p29, %s31, %s20
      %p33 = scmp.ge.s32.totalorder %s32, 7
      %s34 = scalar_select %p33, 0, %s32
      %s35 = sadd.s32 1, %s19
      %s36 = scalar_select %p33, %s35, %s19
      %p37 = scmp.ge.s32.totalorder %s36, 1
      %s38 = scalar_select %p37, 0, %s36
      %s39 = ssub.s32 %s19, %s38
      %s40 = ssub.s32 %s21, %s30
      %s41 = sor.u32 %s39, %s40
      %p42 = scmp.eq.s32.totalorder %s41, 0
      %s44 = sadd.s32 %s43, 1
      %s45 = scalar_select %p42, %s43, %s44
      %p48 = pneg %p42
      %p49 = scmp.eq.s32.totalorder %s12, 6
      %p50 = por %p48, %p49
      %p51 = scmp.ne.s32.totalorder %s43, %s46
      %p52 = scmp.eq.s32.totalorder %s12, 0
      %p53 = por %p51, %p52
      %p54 = scmp.ne.s32.totalorder %s43, %s46
      %p55 = scmp.eq.s32.totalorder %s17, 6
      %p56 = por %p54, %p55
      %p57 = scmp.ne.s32.totalorder %s46, %s47
      %p58 = scmp.eq.s32.totalorder %s17, 0
      %p59 = por %p57, %p58
      %p60 = scmp.ne.s32.totalorder %s46, %s47
      %p61 = scmp.eq.s32.totalorder %s18, 6
      %p62 = por %p60, %p61
      %p64 = scmp.ne.s32.totalorder %s47, %s63
      %p65 = scmp.eq.s32.totalorder %s18, 0
      %p66 = por %p64, %p65
      %s67 = ssub.s32 %s21, %s30
      %s68 = ssub.s32 %s20, %s34
      %s69 = sor.u32 %s67, %s68
      %p70 = scmp.eq.s32.totalorder %s69, 0
      %s72 = sadd.s32 %s71, 1
      %s73 = scalar_select %p70, %s71, %s72
      %p76 = pneg %p70
      %p77 = scmp.eq.s32.totalorder %s12, 6
      %p78 = por %p76, %p77
      %p79 = scmp.ne.s32.totalorder %s71, %s74
      %p80 = scmp.eq.s32.totalorder %s12, 0
      %p81 = por %p79, %p80
      %p82 = scmp.ne.s32.totalorder %s71, %s74
      %p83 = scmp.eq.s32.totalorder %s17, 6
      %p84 = por %p82, %p83
      %p85 = scmp.ne.s32.totalorder %s74, %s75
      %p86 = scmp.eq.s32.totalorder %s17, 0
      %p87 = por %p85, %p86
      %p88 = scmp.ne.s32.totalorder %s74, %s75
      %p89 = scmp.eq.s32.totalorder %s18, 6
      %p90 = por %p88, %p89
      %p92 = scmp.ne.s32.totalorder %s75, %s91
      %p93 = scmp.eq.s32.totalorder %s18, 0
      %p94 = por %p92, %p93
      %s95 = ssub.s32 %s20, %s34
      %p96 = scmp.eq.s32.totalorder %s95, 0
      %s98 = sadd.s32 %s97, 1
      %s99 = scalar_select %p96, %s97, %s98
      %p102 = pneg %p96
      %p103 = scmp.eq.s32.totalorder %s12, 6
      %p104 = por %p102, %p103
      %p105 = scmp.ne.s32.totalorder %s97, %s100
      %p106 = scmp.eq.s32.totalorder %s12, 0
      %p107 = por %p105, %p106
      %p108 = scmp.ne.s32.totalorder %s97, %s100
      %p109 = scmp.eq.s32.totalorder %s17, 6
      %p110 = por %p108, %p109
      %p111 = scmp.ne.s32.totalorder %s100, %s101
      %p112 = scmp.eq.s32.totalorder %s17, 0
      %p113 = por %p111, %p112
      %p114 = scmp.ne.s32.totalorder %s100, %s101
      %p115 = scmp.eq.s32.totalorder %s18, 6
      %p116 = por %p114, %p115
      %p118 = scmp.ne.s32.totalorder %s101, %s117
      %p119 = scmp.eq.s32.totalorder %s18, 0
      %p120 = por %p118, %p119
      %s121 = ssub.s32 %s19, %s38
      %s122 = ssub.s32 %s20, %s34
      %s123 = sor.u32 %s121, %s122
      %p124 = scmp.eq.s32.totalorder %s123, 0
      %s126 = sadd.s32 %s125, 1
      %s127 = scalar_select %p124, %s125, %s126
      %p130 = pneg %p124
      %p131 = scmp.eq.s32.totalorder %s12, 6
      %p132 = por %p130, %p131
      %p133 = scmp.ne.s32.totalorder %s125, %s128
      %p134 = scmp.eq.s32.totalorder %s12, 0
      %p135 = por %p133, %p134
      %p136 = scmp.ne.s32.totalorder %s125, %s128
      %p137 = scmp.eq.s32.totalorder %s17, 6
      %p138 = por %p136, %p137
      %p139 = scmp.ne.s32.totalorder %s128, %s129
      %p140 = scmp.eq.s32.totalorder %s17, 0
      %p141 = por %p139, %p140
      %p142 = scmp.ne.s32.totalorder %s128, %s129
      %p143 = scmp.eq.s32.totalorder %s18, 6
      %p144 = por %p142, %p143
      %p146 = scmp.ne.s32.totalorder %s129, %s145
      %p147 = scmp.eq.s32.totalorder %s18, 0
      %p148 = por %p146, %p147
      %p149 = scmp.le.s32.totalorder 1, %s12
      %p150 = scmp.lt.s32.totalorder %s12, 8
      %p151 = pnand %p149, %p150
      %p152 = pneg %p151
      // Predicated region
      $region9: #{jvp__.121} parent=5 // pred_check
        _
      $region10: #{jvp__.121} parent=5 // pred_check_branch
        %154 = sbr.rel (%p151) target = $region12
      $region11: #{jvp__.121} parent=5 // pred_region
        %s155 = ssub.s32 %s12, 1
        // Predicated region
        $region13: #{jvp__.121} parent=11 // pred_check
          %p156 = pneg %p59
        $region14: #{jvp__.121} parent=11 // pred_check_branch
          %158 = sbr.rel (%p156) target = $region16
        $region15: #{jvp__.121} parent=11 // pred_region
          %p159 = scmp.lt.s32.totalorder %s22, 0
          %s160 = scalar_select %p159, %s22, 0
          %p161 = scmp.lt.s32.totalorder %s24, 0
          %s162 = scalar_select %p161, %s24, 0
          %s163 = sadd.s32 %s162, %s160
          %s164 = smul.addr %s163, 4
          %s165 = scalar_lea.vmem %s0, %s164
        $region16: #{jvp__.121} parent=11 // pred_fallthru
          _
      $region12: #{jvp__.121} parent=5 // pred_fallthru
        _
      %p166 = scmp.lt.s32.totalorder %s12, 7
      // Predicated region
      $region17: #{jvp__.121} parent=5 // pred_check
        %p167 = pneg %p166
      $region18: #{jvp__.121} parent=5 // pred_check_branch
        %169 = sbr.rel (%p167) target = $region20
      $region19: #{jvp__.121} parent=5 // pred_region
        // Predicated region
        $region21: #{jvp__.121} parent=19 // pred_check
          %p170 = pneg %p81
        $region22: #{jvp__.121} parent=19 // pred_check_branch
          %172 = sbr.rel (%p170) target = $region24
        $region23: #{jvp__.121} parent=19 // pred_region
          %s173 = sand.u32 %s71, 1
          %s174 = scalar_lea.sflag [#allocation4], %s173
          %s175 = sand.u32 %s71, 1
          %s176 = smul.addr %s175, 128
          %s177 = scalar_lea.vmem [#allocation3], %s176
          %s178 = smul.u32 16, %s21
          %s179 = smul.u32 2, %s20
          %181 = vsyncadd %s174, 0
          %s182 = smul.addr %s178, 14
          %s183 = sadd.s32 %s179, %s182
          %s184 = smul.addr %s183, 4
          %s185 = scalar_lea.hbm %s1, %s184
          %s186 = sshll.u32 %s185, 4
          %s187 = int_to_ptr.hbm [resolvable:$true] %s186
          %s188 = sshll.u32 %s177, 4
          %s189 = int_to_ptr.vmem [resolvable:$true] %s188
          %194 = dma.hbm_to_vmem [thread:$0]  %s187, 2048, %s189, %s174, 896, 128, 8
        $region24: #{jvp__.121} parent=19 // pred_fallthru
          _
        // Predicated region
        $region25: #{jvp__.121} parent=19 // pred_check
          %p195 = pneg %p107
        $region26: #{jvp__.121} parent=19 // pred_check_branch
          %197 = sbr.rel (%p195) target = $region28
        $region27: #{jvp__.121} parent=19 // pred_region
          %s198 = smul.u32 2, %s20
          %p199 = scmp.lt.s32.totalorder %s198, 13
          %s200 = scalar_select %p199, %s198, 13
          %s201 = scalar_lea.vmem %s2, %s200
          %s202 = smul.u32 2, %s20
        $region28: #{jvp__.121} parent=19 // pred_fallthru
          _
      $region20: #{jvp__.121} parent=5 // pred_fallthru
        _
      %p203 = scmp.le.s32.totalorder 1, %s12
      %p204 = scmp.lt.s32.totalorder %s12, 8
      %p205 = pnand %p203, %p204
      %p206 = pneg %p205
      // Predicated region
      $region29: #{jvp__.121} parent=5 // pred_check
        _
      $region30: #{jvp__.121} parent=5 // pred_check_branch
        %208 = sbr.rel (%p205) target = $region32
      $region31: #{jvp__.121} parent=5 // pred_region
        %s209 = ssub.s32 %s12, 1
        %s210 = sand.u32 %s74, 1
        %s211 = scalar_lea.sflag [#allocation4], %s210
        %s212 = sand.u32 %s74, 1
        %s213 = smul.addr %s212, 128
        %s214 = scalar_lea.vmem [#allocation3], %s213
        // Predicated region
        $region33: #{jvp__.121} parent=31 // pred_check
          %p215 = pneg %p87
        $region34: #{jvp__.121} parent=31 // pred_check_branch
          %217 = sbr.rel (%p215) target = $region36
        $region35: #{jvp__.121} parent=31 // pred_region
          %219 = dma.done %s211, 2048
        $region36: #{jvp__.121} parent=31 // pred_fallthru
          _
        %p220 = scmp.lt.s32.totalorder %s22, 0
        %s221 = scalar_select %p220, %s22, 0
        %p222 = scmp.lt.s32.totalorder %s24, 0
        %s223 = scalar_select %p222, %s24, 0
        %s224 = sadd.s32 %s223, %s221
        %s225 = smul.addr %s224, 4
        %s226 = scalar_lea.vmem %s0, %s225
        %p227 = pneg %p59
        %p228 = pneg %p56
        %s229 = sand.u32 %s74, 1
        %s230 = scalar_lea.sflag [#allocation4], %s229
        %s231 = sand.u32 %s74, 1
        %s232 = smul.addr %s231, 128
        %s233 = scalar_lea.vmem [#allocation3], %s232
        %p234 = pneg %p87
        %p235 = pneg %p84
        %s236 = smul.u32 2, %s23
        %p237 = scmp.lt.s32.totalorder %s236, 13
        %s238 = scalar_select %p237, %s236, 13
        %s239 = scalar_lea.vmem %s2, %s238
        %p240 = pneg %p113
        %p241 = pneg %p110
        %p242 = pneg %p141
        %p243 = pneg %p138
        %s244 = smul.u32 2, %s23
        %p245 = scmp.lt.s32.totalorder %s22, 0
        %s246 = scalar_select %p245, %s22, 0
        %p247 = scmp.lt.s32.totalorder %s244, 13
        %s248 = scalar_select %p247, %s244, 13
        %s249 = smul.addr %s246, 14
        %s250 = sadd.s32 %s248, %s249
        %s251 = smul.addr %s250, 8
        %s252 = scalar_lea.vmem %s3, %s251
        %p253 = scmp.lt.s32.totalorder %s22, 0
        %s254 = scalar_select %p253, %s22, 0
        %p255 = scmp.lt.s32.totalorder %s24, 0
        %s256 = scalar_select %p255, %s24, 0
        %s257 = sadd.s32 %s256, %s254
        %s258 = smul.addr %s257, 4
        %s259 = scalar_lea.vmem %s0, %s258
        %s260 = smul.u32 16, %s24
        %s261 = smul.u32 2, %s23
        %s262 = smul.u32 2, %s23
        %p263 = scmp.lt.s32.totalorder %s262, 13
        %s264 = scalar_select %p263, %s262, 13
        %s265 = scalar_lea.vmem %s2, %s264
        %s266 = smul.u32 2, %s23
        %s267 = smul.u32 2, %s23
        %p268 = scmp.lt.s32.totalorder %s22, 0
        %s269 = scalar_select %p268, %s22, 0
        %p270 = scmp.lt.s32.totalorder %s267, 13
        %s271 = scalar_select %p270, %s267, 13
        %s272 = smul.addr %s269, 14
        %s273 = sadd.s32 %s271, %s272
        %s274 = smul.addr %s273, 8
        %s275 = scalar_lea.vmem %s3, %s274
        %s276 = smul.u32 2, %s23
        %p277 = scmp.eq.s32.totalorder %s24, 0
        // Predicated region
        $region37: #{jvp__.121} parent=31 // pred_check
          %p278 = pneg %p277
        $region38: #{jvp__.121} parent=31 // pred_check_branch
          %280 = sbr.rel (%p278) target = $region40
        $region39: #{jvp__.121} parent=31 // pred_region
          %281 = vst [vmem:[#allocation2] sm:$0xff] 0.0
          %282 = vst [vmem:[#allocation2 + $0x8] sm:$0xff] 0.0
        $region40: #{jvp__.121} parent=31 // pred_fallthru
          _
        %v283 = vld [vmem:[#allocation2] sm:$0xff]
        %v284 = vld [vmem:[#allocation2 + $0x8] sm:$0xff]
        %v285 = vld [vmem:[%s259] sm:$0xf]
        %v286 = vld [vmem:[%s214] sm:$0xff]
        %v287 = vld [vmem:[%s214 + $0x8] sm:$0xff]
        %v288 = vld [vmem:[%s214 + $0x10] sm:$0xff]
        %v289 = vld [vmem:[%s214 + $0x18] sm:$0xff]
        %v290 = vld [vmem:[%s214 + $0x20] sm:$0xff]
        %v291 = vld [vmem:[%s214 + $0x28] sm:$0xff]
        %v292 = vld [vmem:[%s214 + $0x30] sm:$0xff]
        %v293 = vld [vmem:[%s214 + $0x38] sm:$0xff]
        %v294 = vld [vmem:[%s214 + $0x40] sm:$0xff]
        %v295 = vld [vmem:[%s214 + $0x48] sm:$0xff]
        %v296 = vld [vmem:[%s214 + $0x50] sm:$0xff]
        %v297 = vld [vmem:[%s214 + $0x58] sm:$0xff]
        %v298 = vld [vmem:[%s214 + $0x60] sm:$0xff]
        %v299 = vld [vmem:[%s214 + $0x68] sm:$0xff]
        %v300 = vld [vmem:[%s214 + $0x70] sm:$0xff]
        %v301 = vld [vmem:[%s214 + $0x78] sm:$0xff]
        %v318 = vunpack.c.l.b16 %v286
        %v319 = vunpack.c.h.b16 %v286
        %v320 = vunpack.c.l.b16 %v287
        %v321 = vunpack.c.h.b16 %v287
        %v322 = vunpack.c.l.b16 %v288
        %v323 = vunpack.c.h.b16 %v288
        %v324 = vunpack.c.l.b16 %v289
        %v325 = vunpack.c.h.b16 %v289
        %v326 = vunpack.c.l.b16 %v290
        %v327 = vunpack.c.h.b16 %v290
        %v328 = vunpack.c.l.b16 %v291
        %v329 = vunpack.c.h.b16 %v291
        %v330 = vunpack.c.l.b16 %v292
        %v331 = vunpack.c.h.b16 %v292
        %v332 = vunpack.c.l.b16 %v293
        %v333 = vunpack.c.h.b16 %v293
        %v334 = vunpack.c.l.b16 %v294
        %v335 = vunpack.c.h.b16 %v294
        %v336 = vunpack.c.l.b16 %v295
        %v337 = vunpack.c.h.b16 %v295
        %v338 = vunpack.c.l.b16 %v296
        %v339 = vunpack.c.h.b16 %v296
        %v340 = vunpack.c.l.b16 %v297
        %v341 = vunpack.c.h.b16 %v297
        %v342 = vunpack.c.l.b16 %v298
        %v343 = vunpack.c.h.b16 %v298
        %v344 = vunpack.c.l.b16 %v299
        %v345 = vunpack.c.h.b16 %v299
        %v346 = vunpack.c.l.b16 %v300
        %v347 = vunpack.c.h.b16 %v300
        %v348 = vunpack.c.l.b16 %v301
        %v349 = vunpack.c.h.b16 %v301
        %v350 = vpack.c.b16 %v320, %v318
        %v351 = vpack.c.b16 %v321, %v319
        %v352 = vpack.c.b16 %v324, %v322
        %v353 = vpack.c.b16 %v325, %v323
        %v354 = vpack.c.b16 %v328, %v326
        %v355 = vpack.c.b16 %v329, %v327
        %v356 = vpack.c.b16 %v332, %v330
        %v357 = vpack.c.b16 %v333, %v331
        %v358 = vpack.c.b16 %v336, %v334
        %v359 = vpack.c.b16 %v337, %v335
        %v360 = vpack.c.b16 %v340, %v338
        %v361 = vpack.c.b16 %v341, %v339
        %v362 = vpack.c.b16 %v344, %v342
        %v363 = vpack.c.b16 %v345, %v343
        %v364 = vpack.c.b16 %v348, %v346
        %v365 = vpack.c.b16 %v349, %v347
        %382 = vmatpush.bf16.msra.mxu0 %v364
        %383 = vmatpush.bf16.msra.mxu0 %v362
        %384 = vmatpush.bf16.msra.mxu0 %v360
        %385 = vmatpush.bf16.msra.mxu0 %v358
        %386 = vmatpush.bf16.msra.mxu0 %v356
        %387 = vmatpush.bf16.msra.mxu0 %v354
        %388 = vmatpush.bf16.msra.mxu0 %v352
        %389 = vmatpush.bf16.msra.mxu0 %v350
        %390 = vmatmul.bf16.gmra.mxu0 %v285
        %v391 = vpop.f32.mrf.mxu0
        %v392 = vadd.f32 0.0, %v391
        %v393 = vpop.f32.mrf.mxu0
        %394 = vdwg.mxu0
        %395 = vmatpush.bf16.msra.mxu0 %v365
        %396 = vmatpush.bf16.msra.mxu0 %v363
        %397 = vmatpush.bf16.msra.mxu0 %v361
        %398 = vmatpush.bf16.msra.mxu0 %v359
        %399 = vmatpush.bf16.msra.mxu0 %v357
        %400 = vmatpush.bf16.msra.mxu0 %v355
        %401 = vmatpush.bf16.msra.mxu0 %v353
        %402 = vmatpush.bf16.msra.mxu0 %v351
        %403 = vmatmul.bf16.gmra.mxu0 %v285
        %v404 = vpop.f32.mrf.mxu0
        %v405 = vadd.f32 0.0, %v404
        %v406 = vpop.f32.mrf.mxu0
        %407 = vdwg.mxu0
        %v408 = vadd.f32 %v283, %v392
        %v409 = vadd.f32 %v284, %v405
        %410 = vst [vmem:[#allocation2] sm:$0xff] %v408
        %411 = vst [vmem:[#allocation2 + $0x8] sm:$0xff] %v409
        // Predicated region
        $region41: #{jvp__.121} parent=31 // pred_check
          %p412 = pneg %p277
        $region42: #{jvp__.121} parent=31 // pred_check_branch
          %414 = sbr.rel (%p412) target = $region44
        $region43: #{jvp__.121} parent=31 // pred_region
          %v415 = vld [vmem:[#allocation2] sm:$0xff]
          %v416 = vld [vmem:[#allocation2 + $0x8] sm:$0xff]
          %v417 = vld [vmem:[%s265] sm:$0x3]
          %v419 = vperm.slane %v417, 0
          %v420 = vperm.slane %v417, 1
          %v423 = vadd.f32 %v415, %v419
          %v424 = vadd.f32 %v416, %v420
          %425 = vst [vmem:[%s275] sm:$0xff] %v423
          %426 = vst [vmem:[%s275 + $0x8] sm:$0xff] %v424
        $region44: #{jvp__.121} parent=31 // pred_fallthru
          _
        %s427 = smul.u32 2, %s23
        %p428 = scmp.lt.s32.totalorder %s22, 0
        %s429 = scalar_select %p428, %s22, 0
        %p430 = scmp.lt.s32.totalorder %s427, 13
        %s431 = scalar_select %p430, %s427, 13
        %s432 = smul.addr %s429, 14
        %s433 = sadd.s32 %s431, %s432
        %s434 = smul.addr %s433, 8
        %s435 = scalar_lea.vmem %s3, %s434
        // Predicated region
        $region45: #{jvp__.121} parent=31 // pred_check
          %p436 = pneg %p138
        $region46: #{jvp__.121} parent=31 // pred_check_branch
          %438 = sbr.rel (%p436) target = $region48
        $region47: #{jvp__.121} parent=31 // pred_region
          %s439 = smul.u32 2, %s23
        $region48: #{jvp__.121} parent=31 // pred_fallthru
          _
      $region32: #{jvp__.121} parent=5 // pred_fallthru
        _
      %p440 = scmp.le.s32.totalorder 2, %s12
      // Predicated region
      $region49: #{jvp__.121} parent=5 // pred_check
        %p441 = pneg %p440
      $region50: #{jvp__.121} parent=5 // pred_check_branch
        %443 = sbr.rel (%p441) target = $region52
      $region51: #{jvp__.121} parent=5 // pred_region
        %s444 = ssub.s32 %s12, 2
        // Predicated region
        $region53: #{jvp__.121} parent=51 // pred_check
          %p445 = pneg %p144
        $region54: #{jvp__.121} parent=51 // pred_check_branch
          %447 = sbr.rel (%p445) target = $region56
        $region55: #{jvp__.121} parent=51 // pred_region
          %s448 = smul.u32 2, %s26
          %p449 = scmp.lt.s32.totalorder %s25, 0
          %s450 = scalar_select %p449, %s25, 0
          %p451 = scmp.lt.s32.totalorder %s448, 13
          %s452 = scalar_select %p451, %s448, 13
          %s453 = smul.addr %s450, 14
          %s454 = sadd.s32 %s452, %s453
          %s455 = smul.addr %s454, 8
          %s456 = scalar_lea.vmem %s3, %s455
        $region56: #{jvp__.121} parent=51 // pred_fallthru
          _
      $region52: #{jvp__.121} parent=5 // pred_fallthru
        _
    $region6: #{jvp__.121} parent=1 // loop_footer
      %s16 = sadd.s32 1, %s12
    $region7: #{jvp__.121} parent=1 // loop_footer_branch
      %11 = sbr.rel target = $region3
    $region8: #{jvp__.121} parent=1 // loop_exit
      _
    %457 = vsyncpa [#allocation4], 1
    %s458 = scalar_lea.sflag [#allocation4], 1
    %459 = vsyncpa %s458, 1

// kernel: debt_forward.3
$region0: #{debt_forward.3}
  #allocation0 [shape = 'u32[]', space=smem, size = 0x4, offset = 0x4, fixed_abs, tag = 'smem constant byte address 0x4 - core index']
  #allocation1 [shape = 'u32[72,128]{1,0:T(1,128)}', space=vmem, size = 0x9000, scoped, tag = 'internal scratch']
  #allocation2 [shape = 'f32[32,128]{1,0:T(8,128)}', space=vmem, size = 0x4000, scoped, tag = 'scratch operand']
  %s0 = inlined_call_operand.vmem [shape: bf16[32,128], index: 0, kind: input, shape index: {}]
  %s1 = inlined_call_operand.vmem [shape: bf16[128,128], index: 1, kind: input, shape index: {}]
  %s2 = inlined_call_operand.vmem [shape: f32[1,128], index: 2, kind: input, shape index: {}]
  %s3 = inlined_call_operand.vmem [shape: f32[32,128], index: 3, kind: output, shape index: {}]
  %s4 = sld [smem:[#allocation0]]
  $region30: #{debt_forward.3} parent=0
    _
  %s6 = ssub.s32 1, %s4
  %s7 = scalar_select 0, %s6, %s4
  // Predicated region
  $region2: #{debt_forward.3} parent=0 // pred_check
    _
  $region3: #{debt_forward.3} parent=0 // pred_check_branch
    %9 = sbr.rel (0) target = $region5
  $region4: #{debt_forward.3} parent=0 // pred_region
    _
  $region5: #{debt_forward.3} parent=0 // pred_fallthru
    _
  // Predicated region
  $region6: #{debt_forward.3} parent=0 // pred_check
    _
  $region7: #{debt_forward.3} parent=0 // pred_check_branch
    %11 = sbr.rel (0) target = $region9
  $region8: #{debt_forward.3} parent=0 // pred_region
    _
  $region9: #{debt_forward.3} parent=0 // pred_fallthru
    _
  // Predicated region
  $region10: #{debt_forward.3} parent=0 // pred_check
    _
  $region11: #{debt_forward.3} parent=0 // pred_check_branch
    %13 = sbr.rel (0) target = $region13
  $region12: #{debt_forward.3} parent=0 // pred_region
    _
  $region13: #{debt_forward.3} parent=0 // pred_fallthru
    _
  %p14 = scmp.eq.s32.totalorder 0, 0
  // Predicated region
  $region14: #{debt_forward.3} parent=0 // pred_check
    %p15 = pneg %p14
  $region15: #{debt_forward.3} parent=0 // pred_check_branch
    %17 = sbr.rel (%p15) target = $region17
  $region16: #{debt_forward.3} parent=0 // pred_region
    %18 = vst [vmem:[#allocation2] sm:$0xff] 0.0
    %19 = vst [vmem:[#allocation2 + $0x8] sm:$0xff] 0.0
    %20 = vst [vmem:[#allocation2 + $0x10] sm:$0xff] 0.0
    %21 = vst [vmem:[#allocation2 + $0x18] sm:$0xff] 0.0
  $region17: #{debt_forward.3} parent=0 // pred_fallthru
    _
  %v22 = vld [vmem:[#allocation2] sm:$0xff]
  %v23 = vld [vmem:[#allocation2 + $0x8] sm:$0xff]
  %v24 = vld [vmem:[#allocation2 + $0x10] sm:$0xff]
  %v25 = vld [vmem:[#allocation2 + $0x18] sm:$0xff]
  %v26 = vld [vmem:[%s0] sm:$0xf]
  %v27 = vld [vmem:[%s0 + $0x4] sm:$0xf]
  %v28 = vld [vmem:[%s0 + $0x8] sm:$0xf]
  %v29 = vld [vmem:[%s0 + $0xc] sm:$0xf]
  %v30 = vld [vmem:[%s1] sm:$0xf]
  %v31 = vld [vmem:[%s1 + $0x4] sm:$0xf]
  %v32 = vld [vmem:[%s1 + $0x8] sm:$0xf]
  %v33 = vld [vmem:[%s1 + $0xc] sm:$0xf]
  %v34 = vld [vmem:[%s1 + $0x10] sm:$0xf]
  %v35 = vld [vmem:[%s1 + $0x14] sm:$0xf]
  %v36 = vld [vmem:[%s1 + $0x18] sm:$0xf]
  %v37 = vld [vmem:[%s1 + $0x1c] sm:$0xf]
  %v38 = vld [vmem:[%s1 + $0x20] sm:$0xf]
  %v39 = vld [vmem:[%s1 + $0x24] sm:$0xf]
  %v40 = vld [vmem:[%s1 + $0x28] sm:$0xf]
  %v41 = vld [vmem:[%s1 + $0x2c] sm:$0xf]
  %v42 = vld [vmem:[%s1 + $0x30] sm:$0xf]
  %v43 = vld [vmem:[%s1 + $0x34] sm:$0xf]
  %v44 = vld [vmem:[%s1 + $0x38] sm:$0xf]
  %v45 = vld [vmem:[%s1 + $0x3c] sm:$0xf]
  %v50 = vunpack.c.l.b16 %v26
  %v51 = vunpack.c.l.b16 %v27
  %v52 = vunpack.c.l.b16 %v28
  %v53 = vunpack.c.l.b16 %v29
  %v54 = vpack.c.b16 %v51, %v50
  %v55 = vpack.c.b16 %v53, %v52
  %v74 = vunpack.c.l.b16 %v30
  %v75 = vunpack.c.l.b16 %v31
  %v76 = vunpack.c.l.b16 %v32
  %v77 = vunpack.c.l.b16 %v33
  %v78 = vunpack.c.l.b16 %v34
  %v79 = vunpack.c.l.b16 %v35
  %v80 = vunpack.c.l.b16 %v36
  %v81 = vunpack.c.l.b16 %v37
  %v82 = vunpack.c.l.b16 %v38
  %v83 = vunpack.c.l.b16 %v39
  %v84 = vunpack.c.l.b16 %v40
  %v85 = vunpack.c.l.b16 %v41
  %v86 = vunpack.c.l.b16 %v42
  %v87 = vunpack.c.l.b16 %v43
  %v88 = vunpack.c.l.b16 %v44
  %v89 = vunpack.c.l.b16 %v45
  %v90 = vpack.c.b16 %v75, %v74
  %v91 = vpack.c.b16 %v77, %v76
  %v92 = vpack.c.b16 %v79, %v78
  %v93 = vpack.c.b16 %v81, %v80
  %v94 = vpack.c.b16 %v83, %v82
  %v95 = vpack.c.b16 %v85, %v84
  %v96 = vpack.c.b16 %v87, %v86
  %v97 = vpack.c.b16 %v89, %v88
  %106 = vmatpush.bf16.msra.mxu0 %v97
  %107 = vmatpush.bf16.msra.mxu0 %v96
  %108 = vmatpush.bf16.msra.mxu0 %v95
  %109 = vmatpush.bf16.msra.mxu0 %v94
  %110 = vmatpush.bf16.msra.mxu0 %v93
  %111 = vmatpush.bf16.msra.mxu0 %v92
  %112 = vmatpush.bf16.msra.mxu0 %v91
  %113 = vmatpush.bf16.msra.mxu0 %v90
  %114 = vmatmul.bf16.gmra.mxu0 %v54
  %v115 = vpop.f32.mrf.mxu0
  %v116 = vadd.f32 0.0, %v115
  %v117 = vpop.f32.mrf.mxu0
  %v118 = vadd.f32 0.0, %v117
  %119 = vmatmul.bf16.gmra.mxu0 %v55
  %v120 = vpop.f32.mrf.mxu0
  %v121 = vadd.f32 0.0, %v120
  %v122 = vpop.f32.mrf.mxu0
  %v123 = vadd.f32 0.0, %v122
  %124 = vdwg.mxu0
  %v125 = vadd.f32 %v22, %v116
  %v126 = vadd.f32 %v23, %v118
  %v127 = vadd.f32 %v24, %v121
  %v128 = vadd.f32 %v25, %v123
  %129 = vst [vmem:[#allocation2] sm:$0xff] %v125
  %130 = vst [vmem:[#allocation2 + $0x8] sm:$0xff] %v126
  %131 = vst [vmem:[#allocation2 + $0x10] sm:$0xff] %v127
  %132 = vst [vmem:[#allocation2 + $0x18] sm:$0xff] %v128
  // Predicated region
  $region18: #{debt_forward.3} parent=0 // pred_check
    %p133 = pneg %p14
  $region19: #{debt_forward.3} parent=0 // pred_check_branch
    %135 = sbr.rel (%p133) target = $region21
  $region20: #{debt_forward.3} parent=0 // pred_region
    %v136 = vld [vmem:[#allocation2] sm:$0xff]
    %v137 = vld [vmem:[#allocation2 + $0x8] sm:$0xff]
    %v138 = vld [vmem:[#allocation2 + $0x10] sm:$0xff]
    %v139 = vld [vmem:[#allocation2 + $0x18] sm:$0xff]
    %v140 = vld [vmem:[%s2] sm:$0x1]
    %v142 = vperm.slane %v140, 0
    %v144 = vadd.f32 %v136, %v142
    %v145 = vadd.f32 %v137, %v142
    %v146 = vadd.f32 %v138, %v142
    %v147 = vadd.f32 %v139, %v142
    %148 = vst [vmem:[%s3] sm:$0xff] %v144
    %149 = vst [vmem:[%s3 + $0x8] sm:$0xff] %v145
    %150 = vst [vmem:[%s3 + $0x10] sm:$0xff] %v146
    %151 = vst [vmem:[%s3 + $0x18] sm:$0xff] %v147
  $region21: #{debt_forward.3} parent=0 // pred_fallthru
    _
  // Predicated region
  $region22: #{debt_forward.3} parent=0 // pred_check
    _
  $region23: #{debt_forward.3} parent=0 // pred_check_branch
    %153 = sbr.rel (0) target = $region25
  $region24: #{debt_forward.3} parent=0 // pred_region
    _
  $region25: #{debt_forward.3} parent=0 // pred_fallthru
    _
  // Predicated region
  $region26: #{debt_forward.3} parent=0 // pred_check
    _
  $region27: #{debt_forward.3} parent=0 // pred_check_branch
    %155 = sbr.rel (0) target = $region29
  $region28: #{debt_forward.3} parent=0 // pred_region
    _
  $region29: #{debt_forward.3} parent=0 // pred_fallthru
    _

// kernel: jvp__.122
$region0: #{jvp__.122}
  #allocation0 [shape = 'u32[]', space=smem, size = 0x4, offset = 0x4, fixed_abs, tag = 'smem constant byte address 0x4 - core index']
  #allocation1 [shape = 'u32[72,128]{1,0:T(1,128)}', space=vmem, size = 0x9000, scoped, tag = 'internal scratch']
  #allocation2 [shape = 'f32[72,128]{1,0:T(8,128)}', space=vmem, size = 0x9000, scoped, tag = 'scratch operand']
  %s0 = inlined_call_operand.vmem [shape: bf16[72,128], index: 0, kind: input, shape index: {}]
  %s1 = inlined_call_operand.vmem [shape: bf16[128,384], index: 1, kind: input, shape index: {}]
  %s2 = inlined_call_operand.vmem [shape: f32[1,384], index: 2, kind: input, shape index: {}]
  %s3 = inlined_call_operand.vmem [shape: bf16[72,384], index: 3, kind: output, shape index: {}]
  %s4 = sld [smem:[#allocation0]]
  $region131: #{jvp__.122} parent=0
    _
  %s6 = ssub.s32 1, %s4
  %s7 = scalar_select 0, %s6, %s4
  $region1: #{jvp__.122} parent=0
    #allocation3 [shape = 'u8[65536]{0}', space=vmem, size = 0x10000, scoped, tag = 'input window, operand 1']
    #allocation4 [shape = 'u8[36864]{0}', space=vmem, size = 0x9000, scoped, tag = 'output window, operand 0']
    loop: start=0, step=1, limit=5
    $region2: #{jvp__.122} parent=1 // loop_pre_header
      _
    $region3: #{jvp__.122} parent=1 // loop_header
      %s9 = sphi 0, %s13
      %p10 = scmp.ge.s32.totalorder %s9, 5
      %s16 = sphi 0, %s35
      %s17 = sphi 0, %s31
      %s18 = sphi 0, %s27
      %s19 = sphi 0, %s16
      %s20 = sphi 0, %s17
      %s21 = sphi 0, %s18
      %s22 = sphi 0, %s19
      %s23 = sphi 0, %s20
      %s24 = sphi 0, %s21
      %s40 = sphi 0, %s42
      %s43 = sphi 0, %s40
      %s44 = sphi 0, %s43
      %s60 = sphi 0, %s44
      %s68 = sphi 0, %s70
      %s71 = sphi 0, %s68
      %s72 = sphi 0, %s71
      %s88 = sphi 0, %s72
      %s94 = sphi 0, %s96
      %s97 = sphi 0, %s94
      %s98 = sphi 0, %s97
      %s114 = sphi 0, %s98
      %s122 = sphi 0, %s124
      %s125 = sphi 0, %s122
      %s126 = sphi 0, %s125
      %s142 = sphi 0, %s126
    $region4: #{jvp__.122} parent=1 // loop_header_branch
      %12 = sbr.rel (%p10) target = $region8
    $region5: #{jvp__.122} parent=1 // loop_body
      %s14 = ssub.s32 %s9, 1
      %s15 = ssub.s32 %s9, 2
      %s25 = sadd.s32 1, %s18
      %p26 = scmp.ge.s32.totalorder %s25, 1
      %s27 = scalar_select %p26, 0, %s25
      %s28 = sadd.s32 1, %s17
      %s29 = scalar_select %p26, %s28, %s17
      %p30 = scmp.ge.s32.totalorder %s29, 3
      %s31 = scalar_select %p30, 0, %s29
      %s32 = sadd.s32 1, %s16
      %s33 = scalar_select %p30, %s32, %s16
      %p34 = scmp.ge.s32.totalorder %s33, 1
      %s35 = scalar_select %p34, 0, %s33
      %s36 = ssub.s32 %s16, %s35
      %s37 = ssub.s32 %s18, %s27
      %s38 = sor.u32 %s36, %s37
      %p39 = scmp.eq.s32.totalorder %s38, 0
      %s41 = sadd.s32 %s40, 1
      %s42 = scalar_select %p39, %s40, %s41
      %p45 = pneg %p39
      %p46 = scmp.eq.s32.totalorder %s9, 2
      %p47 = por %p45, %p46
      %p48 = scmp.ne.s32.totalorder %s40, %s43
      %p49 = scmp.eq.s32.totalorder %s9, 0
      %p50 = por %p48, %p49
      %p51 = scmp.ne.s32.totalorder %s40, %s43
      %p52 = scmp.eq.s32.totalorder %s14, 2
      %p53 = por %p51, %p52
      %p54 = scmp.ne.s32.totalorder %s43, %s44
      %p55 = scmp.eq.s32.totalorder %s14, 0
      %p56 = por %p54, %p55
      %p57 = scmp.ne.s32.totalorder %s43, %s44
      %p58 = scmp.eq.s32.totalorder %s15, 2
      %p59 = por %p57, %p58
      %p61 = scmp.ne.s32.totalorder %s44, %s60
      %p62 = scmp.eq.s32.totalorder %s15, 0
      %p63 = por %p61, %p62
      %s64 = ssub.s32 %s18, %s27
      %s65 = ssub.s32 %s17, %s31
      %s66 = sor.u32 %s64, %s65
      %p67 = scmp.eq.s32.totalorder %s66, 0
      %s69 = sadd.s32 %s68, 1
      %s70 = scalar_select %p67, %s68, %s69
      %p73 = pneg %p67
      %p74 = scmp.eq.s32.totalorder %s9, 2
      %p75 = por %p73, %p74
      %p76 = scmp.ne.s32.totalorder %s68, %s71
      %p77 = scmp.eq.s32.totalorder %s9, 0
      %p78 = por %p76, %p77
      %p79 = scmp.ne.s32.totalorder %s68, %s71
      %p80 = scmp.eq.s32.totalorder %s14, 2
      %p81 = por %p79, %p80
      %p82 = scmp.ne.s32.totalorder %s71, %s72
      %p83 = scmp.eq.s32.totalorder %s14, 0
      %p84 = por %p82, %p83
      %p85 = scmp.ne.s32.totalorder %s71, %s72
      %p86 = scmp.eq.s32.totalorder %s15, 2
      %p87 = por %p85, %p86
      %p89 = scmp.ne.s32.totalorder %s72, %s88
      %p90 = scmp.eq.s32.totalorder %s15, 0
      %p91 = por %p89, %p90
      %s92 = ssub.s32 %s17, %s31
      %p93 = scmp.eq.s32.totalorder %s92, 0
      %s95 = sadd.s32 %s94, 1
      %s96 = scalar_select %p93, %s94, %s95
      %p99 = pneg %p93
      %p100 = scmp.eq.s32.totalorder %s9, 2
      %p101 = por %p99, %p100
      %p102 = scmp.ne.s32.totalorder %s94, %s97
      %p103 = scmp.eq.s32.totalorder %s9, 0
      %p104 = por %p102, %p103
      %p105 = scmp.ne.s32.totalorder %s94, %s97
      %p106 = scmp.eq.s32.totalorder %s14, 2
      %p107 = por %p105, %p106
      %p108 = scmp.ne.s32.totalorder %s97, %s98
      %p109 = scmp.eq.s32.totalorder %s14, 0
      %p110 = por %p108, %p109
      %p111 = scmp.ne.s32.totalorder %s97, %s98
      %p112 = scmp.eq.s32.totalorder %s15, 2
      %p113 = por %p111, %p112
      %p115 = scmp.ne.s32.totalorder %s98, %s114
      %p116 = scmp.eq.s32.totalorder %s15, 0
      %p117 = por %p115, %p116
      %s118 = ssub.s32 %s16, %s35
      %s119 = ssub.s32 %s17, %s31
      %s120 = sor.u32 %s118, %s119
      %p121 = scmp.eq.s32.totalorder %s120, 0
      %s123 = sadd.s32 %s122, 1
      %s124 = scalar_select %p121, %s122, %s123
      %p127 = pneg %p121
      %p128 = scmp.eq.s32.totalorder %s9, 2
      %p129 = por %p127, %p128
      %p130 = scmp.ne.s32.totalorder %s122, %s125
      %p131 = scmp.eq.s32.totalorder %s9, 0
      %p132 = por %p130, %p131
      %p133 = scmp.ne.s32.totalorder %s122, %s125
      %p134 = scmp.eq.s32.totalorder %s14, 2
      %p135 = por %p133, %p134
      %p136 = scmp.ne.s32.totalorder %s125, %s126
      %p137 = scmp.eq.s32.totalorder %s14, 0
      %p138 = por %p136, %p137
      %p139 = scmp.ne.s32.totalorder %s125, %s126
      %p140 = scmp.eq.s32.totalorder %s15, 2
      %p141 = por %p139, %p140
      %p143 = scmp.ne.s32.totalorder %s126, %s142
      %p144 = scmp.eq.s32.totalorder %s15, 0
      %p145 = por %p143, %p144
      %p146 = scmp.le.s32.totalorder 1, %s9
      %p147 = scmp.lt.s32.totalorder %s9, 4
      %p148 = pnand %p146, %p147
      %p149 = pneg %p148
      // Predicated region
      $region9: #{jvp__.122} parent=5 // pred_check
        _
      $region10: #{jvp__.122} parent=5 // pred_check_branch
        %151 = sbr.rel (%p148) target = $region12
      $region11: #{jvp__.122} parent=5 // pred_region
        %s152 = ssub.s32 %s9, 1
        // Predicated region
        $region13: #{jvp__.122} parent=11 // pred_check
          %p153 = pneg %p56
        $region14: #{jvp__.122} parent=11 // pred_check_branch
          %155 = sbr.rel (%p153) target = $region16
        $region15: #{jvp__.122} parent=11 // pred_region
          %s156 = smul.u32 9, %s19
          %p157 = scmp.lt.s32.totalorder %s156, 8
          %s158 = scalar_select %p157, %s156, 8
          %p159 = scmp.lt.s32.totalorder %s21, 0
          %s160 = scalar_select %p159, %s21, 0
          %s161 = sadd.s32 %s160, %s158
          %s162 = smul.addr %s161, 4
          %s163 = scalar_lea.vmem %s0, %s162
          %s164 = smul.u32 9, %s19
        $region16: #{jvp__.122} parent=11 // pred_fallthru
          _
      $region12: #{jvp__.122} parent=5 // pred_fallthru
        _
      %p165 = scmp.lt.s32.totalorder %s9, 3
      // Predicated region
      $region17: #{jvp__.122} parent=5 // pred_check
        %p166 = pneg %p165
      $region18: #{jvp__.122} parent=5 // pred_check_branch
        %168 = sbr.rel (%p166) target = $region20
      $region19: #{jvp__.122} parent=5 // pred_region
        // Predicated region
        $region21: #{jvp__.122} parent=19 // pred_check
          %p169 = pneg %p78
        $region22: #{jvp__.122} parent=19 // pred_check_branch
          %171 = sbr.rel (%p169) target = $region24
        $region23: #{jvp__.122} parent=19 // pred_region
          %s172 = sand.u32 %s68, 1
          %s173 = sand.u32 %s68, 1
          %s174 = smul.addr %s173, 64
          %s175 = scalar_lea.vmem [#allocation3], %s174
          %s176 = smul.u32 16, %s18
          %s177 = smul.addr %s176, 3
          %s178 = sadd.s32 %s17, %s177
          %s179 = smul.addr %s178, 4
          %s180 = scalar_lea.vmem %s1, %s179
          // Predicated region
          $region25: #{jvp__.122} parent=23 // pred_check
            _
          $region26: #{jvp__.122} parent=23 // pred_check_branch
            %182 = sbr.rel (0) target = $region28
          $region27: #{jvp__.122} parent=23 // pred_region
            // Predicated region
            $region29: #{jvp__.122} parent=27 // pred_check
              _
            $region30: #{jvp__.122} parent=27 // pred_check_branch
              %184 = sbr.rel target = $region32
            $region31: #{jvp__.122} parent=27 // pred_region
              // Predicated region
              $region44: #{jvp__.122} parent=31 // pred_check
                _
              $region45: #{jvp__.122} parent=31 // pred_check_branch
                %230 = sbr.rel (0) target = $region47
              $region46: #{jvp__.122} parent=31 // pred_region
                loop: start=0, step=1, limit=1
                $region48: #{jvp__.122} parent=46 // loop_pre_header
                  _
                $region49: #{jvp__.122} parent=46 // loop_header
                  %s232 = sphi 0, %s236
                  %p233 = scmp.ge.s32.totalorder %s232, 1
                  %s237 = sphi %s180, %s180
                  %s238 = sphi %s175, %s175
                $region50: #{jvp__.122} parent=46 // loop_header_branch
                  %235 = sbr.rel (%p233) target = $region54
                $region51: #{jvp__.122} parent=46 // loop_body
                  _
                $region52: #{jvp__.122} parent=46 // loop_footer
                  %s236 = sadd.s32 1, %s232
                $region53: #{jvp__.122} parent=46 // loop_footer_branch
                  %231 = sbr.rel target = $region49
                $region54: #{jvp__.122} parent=46 // loop_exit
                  _
                %s240 = ssub.s32 16, 1
                loop: start=0, step=1, limit=1
                $region55: #{jvp__.122} parent=46 // loop_pre_header
                  _
                $region56: #{jvp__.122} parent=46 // loop_header
                  %s242 = sphi 0, %s246
                  %p243 = scmp.ge.s32.totalorder %s242, 1
                  %s247 = sphi %s180, %s180
                  %s248 = sphi %s175, %s175
                $region57: #{jvp__.122} parent=46 // loop_header_branch
                  %245 = sbr.rel (%p243) target = $region61
                $region58: #{jvp__.122} parent=46 // loop_body
                  %v249 = vld [vmem:[%s247] sm:%s240]
                  %250 = vst [vmem:[%s248] sm:%s240] %v249
                  %v251 = vld [vmem:[%s247 + $0xc] sm:%s240]
                  %252 = vst [vmem:[%s248 + $0x4] sm:%s240] %v251
                  %v253 = vld [vmem:[%s247 + $0x18] sm:%s240]
                  %254 = vst [vmem:[%s248 + $0x8] sm:%s240] %v253
                  %v255 = vld [vmem:[%s247 + $0x24] sm:%s240]
                  %256 = vst [vmem:[%s248 + $0xc] sm:%s240] %v255
                  %v257 = vld [vmem:[%s247 + $0x30] sm:%s240]
                  %258 = vst [vmem:[%s248 + $0x10] sm:%s240] %v257
                  %v259 = vld [vmem:[%s247 + $0x3c] sm:%s240]
                  %260 = vst [vmem:[%s248 + $0x14] sm:%s240] %v259
                  %v261 = vld [vmem:[%s247 + $0x48] sm:%s240]
                  %262 = vst [vmem:[%s248 + $0x18] sm:%s240] %v261
                  %v263 = vld [vmem:[%s247 + $0x54] sm:%s240]
                  %264 = vst [vmem:[%s248 + $0x1c] sm:%s240] %v263
                  %v265 = vld [vmem:[%s247 + $0x60] sm:%s240]
                  %266 = vst [vmem:[%s248 + $0x20] sm:%s240] %v265
                  %v267 = vld [vmem:[%s247 + $0x6c] sm:%s240]
                  %268 = vst [vmem:[%s248 + $0x24] sm:%s240] %v267
                  %v269 = vld [vmem:[%s247 + $0x78] sm:%s240]
                  %270 = vst [vmem:[%s248 + $0x28] sm:%s240] %v269
                  %v271 = vld [vmem:[%s247 + $0x84] sm:%s240]
                  %272 = vst [vmem:[%s248 + $0x2c] sm:%s240] %v271
                  %v273 = vld [vmem:[%s247 + $0x90] sm:%s240]
                  %274 = vst [vmem:[%s248 + $0x30] sm:%s240] %v273
                  %v275 = vld [vmem:[%s247 + $0x9c] sm:%s240]
                  %276 = vst [vmem:[%s248 + $0x34] sm:%s240] %v275
                  %v277 = vld [vmem:[%s247 + $0xa8] sm:%s240]
                  %278 = vst [vmem:[%s248 + $0x38] sm:%s240] %v277
                  %v279 = vld [vmem:[%s247 + $0xb4] sm:%s240]
                  %280 = vst [vmem:[%s248 + $0x3c] sm:%s240] %v279
                $region59: #{jvp__.122} parent=46 // loop_footer
                  %s246 = sadd.s32 1, %s242
                $region60: #{jvp__.122} parent=46 // loop_footer_branch
                  %241 = sbr.rel target = $region56
                $region61: #{jvp__.122} parent=46 // loop_exit
                  _
              $region47: #{jvp__.122} parent=31 // pred_fallthru
                _
            $region32: #{jvp__.122} parent=27 // pred_fallthru
              _
            // Predicated region
            $region33: #{jvp__.122} parent=27 // pred_check
              _
            $region34: #{jvp__.122} parent=27 // pred_check_branch
              %186 = sbr.rel (0) target = $region36
            $region35: #{jvp__.122} parent=27 // pred_region
              %s188 = ssub.s32 16, 1
              loop: start=0, step=1, limit=1
              $region37: #{jvp__.122} parent=35 // loop_pre_header
                _
              $region38: #{jvp__.122} parent=35 // loop_header
                %s190 = sphi 0, %s194
                %p191 = scmp.ge.s32.totalorder %s190, 1
                %s195 = sphi %s180, %s180
                %s196 = sphi %s175, %s175
              $region39: #{jvp__.122} parent=35 // loop_header_branch
                %193 = sbr.rel (%p191) target = $region43
              $region40: #{jvp__.122} parent=35 // loop_body
                %v197 = vld [vmem:[%s195] sm:%s188]
                %198 = vst [vmem:[%s196] sm:%s188] %v197
                %v199 = vld [vmem:[%s195 + $0xc] sm:%s188]
                %200 = vst [vmem:[%s196 + $0x4] sm:%s188] %v199
                %v201 = vld [vmem:[%s195 + $0x18] sm:%s188]
                %202 = vst [vmem:[%s196 + $0x8] sm:%s188] %v201
                %v203 = vld [vmem:[%s195 + $0x24] sm:%s188]
                %204 = vst [vmem:[%s196 + $0xc] sm:%s188] %v203
                %v205 = vld [vmem:[%s195 + $0x30] sm:%s188]
                %206 = vst [vmem:[%s196 + $0x10] sm:%s188] %v205
                %v207 = vld [vmem:[%s195 + $0x3c] sm:%s188]
                %208 = vst [vmem:[%s196 + $0x14] sm:%s188] %v207
                %v209 = vld [vmem:[%s195 + $0x48] sm:%s188]
                %210 = vst [vmem:[%s196 + $0x18] sm:%s188] %v209
                %v211 = vld [vmem:[%s195 + $0x54] sm:%s188]
                %212 = vst [vmem:[%s196 + $0x1c] sm:%s188] %v211
                %v213 = vld [vmem:[%s195 + $0x60] sm:%s188]
                %214 = vst [vmem:[%s196 + $0x20] sm:%s188] %v213
                %v215 = vld [vmem:[%s195 + $0x6c] sm:%s188]
                %216 = vst [vmem:[%s196 + $0x24] sm:%s188] %v215
                %v217 = vld [vmem:[%s195 + $0x78] sm:%s188]
                %218 = vst [vmem:[%s196 + $0x28] sm:%s188] %v217
                %v219 = vld [vmem:[%s195 + $0x84] sm:%s188]
                %220 = vst [vmem:[%s196 + $0x2c] sm:%s188] %v219
                %v221 = vld [vmem:[%s195 + $0x90] sm:%s188]
                %222 = vst [vmem:[%s196 + $0x30] sm:%s188] %v221
                %v223 = vld [vmem:[%s195 + $0x9c] sm:%s188]
                %224 = vst [vmem:[%s196 + $0x34] sm:%s188] %v223
                %v225 = vld [vmem:[%s195 + $0xa8] sm:%s188]
                %226 = vst [vmem:[%s196 + $0x38] sm:%s188] %v225
                %v227 = vld [vmem:[%s195 + $0xb4] sm:%s188]
                %228 = vst [vmem:[%s196 + $0x3c] sm:%s188] %v227
              $region41: #{jvp__.122} parent=35 // loop_footer
                %s194 = sadd.s32 1, %s190
              $region42: #{jvp__.122} parent=35 // loop_footer_branch
                %189 = sbr.rel target = $region38
              $region43: #{jvp__.122} parent=35 // loop_exit
                _
            $region36: #{jvp__.122} parent=27 // pred_fallthru
              _
          $region28: #{jvp__.122} parent=23 // pred_fallthru
            _
          %281 = vnop
        $region24: #{jvp__.122} parent=19 // pred_fallthru
          _
        // Predicated region
        $region62: #{jvp__.122} parent=19 // pred_check
          %p282 = pneg %p104
        $region63: #{jvp__.122} parent=19 // pred_check_branch
          %284 = sbr.rel (%p282) target = $region65
        $region64: #{jvp__.122} parent=19 // pred_region
          %p285 = scmp.lt.s32.totalorder %s17, 2
          %s286 = scalar_select %p285, %s17, 2
          %s287 = scalar_lea.vmem %s2, %s286
        $region65: #{jvp__.122} parent=19 // pred_fallthru
          _
      $region20: #{jvp__.122} parent=5 // pred_fallthru
        _
      %p288 = scmp.le.s32.totalorder 1, %s9
      %p289 = scmp.lt.s32.totalorder %s9, 4
      %p290 = pnand %p288, %p289
      %p291 = pneg %p290
      // Predicated region
      $region66: #{jvp__.122} parent=5 // pred_check
        _
      $region67: #{jvp__.122} parent=5 // pred_check_branch
        %293 = sbr.rel (%p290) target = $region69
      $region68: #{jvp__.122} parent=5 // pred_region
        %s294 = ssub.s32 %s9, 1
        %s295 = sand.u32 %s71, 1
        %s296 = sand.u32 %s71, 1
        %s297 = smul.addr %s296, 64
        %s298 = scalar_lea.vmem [#allocation3], %s297
        // Predicated region
        $region70: #{jvp__.122} parent=68 // pred_check
          %p299 = pneg %p84
        $region71: #{jvp__.122} parent=68 // pred_check_branch
          %301 = sbr.rel (%p299) target = $region73
        $region72: #{jvp__.122} parent=68 // pred_region
          _
        $region73: #{jvp__.122} parent=68 // pred_fallthru
          _
        %s302 = smul.u32 9, %s19
        %p303 = scmp.lt.s32.totalorder %s302, 8
        %s304 = scalar_select %p303, %s302, 8
        %p305 = scmp.lt.s32.totalorder %s21, 0
        %s306 = scalar_select %p305, %s21, 0
        %s307 = sadd.s32 %s306, %s304
        %s308 = smul.addr %s307, 4
        %s309 = scalar_lea.vmem %s0, %s308
        %p310 = pneg %p56
        %p311 = pneg %p53
        %s312 = sand.u32 %s71, 1
        %s313 = sand.u32 %s71, 1
        %s314 = smul.addr %s313, 64
        %s315 = scalar_lea.vmem [#allocation3], %s314
        %p316 = pneg %p84
        %p317 = pneg %p81
        %p318 = scmp.lt.s32.totalorder %s20, 2
        %s319 = scalar_select %p318, %s20, 2
        %s320 = scalar_lea.vmem %s2, %s319
        %p321 = pneg %p110
        %p322 = pneg %p107
        %p323 = pneg %p138
        %p324 = pneg %p135
        %s325 = sand.u32 %s125, 1
        %s326 = sand.u32 %s125, 1
        %s327 = smul.addr %s326, 36
        %s328 = scalar_lea.vmem [#allocation4], %s327
        %s329 = smul.u32 9, %s19
        %p330 = scmp.lt.s32.totalorder %s329, 8
        %s331 = scalar_select %p330, %s329, 8
        %p332 = scmp.lt.s32.totalorder %s21, 0
        %s333 = scalar_select %p332, %s21, 0
        %s334 = sadd.s32 %s333, %s331
        %s335 = smul.addr %s334, 4
        %s336 = scalar_lea.vmem %s0, %s335
        %s337 = smul.u32 9, %s19
        %s338 = smul.u32 16, %s21
        %p339 = scmp.lt.s32.totalorder %s20, 2
        %s340 = scalar_select %p339, %s20, 2
        %s341 = scalar_lea.vmem %s2, %s340
        %s342 = smul.u32 9, %s19
        %p343 = scmp.eq.s32.totalorder %s21, 0
        // Predicated region
        $region74: #{jvp__.122} parent=68 // pred_check
          %p344 = pneg %p343
        $region75: #{jvp__.122} parent=68 // pred_check_branch
          %346 = sbr.rel (%p344) target = $region77
        $region76: #{jvp__.122} parent=68 // pred_region
          %347 = vst [vmem:[#allocation2] sm:$0xff] 0.0
          %348 = vst [vmem:[#allocation2 + $0x8] sm:$0xff] 0.0
          %349 = vst [vmem:[#allocation2 + $0x10] sm:$0xff] 0.0
          %350 = vst [vmem:[#allocation2 + $0x18] sm:$0xff] 0.0
          %351 = vst [vmem:[#allocation2 + $0x20] sm:$0xff] 0.0
          %352 = vst [vmem:[#allocation2 + $0x28] sm:$0xff] 0.0
          %353 = vst [vmem:[#allocation2 + $0x30] sm:$0xff] 0.0
          %354 = vst [vmem:[#allocation2 + $0x38] sm:$0xff] 0.0
          %355 = vst [vmem:[#allocation2 + $0x40] sm:$0xff] 0.0
        $region77: #{jvp__.122} parent=68 // pred_fallthru
          _
        %v356 = vld [vmem:[#allocation2] sm:$0xff]
        %v357 = vld [vmem:[#allocation2 + $0x8] sm:$0xff]
        %v358 = vld [vmem:[#allocation2 + $0x10] sm:$0xff]
        %v359 = vld [vmem:[#allocation2 + $0x18] sm:$0xff]
        %v360 = vld [vmem:[#allocation2 + $0x20] sm:$0xff]
        %v361 = vld [vmem:[#allocation2 + $0x28] sm:$0xff]
        %v362 = vld [vmem:[#allocation2 + $0x30] sm:$0xff]
        %v363 = vld [vmem:[#allocation2 + $0x38] sm:$0xff]
        %v364 = vld [vmem:[#allocation2 + $0x40] sm:$0xff]
        %v365 = vld [vmem:[%s336] sm:$0xf]
        %v366 = vld [vmem:[%s336 + $0x4] sm:$0xf]
        %v367 = vld [vmem:[%s336 + $0x8] sm:$0xf]
        %v368 = vld [vmem:[%s336 + $0xc] sm:$0xf]
        %v369 = vld [vmem:[%s336 + $0x10] sm:$0xf]
        %v370 = vld [vmem:[%s336 + $0x14] sm:$0xf]
        %v371 = vld [vmem:[%s336 + $0x18] sm:$0xf]
        %v372 = vld [vmem:[%s336 + $0x1c] sm:$0xf]
        %v373 = vld [vmem:[%s336 + $0x20] sm:$0xf]
        %v374 = vld [vmem:[%s298] sm:$0xf]
        %v375 = vld [vmem:[%s298 + $0x4] sm:$0xf]
        %v376 = vld [vmem:[%s298 + $0x8] sm:$0xf]
        %v377 = vld [vmem:[%s298 + $0xc] sm:$0xf]
        %v378 = vld [vmem:[%s298 + $0x10] sm:$0xf]
        %v379 = vld [vmem:[%s298 + $0x14] sm:$0xf]
        %v380 = vld [vmem:[%s298 + $0x18] sm:$0xf]
        %v381 = vld [vmem:[%s298 + $0x1c] sm:$0xf]
        %v382 = vld [vmem:[%s298 + $0x20] sm:$0xf]
        %v383 = vld [vmem:[%s298 + $0x24] sm:$0xf]
        %v384 = vld [vmem:[%s298 + $0x28] sm:$0xf]
        %v385 = vld [vmem:[%s298 + $0x2c] sm:$0xf]
        %v386 = vld [vmem:[%s298 + $0x30] sm:$0xf]
        %v387 = vld [vmem:[%s298 + $0x34] sm:$0xf]
        %v388 = vld [vmem:[%s298 + $0x38] sm:$0xf]
        %v389 = vld [vmem:[%s298 + $0x3c] sm:$0xf]
        %v399 = vunpack.c.l.b16 %v365
        %v400 = vunpack.c.l.b16 %v366
        %v401 = vunpack.c.l.b16 %v367
        %v402 = vunpack.c.l.b16 %v368
        %v403 = vunpack.c.l.b16 %v369
        %v404 = vunpack.c.l.b16 %v370
        %v405 = vunpack.c.l.b16 %v371
        %v406 = vunpack.c.l.b16 %v372
        %v407 = vunpack.c.l.b16 %v373
        %v408 = vpack.c.b16 %v400, %v399
        %v409 = vpack.c.b16 %v402, %v401
        %v410 = vpack.c.b16 %v404, %v403
        %v411 = vpack.c.b16 %v406, %v405
        %v412 = vpack.c.b16 %v407, %v407
        %v434 = vunpack.c.l.b16 %v374
        %v435 = vunpack.c.l.b16 %v375
        %v436 = vunpack.c.l.b16 %v376
        %v437 = vunpack.c.l.b16 %v377
        %v438 = vunpack.c.l.b16 %v378
        %v439 = vunpack.c.l.b16 %v379
        %v440 = vunpack.c.l.b16 %v380
        %v441 = vunpack.c.l.b16 %v381
        %v442 = vunpack.c.l.b16 %v382
        %v443 = vunpack.c.l.b16 %v383
        %v444 = vunpack.c.l.b16 %v384
        %v445 = vunpack.c.l.b16 %v385
        %v446 = vunpack.c.l.b16 %v386
        %v447 = vunpack.c.l.b16 %v387
        %v448 = vunpack.c.l.b16 %v388
        %v449 = vunpack.c.l.b16 %v389
        %v450 = vpack.c.b16 %v435, %v434
        %v451 = vpack.c.b16 %v437, %v436
        %v452 = vpack.c.b16 %v439, %v438
        %v453 = vpack.c.b16 %v441, %v440
        %v454 = vpack.c.b16 %v443, %v442
        %v455 = vpack.c.b16 %v445, %v444
        %v456 = vpack.c.b16 %v447, %v446
        %v457 = vpack.c.b16 %v449, %v448
        %466 = vmatpush.bf16.msra.mxu0 %v457
        %467 = vmatpush.bf16.msra.mxu0 %v456
        %468 = vmatpush.bf16.msra.mxu0 %v455
        %469 = vmatpush.bf16.msra.mxu0 %v454
        %470 = vmatpush.bf16.msra.mxu0 %v453
        %471 = vmatpush.bf16.msra.mxu0 %v452
        %472 = vmatpush.bf16.msra.mxu0 %v451
        %473 = vmatpush.bf16.msra.mxu0 %v450
        %474 = vmatmul.bf16.gmra.mxu0 %v408
        %v475 = vpop.f32.mrf.mxu0
        %v476 = vadd.f32 0.0, %v475
        %v477 = vpop.f32.mrf.mxu0
        %v478 = vadd.f32 0.0, %v477
        %479 = vmatmul.bf16.gmra.mxu0 %v409
        %v480 = vpop.f32.mrf.mxu0
        %v481 = vadd.f32 0.0, %v480
        %v482 = vpop.f32.mrf.mxu0
        %v483 = vadd.f32 0.0, %v482
        %484 = vmatmul.bf16.gmra.mxu0 %v410
        %v485 = vpop.f32.mrf.mxu0
        %v486 = vadd.f32 0.0, %v485
        %v487 = vpop.f32.mrf.mxu0
        %v488 = vadd.f32 0.0, %v487
        %489 = vmatmul.bf16.gmra.mxu0 %v411
        %v490 = vpop.f32.mrf.mxu0
        %v491 = vadd.f32 0.0, %v490
        %v492 = vpop.f32.mrf.mxu0
        %v493 = vadd.f32 0.0, %v492
        %494 = vmatmul.bf16.gmra.mxu0 %v412
        %v495 = vpop.f32.mrf.mxu0
        %v496 = vadd.f32 0.0, %v495
        %v497 = vpop.f32.mrf.mxu0
        %498 = vdwg.mxu0
        %v499 = vadd.f32 %v356, %v476
        %v500 = vadd.f32 %v357, %v478
        %v501 = vadd.f32 %v358, %v481
        %v502 = vadd.f32 %v359, %v483
        %v503 = vadd.f32 %v360, %v486
        %v504 = vadd.f32 %v361, %v488
        %v505 = vadd.f32 %v362, %v491
        %v506 = vadd.f32 %v363, %v493
        %v507 = vadd.f32 %v364, %v496
        %508 = vst [vmem:[#allocation2] sm:$0xff] %v499
        %509 = vst [vmem:[#allocation2 + $0x8] sm:$0xff] %v500
        %510 = vst [vmem:[#allocation2 + $0x10] sm:$0xff] %v501
        %511 = vst [vmem:[#allocation2 + $0x18] sm:$0xff] %v502
        %512 = vst [vmem:[#allocation2 + $0x20] sm:$0xff] %v503
        %513 = vst [vmem:[#allocation2 + $0x28] sm:$0xff] %v504
        %514 = vst [vmem:[#allocation2 + $0x30] sm:$0xff] %v505
        %515 = vst [vmem:[#allocation2 + $0x38] sm:$0xff] %v506
        %516 = vst [vmem:[#allocation2 + $0x40] sm:$0xff] %v507
        // Predicated region
        $region78: #{jvp__.122} parent=68 // pred_check
          %p517 = pneg %p343
        $region79: #{jvp__.122} parent=68 // pred_check_branch
          %519 = sbr.rel (%p517) target = $region81
        $region80: #{jvp__.122} parent=68 // pred_region
          %v520 = vld [vmem:[#allocation2] sm:$0xff]
          %v521 = vld [vmem:[#allocation2 + $0x8] sm:$0xff]
          %v522 = vld [vmem:[#allocation2 + $0x10] sm:$0xff]
          %v523 = vld [vmem:[#allocation2 + $0x18] sm:$0xff]
          %v524 = vld [vmem:[#allocation2 + $0x20] sm:$0xff]
          %v525 = vld [vmem:[#allocation2 + $0x28] sm:$0xff]
          %v526 = vld [vmem:[#allocation2 + $0x30] sm:$0xff]
          %v527 = vld [vmem:[#allocation2 + $0x38] sm:$0xff]
          %v528 = vld [vmem:[#allocation2 + $0x40] sm:$0xff]
          %v529 = vld [vmem:[%s341] sm:$0x1]
          %v531 = vperm.slane %v529, 0
          %v533 = vadd.f32 %v520, %v531
          %v534 = vadd.f32 %v521, %v531
          %v535 = vadd.f32 %v522, %v531
          %v536 = vadd.f32 %v523, %v531
          %v537 = vadd.f32 %v524, %v531
          %v538 = vadd.f32 %v525, %v531
          %v539 = vadd.f32 %v526, %v531
          %v540 = vadd.f32 %v527, %v531
          %v541 = vadd.f32 %v528, %v531
          %v542 = vpack.c.bf16 %v533, %v533
          %v543 = vpack.c.bf16 %v534, %v534
          %v544 = vpack.c.bf16 %v535, %v535
          %v545 = vpack.c.bf16 %v536, %v536
          %v546 = vpack.c.bf16 %v537, %v537
          %v547 = vpack.c.bf16 %v538, %v538
          %v548 = vpack.c.bf16 %v539, %v539
          %v549 = vpack.c.bf16 %v540, %v540
          %v550 = vpack.c.bf16 %v541, %v541
          %551 = vst [vmem:[%s328] sm:$0xf] %v542
          %552 = vst [vmem:[%s328 + $0x4] sm:$0xf] %v543
          %553 = vst [vmem:[%s328 + $0x8] sm:$0xf] %v544
          %554 = vst [vmem:[%s328 + $0xc] sm:$0xf] %v545
          %555 = vst [vmem:[%s328 + $0x10] sm:$0xf] %v546
          %556 = vst [vmem:[%s328 + $0x14] sm:$0xf] %v547
          %557 = vst [vmem:[%s328 + $0x18] sm:$0xf] %v548
          %558 = vst [vmem:[%s328 + $0x1c] sm:$0xf] %v549
          %559 = vst [vmem:[%s328 + $0x20] sm:$0xf] %v550
        $region81: #{jvp__.122} parent=68 // pred_fallthru
          _
        %s560 = sand.u32 %s125, 1
        %s561 = sand.u32 %s125, 1
        %s562 = smul.addr %s561, 36
        %s563 = scalar_lea.vmem [#allocation4], %s562
        // Predicated region
        $region82: #{jvp__.122} parent=68 // pred_check
          %p564 = pneg %p135
        $region83: #{jvp__.122} parent=68 // pred_check_branch
          %566 = sbr.rel (%p564) target = $region85
        $region84: #{jvp__.122} parent=68 // pred_region
          %s567 = smul.u32 9, %s19
          %s568 = smul.addr %s567, 3
          %s569 = sadd.s32 %s20, %s568
          %s570 = smul.addr %s569, 4
          %s571 = scalar_lea.vmem %s3, %s570
          // Predicated region
          $region86: #{jvp__.122} parent=84 // pred_check
            _
          $region87: #{jvp__.122} parent=84 // pred_check_branch
            %573 = sbr.rel (0) target = $region89
          $region88: #{jvp__.122} parent=84 // pred_region
            // Predicated region
            $region90: #{jvp__.122} parent=88 // pred_check
              _
            $region91: #{jvp__.122} parent=88 // pred_check_branch
              %575 = sbr.rel target = $region93
            $region92: #{jvp__.122} parent=88 // pred_region
              // Predicated region
              $region105: #{jvp__.122} parent=92 // pred_check
                _
              $region106: #{jvp__.122} parent=92 // pred_check_branch
                %607 = sbr.rel (0) target = $region108
              $region107: #{jvp__.122} parent=92 // pred_region
                loop: start=0, step=1, limit=1
                $region109: #{jvp__.122} parent=107 // loop_pre_header
                  _
                $region110: #{jvp__.122} parent=107 // loop_header
                  %s609 = sphi 0, %s613
                  %p610 = scmp.ge.s32.totalorder %s609, 1
                  %s614 = sphi %s563, %s563
                  %s615 = sphi %s571, %s571
                $region111: #{jvp__.122} parent=107 // loop_header_branch
                  %612 = sbr.rel (%p610) target = $region115
                $region112: #{jvp__.122} parent=107 // loop_body
                  _
                $region113: #{jvp__.122} parent=107 // loop_footer
                  %s613 = sadd.s32 1, %s609
                $region114: #{jvp__.122} parent=107 // loop_footer_branch
                  %608 = sbr.rel target = $region110
                $region115: #{jvp__.122} parent=107 // loop_exit
                  _
                %s617 = ssub.s32 16, 1
                loop: start=0, step=1, limit=1
                $region116: #{jvp__.122} parent=107 // loop_pre_header
                  _
                $region117: #{jvp__.122} parent=107 // loop_header
                  %s619 = sphi 0, %s623
                  %p620 = scmp.ge.s32.totalorder %s619, 1
                  %s624 = sphi %s563, %s563
                  %s625 = sphi %s571, %s571
                $region118: #{jvp__.122} parent=107 // loop_header_branch
                  %622 = sbr.rel (%p620) target = $region122
                $region119: #{jvp__.122} parent=107 // loop_body
                  %v626 = vld [vmem:[%s624] sm:%s617]
                  %627 = vst [vmem:[%s625] sm:%s617] %v626
                  %v628 = vld [vmem:[%s624 + $0x4] sm:%s617]
                  %629 = vst [vmem:[%s625 + $0xc] sm:%s617] %v628
                  %v630 = vld [vmem:[%s624 + $0x8] sm:%s617]
                  %631 = vst [vmem:[%s625 + $0x18] sm:%s617] %v630
                  %v632 = vld [vmem:[%s624 + $0xc] sm:%s617]
                  %633 = vst [vmem:[%s625 + $0x24] sm:%s617] %v632
                  %v634 = vld [vmem:[%s624 + $0x10] sm:%s617]
                  %635 = vst [vmem:[%s625 + $0x30] sm:%s617] %v634
                  %v636 = vld [vmem:[%s624 + $0x14] sm:%s617]
                  %637 = vst [vmem:[%s625 + $0x3c] sm:%s617] %v636
                  %v638 = vld [vmem:[%s624 + $0x18] sm:%s617]
                  %639 = vst [vmem:[%s625 + $0x48] sm:%s617] %v638
                  %v640 = vld [vmem:[%s624 + $0x1c] sm:%s617]
                  %641 = vst [vmem:[%s625 + $0x54] sm:%s617] %v640
                  %v642 = vld [vmem:[%s624 + $0x20] sm:%s617]
                  %643 = vst [vmem:[%s625 + $0x60] sm:%s617] %v642
                $region120: #{jvp__.122} parent=107 // loop_footer
                  %s623 = sadd.s32 1, %s619
                $region121: #{jvp__.122} parent=107 // loop_footer_branch
                  %618 = sbr.rel target = $region117
                $region122: #{jvp__.122} parent=107 // loop_exit
                  _
              $region108: #{jvp__.122} parent=92 // pred_fallthru
                _
            $region93: #{jvp__.122} parent=88 // pred_fallthru
              _
            // Predicated region
            $region94: #{jvp__.122} parent=88 // pred_check
              _
            $region95: #{jvp__.122} parent=88 // pred_check_branch
              %577 = sbr.rel (0) target = $region97
            $region96: #{jvp__.122} parent=88 // pred_region
              %s579 = ssub.s32 16, 1
              loop: start=0, step=1, limit=1
              $region98: #{jvp__.122} parent=96 // loop_pre_header
                _
              $region99: #{jvp__.122} parent=96 // loop_header
                %s581 = sphi 0, %s585
                %p582 = scmp.ge.s32.totalorder %s581, 1
                %s586 = sphi %s563, %s563
                %s587 = sphi %s571, %s571
              $region100: #{jvp__.122} parent=96 // loop_header_branch
                %584 = sbr.rel (%p582) target = $region104
              $region101: #{jvp__.122} parent=96 // loop_body
                %v588 = vld [vmem:[%s586] sm:%s579]
                %589 = vst [vmem:[%s587] sm:%s579] %v588
                %v590 = vld [vmem:[%s586 + $0x4] sm:%s579]
                %591 = vst [vmem:[%s587 + $0xc] sm:%s579] %v590
                %v592 = vld [vmem:[%s586 + $0x8] sm:%s579]
                %593 = vst [vmem:[%s587 + $0x18] sm:%s579] %v592
                %v594 = vld [vmem:[%s586 + $0xc] sm:%s579]
                %595 = vst [vmem:[%s587 + $0x24] sm:%s579] %v594
                %v596 = vld [vmem:[%s586 + $0x10] sm:%s579]
                %597 = vst [vmem:[%s587 + $0x30] sm:%s579] %v596
                %v598 = vld [vmem:[%s586 + $0x14] sm:%s579]
                %599 = vst [vmem:[%s587 + $0x3c] sm:%s579] %v598
                %v600 = vld [vmem:[%s586 + $0x18] sm:%s579]
                %601 = vst [vmem:[%s587 + $0x48] sm:%s579] %v600
                %v602 = vld [vmem:[%s586 + $0x1c] sm:%s579]
                %603 = vst [vmem:[%s587 + $0x54] sm:%s579] %v602
                %v604 = vld [vmem:[%s586 + $0x20] sm:%s579]
                %605 = vst [vmem:[%s587 + $0x60] sm:%s579] %v604
              $region102: #{jvp__.122} parent=96 // loop_footer
                %s585 = sadd.s32 1, %s581
              $region103: #{jvp__.122} parent=96 // loop_footer_branch
                %580 = sbr.rel target = $region99
              $region104: #{jvp__.122} parent=96 // loop_exit
                _
            $region97: #{jvp__.122} parent=88 // pred_fallthru
              _
          $region89: #{jvp__.122} parent=84 // pred_fallthru
            _
          %644 = vnop
        $region85: #{jvp__.122} parent=68 // pred_fallthru
          _
      $region69: #{jvp__.122} parent=5 // pred_fallthru
        _
      %p645 = scmp.le.s32.totalorder 2, %s9
      // Predicated region
      $region123: #{jvp__.122} parent=5 // pred_check
        %p646 = pneg %p645
      $region124: #{jvp__.122} parent=5 // pred_check_branch
        %648 = sbr.rel (%p646) target = $region126
      $region125: #{jvp__.122} parent=5 // pred_region
        %s649 = ssub.s32 %s9, 2
        // Predicated region
        $region127: #{jvp__.122} parent=125 // pred_check
          %p650 = pneg %p141
        $region128: #{jvp__.122} parent=125 // pred_check_branch
          %652 = sbr.rel (%p650) target = $region130
        $region129: #{jvp__.122} parent=125 // pred_region
          %s653 = sand.u32 %s126, 1
          %s654 = sand.u32 %s126, 1
          %s655 = smul.addr %s654, 36
          %s656 = scalar_lea.vmem [#allocation4], %s655
        $region130: #{jvp__.122} parent=125 // pred_fallthru
          _
      $region126: #{jvp__.122} parent=5 // pred_fallthru
        _
    $region6: #{jvp__.122} parent=1 // loop_footer
      %s13 = sadd.s32 1, %s9
    $region7: #{jvp__.122} parent=1 // loop_footer_branch
      %8 = sbr.rel target = $region3
    $region8: #{jvp__.122} parent=1 // loop_exit
      _

// kernel: jvp__.124
$region0: #{jvp__.124}
  #allocation0 [shape = 'u32[]', space=smem, size = 0x4, offset = 0x4, fixed_abs, tag = 'smem constant byte address 0x4 - core index']
  #allocation1 [shape = 'u32[72,128]{1,0:T(1,128)}', space=vmem, size = 0x9000, scoped, tag = 'internal scratch']
  #allocation2 [shape = 'f32[72,128]{1,0:T(8,128)}', space=vmem, size = 0x9000, scoped, tag = 'scratch operand']
  %s0 = inlined_call_operand.vmem [shape: bf16[72,128], index: 0, kind: input, shape index: {}]
  %s1 = inlined_call_operand.vmem [shape: bf16[128,128], index: 1, kind: input, shape index: {}]
  %s2 = inlined_call_operand.vmem [shape: f32[1,128], index: 2, kind: input, shape index: {}]
  %s3 = inlined_call_operand.vmem [shape: bf16[72,128], index: 3, kind: output, shape index: {}]
  %s4 = sld [smem:[#allocation0]]
  $region30: #{jvp__.124} parent=0
    _
  %s6 = ssub.s32 1, %s4
  %s7 = scalar_select 0, %s6, %s4
  // Predicated region
  $region2: #{jvp__.124} parent=0 // pred_check
    _
  $region3: #{jvp__.124} parent=0 // pred_check_branch
    %9 = sbr.rel (0) target = $region5
  $region4: #{jvp__.124} parent=0 // pred_region
    _
  $region5: #{jvp__.124} parent=0 // pred_fallthru
    _
  // Predicated region
  $region6: #{jvp__.124} parent=0 // pred_check
    _
  $region7: #{jvp__.124} parent=0 // pred_check_branch
    %11 = sbr.rel (0) target = $region9
  $region8: #{jvp__.124} parent=0 // pred_region
    _
  $region9: #{jvp__.124} parent=0 // pred_fallthru
    _
  // Predicated region
  $region10: #{jvp__.124} parent=0 // pred_check
    _
  $region11: #{jvp__.124} parent=0 // pred_check_branch
    %13 = sbr.rel (0) target = $region13
  $region12: #{jvp__.124} parent=0 // pred_region
    _
  $region13: #{jvp__.124} parent=0 // pred_fallthru
    _
  %p14 = scmp.eq.s32.totalorder 0, 0
  // Predicated region
  $region14: #{jvp__.124} parent=0 // pred_check
    %p15 = pneg %p14
  $region15: #{jvp__.124} parent=0 // pred_check_branch
    %17 = sbr.rel (%p15) target = $region17
  $region16: #{jvp__.124} parent=0 // pred_region
    %18 = vst [vmem:[#allocation2] sm:$0xff] 0.0
    %19 = vst [vmem:[#allocation2 + $0x8] sm:$0xff] 0.0
    %20 = vst [vmem:[#allocation2 + $0x10] sm:$0xff] 0.0
    %21 = vst [vmem:[#allocation2 + $0x18] sm:$0xff] 0.0
    %22 = vst [vmem:[#allocation2 + $0x20] sm:$0xff] 0.0
    %23 = vst [vmem:[#allocation2 + $0x28] sm:$0xff] 0.0
    %24 = vst [vmem:[#allocation2 + $0x30] sm:$0xff] 0.0
    %25 = vst [vmem:[#allocation2 + $0x38] sm:$0xff] 0.0
    %26 = vst [vmem:[#allocation2 + $0x40] sm:$0xff] 0.0
  $region17: #{jvp__.124} parent=0 // pred_fallthru
    _
  %v27 = vld [vmem:[#allocation2] sm:$0xff]
  %v28 = vld [vmem:[#allocation2 + $0x8] sm:$0xff]
  %v29 = vld [vmem:[#allocation2 + $0x10] sm:$0xff]
  %v30 = vld [vmem:[#allocation2 + $0x18] sm:$0xff]
  %v31 = vld [vmem:[#allocation2 + $0x20] sm:$0xff]
  %v32 = vld [vmem:[#allocation2 + $0x28] sm:$0xff]
  %v33 = vld [vmem:[#allocation2 + $0x30] sm:$0xff]
  %v34 = vld [vmem:[#allocation2 + $0x38] sm:$0xff]
  %v35 = vld [vmem:[#allocation2 + $0x40] sm:$0xff]
  %v36 = vld [vmem:[%s0] sm:$0xf]
  %v37 = vld [vmem:[%s0 + $0x4] sm:$0xf]
  %v38 = vld [vmem:[%s0 + $0x8] sm:$0xf]
  %v39 = vld [vmem:[%s0 + $0xc] sm:$0xf]
  %v40 = vld [vmem:[%s0 + $0x10] sm:$0xf]
  %v41 = vld [vmem:[%s0 + $0x14] sm:$0xf]
  %v42 = vld [vmem:[%s0 + $0x18] sm:$0xf]
  %v43 = vld [vmem:[%s0 + $0x1c] sm:$0xf]
  %v44 = vld [vmem:[%s0 + $0x20] sm:$0xf]
  %v45 = vld [vmem:[%s1] sm:$0xf]
  %v46 = vld [vmem:[%s1 + $0x4] sm:$0xf]
  %v47 = vld [vmem:[%s1 + $0x8] sm:$0xf]
  %v48 = vld [vmem:[%s1 + $0xc] sm:$0xf]
  %v49 = vld [vmem:[%s1 + $0x10] sm:$0xf]
  %v50 = vld [vmem:[%s1 + $0x14] sm:$0xf]
  %v51 = vld [vmem:[%s1 + $0x18] sm:$0xf]
  %v52 = vld [vmem:[%s1 + $0x1c] sm:$0xf]
  %v53 = vld [vmem:[%s1 + $0x20] sm:$0xf]
  %v54 = vld [vmem:[%s1 + $0x24] sm:$0xf]
  %v55 = vld [vmem:[%s1 + $0x28] sm:$0xf]
  %v56 = vld [vmem:[%s1 + $0x2c] sm:$0xf]
  %v57 = vld [vmem:[%s1 + $0x30] sm:$0xf]
  %v58 = vld [vmem:[%s1 + $0x34] sm:$0xf]
  %v59 = vld [vmem:[%s1 + $0x38] sm:$0xf]
  %v60 = vld [vmem:[%s1 + $0x3c] sm:$0xf]
  %v70 = vunpack.c.l.b16 %v36
  %v71 = vunpack.c.l.b16 %v37
  %v72 = vunpack.c.l.b16 %v38
  %v73 = vunpack.c.l.b16 %v39
  %v74 = vunpack.c.l.b16 %v40
  %v75 = vunpack.c.l.b16 %v41
  %v76 = vunpack.c.l.b16 %v42
  %v77 = vunpack.c.l.b16 %v43
  %v78 = vunpack.c.l.b16 %v44
  %v79 = vpack.c.b16 %v71, %v70
  %v80 = vpack.c.b16 %v73, %v72
  %v81 = vpack.c.b16 %v75, %v74
  %v82 = vpack.c.b16 %v77, %v76
  %v83 = vpack.c.b16 %v78, %v78
  %v105 = vunpack.c.l.b16 %v45
  %v106 = vunpack.c.l.b16 %v46
  %v107 = vunpack.c.l.b16 %v47
  %v108 = vunpack.c.l.b16 %v48
  %v109 = vunpack.c.l.b16 %v49
  %v110 = vunpack.c.l.b16 %v50
  %v111 = vunpack.c.l.b16 %v51
  %v112 = vunpack.c.l.b16 %v52
  %v113 = vunpack.c.l.b16 %v53
  %v114 = vunpack.c.l.b16 %v54
  %v115 = vunpack.c.l.b16 %v55
  %v116 = vunpack.c.l.b16 %v56
  %v117 = vunpack.c.l.b16 %v57
  %v118 = vunpack.c.l.b16 %v58
  %v119 = vunpack.c.l.b16 %v59
  %v120 = vunpack.c.l.b16 %v60
  %v121 = vpack.c.b16 %v106, %v105
  %v122 = vpack.c.b16 %v108, %v107
  %v123 = vpack.c.b16 %v110, %v109
  %v124 = vpack.c.b16 %v112, %v111
  %v125 = vpack.c.b16 %v114, %v113
  %v126 = vpack.c.b16 %v116, %v115
  %v127 = vpack.c.b16 %v118, %v117
  %v128 = vpack.c.b16 %v120, %v119
  %137 = vmatpush.bf16.msra.mxu0 %v128
  %138 = vmatpush.bf16.msra.mxu0 %v127
  %139 = vmatpush.bf16.msra.mxu0 %v126
  %140 = vmatpush.bf16.msra.mxu0 %v125
  %141 = vmatpush.bf16.msra.mxu0 %v124
  %142 = vmatpush.bf16.msra.mxu0 %v123
  %143 = vmatpush.bf16.msra.mxu0 %v122
  %144 = vmatpush.bf16.msra.mxu0 %v121
  %145 = vmatmul.bf16.gmra.mxu0 %v79
  %v146 = vpop.f32.mrf.mxu0
  %v147 = vadd.f32 0.0, %v146
  %v148 = vpop.f32.mrf.mxu0
  %v149 = vadd.f32 0.0, %v148
  %150 = vmatmul.bf16.gmra.mxu0 %v80
  %v151 = vpop.f32.mrf.mxu0
  %v152 = vadd.f32 0.0, %v151
  %v153 = vpop.f32.mrf.mxu0
  %v154 = vadd.f32 0.0, %v153
  %155 = vmatmul.bf16.gmra.mxu0 %v81
  %v156 = vpop.f32.mrf.mxu0
  %v157 = vadd.f32 0.0, %v156
  %v158 = vpop.f32.mrf.mxu0
  %v159 = vadd.f32 0.0, %v158
  %160 = vmatmul.bf16.gmra.mxu0 %v82
  %v161 = vpop.f32.mrf.mxu0
  %v162 = vadd.f32 0.0, %v161
  %v163 = vpop.f32.mrf.mxu0
  %v164 = vadd.f32 0.0, %v163
  %165 = vmatmul.bf16.gmra.mxu0 %v83
  %v166 = vpop.f32.mrf.mxu0
  %v167 = vadd.f32 0.0, %v166
  %v168 = vpop.f32.mrf.mxu0
  %169 = vdwg.mxu0
  %v170 = vadd.f32 %v27, %v147
  %v171 = vadd.f32 %v28, %v149
  %v172 = vadd.f32 %v29, %v152
  %v173 = vadd.f32 %v30, %v154
  %v174 = vadd.f32 %v31, %v157
  %v175 = vadd.f32 %v32, %v159
  %v176 = vadd.f32 %v33, %v162
  %v177 = vadd.f32 %v34, %v164
  %v178 = vadd.f32 %v35, %v167
  %179 = vst [vmem:[#allocation2] sm:$0xff] %v170
  %180 = vst [vmem:[#allocation2 + $0x8] sm:$0xff] %v171
  %181 = vst [vmem:[#allocation2 + $0x10] sm:$0xff] %v172
  %182 = vst [vmem:[#allocation2 + $0x18] sm:$0xff] %v173
  %183 = vst [vmem:[#allocation2 + $0x20] sm:$0xff] %v174
  %184 = vst [vmem:[#allocation2 + $0x28] sm:$0xff] %v175
  %185 = vst [vmem:[#allocation2 + $0x30] sm:$0xff] %v176
  %186 = vst [vmem:[#allocation2 + $0x38] sm:$0xff] %v177
  %187 = vst [vmem:[#allocation2 + $0x40] sm:$0xff] %v178
  // Predicated region
  $region18: #{jvp__.124} parent=0 // pred_check
    %p188 = pneg %p14
  $region19: #{jvp__.124} parent=0 // pred_check_branch
    %190 = sbr.rel (%p188) target = $region21
  $region20: #{jvp__.124} parent=0 // pred_region
    %v191 = vld [vmem:[#allocation2] sm:$0xff]
    %v192 = vld [vmem:[#allocation2 + $0x8] sm:$0xff]
    %v193 = vld [vmem:[#allocation2 + $0x10] sm:$0xff]
    %v194 = vld [vmem:[#allocation2 + $0x18] sm:$0xff]
    %v195 = vld [vmem:[#allocation2 + $0x20] sm:$0xff]
    %v196 = vld [vmem:[#allocation2 + $0x28] sm:$0xff]
    %v197 = vld [vmem:[#allocation2 + $0x30] sm:$0xff]
    %v198 = vld [vmem:[#allocation2 + $0x38] sm:$0xff]
    %v199 = vld [vmem:[#allocation2 + $0x40] sm:$0xff]
    %v200 = vld [vmem:[%s2] sm:$0x1]
    %v202 = vperm.slane %v200, 0
    %v204 = vadd.f32 %v191, %v202
    %v205 = vadd.f32 %v192, %v202
    %v206 = vadd.f32 %v193, %v202
    %v207 = vadd.f32 %v194, %v202
    %v208 = vadd.f32 %v195, %v202
    %v209 = vadd.f32 %v196, %v202
    %v210 = vadd.f32 %v197, %v202
    %v211 = vadd.f32 %v198, %v202
    %v212 = vadd.f32 %v199, %v202
    %v213 = vpack.c.bf16 %v204, %v204
    %v214 = vpack.c.bf16 %v205, %v205
    %v215 = vpack.c.bf16 %v206, %v206
    %v216 = vpack.c.bf16 %v207, %v207
    %v217 = vpack.c.bf16 %v208, %v208
    %v218 = vpack.c.bf16 %v209, %v209
    %v219 = vpack.c.bf16 %v210, %v210
    %v220 = vpack.c.bf16 %v211, %v211
    %v221 = vpack.c.bf16 %v212, %v212
    %222 = vst [vmem:[%s3] sm:$0xf] %v213
    %223 = vst [vmem:[%s3 + $0x4] sm:$0xf] %v214
    %224 = vst [vmem:[%s3 + $0x8] sm:$0xf] %v215
    %225 = vst [vmem:[%s3 + $0xc] sm:$0xf] %v216
    %226 = vst [vmem:[%s3 + $0x10] sm:$0xf] %v217
    %227 = vst [vmem:[%s3 + $0x14] sm:$0xf] %v218
    %228 = vst [vmem:[%s3 + $0x18] sm:$0xf] %v219
    %229 = vst [vmem:[%s3 + $0x1c] sm:$0xf] %v220
    %230 = vst [vmem:[%s3 + $0x20] sm:$0xf] %v221
  $region21: #{jvp__.124} parent=0 // pred_fallthru
    _
  // Predicated region
  $region22: #{jvp__.124} parent=0 // pred_check
    _
  $region23: #{jvp__.124} parent=0 // pred_check_branch
    %232 = sbr.rel (0) target = $region25
  $region24: #{jvp__.124} parent=0 // pred_region
    _
  $region25: #{jvp__.124} parent=0 // pred_fallthru
    _
  // Predicated region
  $region26: #{jvp__.124} parent=0 // pred_check
    _
  $region27: #{jvp__.124} parent=0 // pred_check_branch
    %234 = sbr.rel (0) target = $region29
  $region28: #{jvp__.124} parent=0 // pred_region
    _
  $region29: #{jvp__.124} parent=0 // pred_fallthru
    _

// kernel: jvp__.123
$region0: #{jvp__.123}
  #allocation0 [shape = 'u32[]', space=smem, size = 0x4, offset = 0x4, fixed_abs, tag = 'smem constant byte address 0x4 - core index']
  #allocation1 [shape = 'u32[72,128]{1,0:T(1,128)}', space=vmem, size = 0x9000, scoped, tag = 'internal scratch']
  %s0 = inlined_call_operand.vmem [shape: bf16[2,4,34,32], index: 0, kind: input, shape index: {}]
  %s1 = inlined_call_operand.vmem [shape: bf16[2,4,34,32], index: 1, kind: input, shape index: {}]
  %s2 = inlined_call_operand.vmem [shape: bf16[2,4,34,32], index: 2, kind: input, shape index: {}]
  %s3 = inlined_call_operand.vmem [shape: bf16[2,4,34,32], index: 3, kind: output, shape index: {}]
  %s4 = sld [smem:[#allocation0]]
  $region45: #{jvp__.123} parent=0
    _
  %s6 = ssub.s32 1, %s4
  %s7 = scalar_select 0, %s6, %s4
  loop: start=0, step=1, limit=4
  $region2: #{jvp__.123} parent=0 // loop_pre_header
    _
  $region3: #{jvp__.123} parent=0 // loop_header
    %s9 = sphi 0, %s13
    %p10 = scmp.ge.s32.totalorder %s9, 4
    %s19 = sphi 0, %s21
    %s22 = sphi 0, %s19
    %s23 = sphi 0, %s22
    %s39 = sphi 0, %s23
    %s45 = sphi 0, %s47
    %s48 = sphi 0, %s45
    %s49 = sphi 0, %s48
    %s65 = sphi 0, %s49
    %s71 = sphi 0, %s73
    %s74 = sphi 0, %s71
    %s75 = sphi 0, %s74
    %s91 = sphi 0, %s75
    %s97 = sphi 0, %s99
    %s100 = sphi 0, %s97
    %s101 = sphi 0, %s100
    %s117 = sphi 0, %s101
  $region4: #{jvp__.123} parent=0 // loop_header_branch
    %12 = sbr.rel (%p10) target = $region8
  $region5: #{jvp__.123} parent=0 // loop_body
    %s14 = ssub.s32 %s9, 1
    %s15 = ssub.s32 %s9, 2
    %s16 = sadd.s32 %s9, 1
    %s17 = ssub.s32 %s9, %s16
    %p18 = scmp.eq.s32.totalorder %s17, 0
    %s20 = sadd.s32 %s19, 1
    %s21 = scalar_select %p18, %s19, %s20
    %p24 = pneg %p18
    %p25 = scmp.eq.s32.totalorder %s9, 1
    %p26 = por %p24, %p25
    %p27 = scmp.ne.s32.totalorder %s19, %s22
    %p28 = scmp.eq.s32.totalorder %s9, 0
    %p29 = por %p27, %p28
    %p30 = scmp.ne.s32.totalorder %s19, %s22
    %p31 = scmp.eq.s32.totalorder %s14, 1
    %p32 = por %p30, %p31
    %p33 = scmp.ne.s32.totalorder %s22, %s23
    %p34 = scmp.eq.s32.totalorder %s14, 0
    %p35 = por %p33, %p34
    %p36 = scmp.ne.s32.totalorder %s22, %s23
    %p37 = scmp.eq.s32.totalorder %s15, 1
    %p38 = por %p36, %p37
    %p40 = scmp.ne.s32.totalorder %s23, %s39
    %p41 = scmp.eq.s32.totalorder %s15, 0
    %p42 = por %p40, %p41
    %s43 = ssub.s32 %s9, %s16
    %p44 = scmp.eq.s32.totalorder %s43, 0
    %s46 = sadd.s32 %s45, 1
    %s47 = scalar_select %p44, %s45, %s46
    %p50 = pneg %p44
    %p51 = scmp.eq.s32.totalorder %s9, 1
    %p52 = por %p50, %p51
    %p53 = scmp.ne.s32.totalorder %s45, %s48
    %p54 = scmp.eq.s32.totalorder %s9, 0
    %p55 = por %p53, %p54
    %p56 = scmp.ne.s32.totalorder %s45, %s48
    %p57 = scmp.eq.s32.totalorder %s14, 1
    %p58 = por %p56, %p57
    %p59 = scmp.ne.s32.totalorder %s48, %s49
    %p60 = scmp.eq.s32.totalorder %s14, 0
    %p61 = por %p59, %p60
    %p62 = scmp.ne.s32.totalorder %s48, %s49
    %p63 = scmp.eq.s32.totalorder %s15, 1
    %p64 = por %p62, %p63
    %p66 = scmp.ne.s32.totalorder %s49, %s65
    %p67 = scmp.eq.s32.totalorder %s15, 0
    %p68 = por %p66, %p67
    %s69 = ssub.s32 %s9, %s16
    %p70 = scmp.eq.s32.totalorder %s69, 0
    %s72 = sadd.s32 %s71, 1
    %s73 = scalar_select %p70, %s71, %s72
    %p76 = pneg %p70
    %p77 = scmp.eq.s32.totalorder %s9, 1
    %p78 = por %p76, %p77
    %p79 = scmp.ne.s32.totalorder %s71, %s74
    %p80 = scmp.eq.s32.totalorder %s9, 0
    %p81 = por %p79, %p80
    %p82 = scmp.ne.s32.totalorder %s71, %s74
    %p83 = scmp.eq.s32.totalorder %s14, 1
    %p84 = por %p82, %p83
    %p85 = scmp.ne.s32.totalorder %s74, %s75
    %p86 = scmp.eq.s32.totalorder %s14, 0
    %p87 = por %p85, %p86
    %p88 = scmp.ne.s32.totalorder %s74, %s75
    %p89 = scmp.eq.s32.totalorder %s15, 1
    %p90 = por %p88, %p89
    %p92 = scmp.ne.s32.totalorder %s75, %s91
    %p93 = scmp.eq.s32.totalorder %s15, 0
    %p94 = por %p92, %p93
    %s95 = ssub.s32 %s9, %s16
    %p96 = scmp.eq.s32.totalorder %s95, 0
    %s98 = sadd.s32 %s97, 1
    %s99 = scalar_select %p96, %s97, %s98
    %p102 = pneg %p96
    %p103 = scmp.eq.s32.totalorder %s9, 1
    %p104 = por %p102, %p103
    %p105 = scmp.ne.s32.totalorder %s97, %s100
    %p106 = scmp.eq.s32.totalorder %s9, 0
    %p107 = por %p105, %p106
    %p108 = scmp.ne.s32.totalorder %s97, %s100
    %p109 = scmp.eq.s32.totalorder %s14, 1
    %p110 = por %p108, %p109
    %p111 = scmp.ne.s32.totalorder %s100, %s101
    %p112 = scmp.eq.s32.totalorder %s14, 0
    %p113 = por %p111, %p112
    %p114 = scmp.ne.s32.totalorder %s100, %s101
    %p115 = scmp.eq.s32.totalorder %s15, 1
    %p116 = por %p114, %p115
    %p118 = scmp.ne.s32.totalorder %s101, %s117
    %p119 = scmp.eq.s32.totalorder %s15, 0
    %p120 = por %p118, %p119
    %p121 = scmp.le.s32.totalorder 1, %s9
    %p122 = scmp.lt.s32.totalorder %s9, 3
    %p123 = pnand %p121, %p122
    %p124 = pneg %p123
    // Predicated region
    $region9: #{jvp__.123} parent=5 // pred_check
      _
    $region10: #{jvp__.123} parent=5 // pred_check_branch
      %126 = sbr.rel (%p123) target = $region12
    $region11: #{jvp__.123} parent=5 // pred_region
      %s127 = ssub.s32 %s9, 1
    $region12: #{jvp__.123} parent=5 // pred_fallthru
      _
    %p128 = scmp.lt.s32.totalorder %s9, 2
    // Predicated region
    $region13: #{jvp__.123} parent=5 // pred_check
      %p129 = pneg %p128
    $region14: #{jvp__.123} parent=5 // pred_check_branch
      %131 = sbr.rel (%p129) target = $region16
    $region15: #{jvp__.123} parent=5 // pred_region
      // Predicated region
      $region17: #{jvp__.123} parent=15 // pred_check
        %p132 = pneg %p29
      $region18: #{jvp__.123} parent=15 // pred_check_branch
        %134 = sbr.rel (%p132) target = $region20
      $region19: #{jvp__.123} parent=15 // pred_region
        %p135 = scmp.lt.s32.totalorder %s9, 1
        %s136 = scalar_select %p135, %s9, 1
        %s137 = smul.addr %s136, 20
        %s138 = smul.addr %s137, 4
        %s139 = scalar_lea.vmem %s0, %s138
      $region20: #{jvp__.123} parent=15 // pred_fallthru
        _
      // Predicated region
      $region21: #{jvp__.123} parent=15 // pred_check
        %p140 = pneg %p55
      $region22: #{jvp__.123} parent=15 // pred_check_branch
        %142 = sbr.rel (%p140) target = $region24
      $region23: #{jvp__.123} parent=15 // pred_region
        %p143 = scmp.lt.s32.totalorder %s9, 1
        %s144 = scalar_select %p143, %s9, 1
        %s145 = smul.addr %s144, 20
        %s146 = smul.addr %s145, 4
        %s147 = scalar_lea.vmem %s1, %s146
      $region24: #{jvp__.123} parent=15 // pred_fallthru
        _
      // Predicated region
      $region25: #{jvp__.123} parent=15 // pred_check
        %p148 = pneg %p81
      $region26: #{jvp__.123} parent=15 // pred_check_branch
        %150 = sbr.rel (%p148) target = $region28
      $region27: #{jvp__.123} parent=15 // pred_region
        %p151 = scmp.lt.s32.totalorder %s9, 1
        %s152 = scalar_select %p151, %s9, 1
        %s153 = smul.addr %s152, 20
        %s154 = smul.addr %s153, 4
        %s155 = scalar_lea.vmem %s2, %s154
      $region28: #{jvp__.123} parent=15 // pred_fallthru
        _
    $region16: #{jvp__.123} parent=5 // pred_fallthru
      _
    %p156 = scmp.le.s32.totalorder 1, %s9
    %p157 = scmp.lt.s32.totalorder %s9, 3
    %p158 = pnand %p156, %p157
    %p159 = pneg %p158
    // Predicated region
    $region29: #{jvp__.123} parent=5 // pred_check
      _
    $region30: #{jvp__.123} parent=5 // pred_check_branch
      %161 = sbr.rel (%p158) target = $region32
    $region31: #{jvp__.123} parent=5 // pred_region
      %s162 = ssub.s32 %s9, 1
      %p163 = scmp.lt.s32.totalorder %s14, 1
      %s164 = scalar_select %p163, %s14, 1
      %s165 = smul.addr %s164, 20
      %s166 = smul.addr %s165, 4
      %s167 = scalar_lea.vmem %s0, %s166
      %p168 = pneg %p35
      %p169 = pneg %p32
      %p170 = scmp.lt.s32.totalorder %s14, 1
      %s171 = scalar_select %p170, %s14, 1
      %s172 = smul.addr %s171, 20
      %s173 = smul.addr %s172, 4
      %s174 = scalar_lea.vmem %s1, %s173
      %p175 = pneg %p61
      %p176 = pneg %p58
      %p177 = scmp.lt.s32.totalorder %s14, 1
      %s178 = scalar_select %p177, %s14, 1
      %s179 = smul.addr %s178, 20
      %s180 = smul.addr %s179, 4
      %s181 = scalar_lea.vmem %s2, %s180
      %p182 = pneg %p87
      %p183 = pneg %p84
      %p184 = pneg %p113
      %p185 = pneg %p110
      %p186 = scmp.lt.s32.totalorder %s14, 1
      %s187 = scalar_select %p186, %s14, 1
      %s188 = smul.addr %s187, 20
      %s189 = smul.addr %s188, 4
      %s190 = scalar_lea.vmem %s3, %s189
      %p191 = scmp.lt.s32.totalorder %s14, 1
      %s192 = scalar_select %p191, %s14, 1
      %s193 = smul.addr %s192, 20
      %s194 = smul.addr %s193, 4
      %s195 = scalar_lea.vmem %s0, %s194
      %p196 = scmp.lt.s32.totalorder %s14, 1
      %s197 = scalar_select %p196, %s14, 1
      %s198 = smul.addr %s197, 20
      %s199 = smul.addr %s198, 4
      %s200 = scalar_lea.vmem %s1, %s199
      %p201 = scmp.lt.s32.totalorder %s14, 1
      %s202 = scalar_select %p201, %s14, 1
      %s203 = smul.addr %s202, 20
      %s204 = smul.addr %s203, 4
      %s205 = scalar_lea.vmem %s2, %s204
      %p206 = scmp.lt.s32.totalorder %s14, 1
      %s207 = scalar_select %p206, %s14, 1
      %s208 = smul.addr %s207, 20
      %s209 = smul.addr %s208, 4
      %s210 = scalar_lea.vmem %s3, %s209
      %v212 = vld [vmem:[%s195] sm:$0xf]
      %v213 = vld [vmem:[%s195 + $0x4] sm:$0xf]
      %v214 = vld [vmem:[%s195 + $0x8] sm:$0xf]
      %v215 = vld [vmem:[%s195 + $0xc] sm:$0xf]
      %v216 = vld [vmem:[%s195 + $0x10] sm:$0x1]
      %v217 = vld [vmem:[%s195 + $0x14] sm:$0xf]
      %v218 = vld [vmem:[%s195 + $0x18] sm:$0xf]
      %v219 = vld [vmem:[%s195 + $0x1c] sm:$0xf]
      %v220 = vld [vmem:[%s195 + $0x20] sm:$0xf]
      %v221 = vld [vmem:[%s195 + $0x24] sm:$0x1]
      %v222 = vld [vmem:[%s195 + $0x28] sm:$0xf]
      %v223 = vld [vmem:[%s195 + $0x2c] sm:$0xf]
      %v224 = vld [vmem:[%s195 + $0x30] sm:$0xf]
      %v225 = vld [vmem:[%s195 + $0x34] sm:$0xf]
      %v226 = vld [vmem:[%s195 + $0x38] sm:$0x1]
      %v227 = vld [vmem:[%s195 + $0x3c] sm:$0xf]
      %v228 = vld [vmem:[%s195 + $0x40] sm:$0xf]
      %v229 = vld [vmem:[%s195 + $0x44] sm:$0xf]
      %v230 = vld [vmem:[%s195 + $0x48] sm:$0xf]
      %v231 = vld [vmem:[%s195 + $0x4c] sm:$0x1]
      %v232 = vld [vmem:[%s200] sm:$0xf]
      %v233 = vld [vmem:[%s200 + $0x4] sm:$0xf]
      %v234 = vld [vmem:[%s200 + $0x8] sm:$0xf]
      %v235 = vld [vmem:[%s200 + $0xc] sm:$0xf]
      %v236 = vld [vmem:[%s200 + $0x10] sm:$0x1]
      %v237 = vld [vmem:[%s200 + $0x14] sm:$0xf]
      %v238 = vld [vmem:[%s200 + $0x18] sm:$0xf]
      %v239 = vld [vmem:[%s200 + $0x1c] sm:$0xf]
      %v240 = vld [vmem:[%s200 + $0x20] sm:$0xf]
      %v241 = vld [vmem:[%s200 + $0x24] sm:$0x1]
      %v242 = vld [vmem:[%s200 + $0x28] sm:$0xf]
      %v243 = vld [vmem:[%s200 + $0x2c] sm:$0xf]
      %v244 = vld [vmem:[%s200 + $0x30] sm:$0xf]
      %v245 = vld [vmem:[%s200 + $0x34] sm:$0xf]
      %v246 = vld [vmem:[%s200 + $0x38] sm:$0x1]
      %v247 = vld [vmem:[%s200 + $0x3c] sm:$0xf]
      %v248 = vld [vmem:[%s200 + $0x40] sm:$0xf]
      %v249 = vld [vmem:[%s200 + $0x44] sm:$0xf]
      %v250 = vld [vmem:[%s200 + $0x48] sm:$0xf]
      %v251 = vld [vmem:[%s200 + $0x4c] sm:$0x1]
      %v252 = vld [vmem:[%s205] sm:$0xf]
      %v253 = vld [vmem:[%s205 + $0x4] sm:$0xf]
      %v254 = vld [vmem:[%s205 + $0x8] sm:$0xf]
      %v255 = vld [vmem:[%s205 + $0xc] sm:$0xf]
      %v256 = vld [vmem:[%s205 + $0x10] sm:$0x1]
      %v257 = vld [vmem:[%s205 + $0x14] sm:$0xf]
      %v258 = vld [vmem:[%s205 + $0x18] sm:$0xf]
      %v259 = vld [vmem:[%s205 + $0x1c] sm:$0xf]
      %v260 = vld [vmem:[%s205 + $0x20] sm:$0xf]
      %v261 = vld [vmem:[%s205 + $0x24] sm:$0x1]
      %v262 = vld [vmem:[%s205 + $0x28] sm:$0xf]
      %v263 = vld [vmem:[%s205 + $0x2c] sm:$0xf]
      %v264 = vld [vmem:[%s205 + $0x30] sm:$0xf]
      %v265 = vld [vmem:[%s205 + $0x34] sm:$0xf]
      %v266 = vld [vmem:[%s205 + $0x38] sm:$0x1]
      %v267 = vld [vmem:[%s205 + $0x3c] sm:$0xf]
      %v268 = vld [vmem:[%s205 + $0x40] sm:$0xf]
      %v269 = vld [vmem:[%s205 + $0x44] sm:$0xf]
      %v270 = vld [vmem:[%s205 + $0x48] sm:$0xf]
      %v271 = vld [vmem:[%s205 + $0x4c] sm:$0x1]
      %v277 = vunpack.c.l.b16 %v212
      %v278 = vunpack.c.l.b16 %v213
      %v279 = vunpack.c.l.b16 %v214
      %v280 = vunpack.c.l.b16 %v215
      %v281 = vunpack.c.l.b16 %v216
      %v282 = vpack.c.b16 %v278, %v277
      %v283 = vpack.c.b16 %v280, %v279
      %v284 = vpack.c.b16 %v281, %v281
      %v290 = vunpack.c.l.b16 %v232
      %v291 = vunpack.c.l.b16 %v233
      %v292 = vunpack.c.l.b16 %v234
      %v293 = vunpack.c.l.b16 %v235
      %v294 = vunpack.c.l.b16 %v236
      %v295 = vpack.c.b16 %v291, %v290
      %v296 = vpack.c.b16 %v293, %v292
      %v297 = vpack.c.b16 %v294, %v294
      %vm298 = vcmask 261120
      %v300 = vsel %vm298, %v282, 0
      %v303 = vsel %vm298, %v283, 0
      %v306 = vsel %vm298, %v284, 0
      %v309 = vsel %vm298, %v295, 0
      %v312 = vsel %vm298, %v296, 0
      %v315 = vsel %vm298, %v297, 0
      %317 = vmatpush.bf16.xpose.msra.mxu0 0
      %318 = vmatpush.bf16.xpose.msra.mxu0 0
      %319 = vmatpush.bf16.xpose.msra.mxu0 0
      %320 = vmatpush.bf16.xpose.msra.mxu0 0
      %321 = vmatpush.bf16.xpose.msra.mxu0 0
      %322 = vmatpush.bf16.xpose.msra.mxu0 %v315
      %323 = vmatpush.bf16.xpose.msra.mxu0 %v312
      %324 = vmatpush.bf16.xpose.msra.mxu0 %v309
      %325 = vmatmul.bf16.gmra.mxu0 %v300
      %v326 = vpop.f32.mrf.mxu0
      %v327 = vadd.f32 0.0, %v326
      %v328 = vpop.f32.mrf.mxu0
      %v329 = vadd.f32 0.0, %v328
      %330 = vmatmul.bf16.gmra.mxu0 %v303
      %v331 = vpop.f32.mrf.mxu0
      %v332 = vadd.f32 0.0, %v331
      %v333 = vpop.f32.mrf.mxu0
      %v334 = vadd.f32 0.0, %v333
      %335 = vmatmul.bf16.gmra.mxu0 %v306
      %v336 = vpop.f32.mrf.mxu0
      %v337 = vadd.f32 0.0, %v336
      %v338 = vpop.f32.mrf.mxu0
      %339 = vdwg.mxu0
      %v345 = vunpack.c.l.b16 %v217
      %v346 = vunpack.c.l.b16 %v218
      %v347 = vunpack.c.l.b16 %v219
      %v348 = vunpack.c.l.b16 %v220
      %v349 = vunpack.c.l.b16 %v221
      %v350 = vpack.c.b16 %v346, %v345
      %v351 = vpack.c.b16 %v348, %v347
      %v352 = vpack.c.b16 %v349, %v349
      %v358 = vunpack.c.l.b16 %v237
      %v359 = vunpack.c.l.b16 %v238
      %v360 = vunpack.c.l.b16 %v239
      %v361 = vunpack.c.l.b16 %v240
      %v362 = vunpack.c.l.b16 %v241
      %v363 = vpack.c.b16 %v359, %v358
      %v364 = vpack.c.b16 %v361, %v360
      %v365 = vpack.c.b16 %v362, %v362
      %v367 = vsel %vm298, %v350, 0
      %v370 = vsel %vm298, %v351, 0
      %v373 = vsel %vm298, %v352, 0
      %v376 = vsel %vm298, %v363, 0
      %v379 = vsel %vm298, %v364, 0
      %v382 = vsel %vm298, %v365, 0
      %384 = vmatpush.bf16.xpose.msra.mxu0 0
      %385 = vmatpush.bf16.xpose.msra.mxu0 0
      %386 = vmatpush.bf16.xpose.msra.mxu0 0
      %387 = vmatpush.bf16.xpose.msra.mxu0 0
      %388 = vmatpush.bf16.xpose.msra.mxu0 0
      %389 = vmatpush.bf16.xpose.msra.mxu0 %v382
      %390 = vmatpush.bf16.xpose.msra.mxu0 %v379
      %391 = vmatpush.bf16.xpose.msra.mxu0 %v376
      %392 = vmatmul.bf16.gmra.mxu0 %v367
      %v393 = vpop.f32.mrf.mxu0
      %v394 = vadd.f32 0.0, %v393
      %v395 = vpop.f32.mrf.mxu0
      %v396 = vadd.f32 0.0, %v395
      %397 = vmatmul.bf16.gmra.mxu0 %v370
      %v398 = vpop.f32.mrf.mxu0
      %v399 = vadd.f32 0.0, %v398
      %v400 = vpop.f32.mrf.mxu0
      %v401 = vadd.f32 0.0, %v400
      %402 = vmatmul.bf16.gmra.mxu0 %v373
      %v403 = vpop.f32.mrf.mxu0
      %v404 = vadd.f32 0.0, %v403
      %v405 = vpop.f32.mrf.mxu0
      %406 = vdwg.mxu0
      %v412 = vunpack.c.l.b16 %v222
      %v413 = vunpack.c.l.b16 %v223
      %v414 = vunpack.c.l.b16 %v224
      %v415 = vunpack.c.l.b16 %v225
      %v416 = vunpack.c.l.b16 %v226
      %v417 = vpack.c.b16 %v413, %v412
      %v418 = vpack.c.b16 %v415, %v414
      %v419 = vpack.c.b16 %v416, %v416
      %v425 = vunpack.c.l.b16 %v242
      %v426 = vunpack.c.l.b16 %v243
      %v427 = vunpack.c.l.b16 %v244
      %v428 = vunpack.c.l.b16 %v245
      %v429 = vunpack.c.l.b16 %v246
      %v430 = vpack.c.b16 %v426, %v425
      %v431 = vpack.c.b16 %v428, %v427
      %v432 = vpack.c.b16 %v429, %v429
      %v434 = vsel %vm298, %v417, 0
      %v437 = vsel %vm298, %v418, 0
      %v440 = vsel %vm298, %v419, 0
      %v443 = vsel %vm298, %v430, 0
      %v446 = vsel %vm298, %v431, 0
      %v449 = vsel %vm298, %v432, 0
      %451 = vmatpush.bf16.xpose.msra.mxu0 0
      %452 = vmatpush.bf16.xpose.msra.mxu0 0
      %453 = vmatpush.bf16.xpose.msra.mxu0 0
      %454 = vmatpush.bf16.xpose.msra.mxu0 0
      %455 = vmatpush.bf16.xpose.msra.mxu0 0
      %456 = vmatpush.bf16.xpose.msra.mxu0 %v449
      %457 = vmatpush.bf16.xpose.msra.mxu0 %v446
      %458 = vmatpush.bf16.xpose.msra.mxu0 %v443
      %459 = vmatmul.bf16.gmra.mxu0 %v434
      %v460 = vpop.f32.mrf.mxu0
      %v461 = vadd.f32 0.0, %v460
      %v462 = vpop.f32.mrf.mxu0
      %v463 = vadd.f32 0.0, %v462
      %464 = vmatmul.bf16.gmra.mxu0 %v437
      %v465 = vpop.f32.mrf.mxu0
      %v466 = vadd.f32 0.0, %v465
      %v467 = vpop.f32.mrf.mxu0
      %v468 = vadd.f32 0.0, %v467
      %469 = vmatmul.bf16.gmra.mxu0 %v440
      %v470 = vpop.f32.mrf.mxu0
      %v471 = vadd.f32 0.0, %v470
      %v472 = vpop.f32.mrf.mxu0
      %473 = vdwg.mxu0
      %v479 = vunpack.c.l.b16 %v227
      %v480 = vunpack.c.l.b16 %v228
      %v481 = vunpack.c.l.b16 %v229
      %v482 = vunpack.c.l.b16 %v230
      %v483 = vunpack.c.l.b16 %v231
      %v484 = vpack.c.b16 %v480, %v479
      %v485 = vpack.c.b16 %v482, %v481
      %v486 = vpack.c.b16 %v483, %v483
      %v492 = vunpack.c.l.b16 %v247
      %v493 = vunpack.c.l.b16 %v248
      %v494 = vunpack.c.l.b16 %v249
      %v495 = vunpack.c.l.b16 %v250
      %v496 = vunpack.c.l.b16 %v251
      %v497 = vpack.c.b16 %v493, %v492
      %v498 = vpack.c.b16 %v495, %v494
      %v499 = vpack.c.b16 %v496, %v496
      %v501 = vsel %vm298, %v484, 0
      %v504 = vsel %vm298, %v485, 0
      %v507 = vsel %vm298, %v486, 0
      %v510 = vsel %vm298, %v497, 0
      %v513 = vsel %vm298, %v498, 0
      %v516 = vsel %vm298, %v499, 0
      %518 = vmatpush.bf16.xpose.msra.mxu0 0
      %519 = vmatpush.bf16.xpose.msra.mxu0 0
      %520 = vmatpush.bf16.xpose.msra.mxu0 0
      %521 = vmatpush.bf16.xpose.msra.mxu0 0
      %522 = vmatpush.bf16.xpose.msra.mxu0 0
      %523 = vmatpush.bf16.xpose.msra.mxu0 %v516
      %524 = vmatpush.bf16.xpose.msra.mxu0 %v513
      %525 = vmatpush.bf16.xpose.msra.mxu0 %v510
      %526 = vmatmul.bf16.gmra.mxu0 %v501
      %v527 = vpop.f32.mrf.mxu0
      %v528 = vadd.f32 0.0, %v527
      %v529 = vpop.f32.mrf.mxu0
      %v530 = vadd.f32 0.0, %v529
      %531 = vmatmul.bf16.gmra.mxu0 %v504
      %v532 = vpop.f32.mrf.mxu0
      %v533 = vadd.f32 0.0, %v532
      %v534 = vpop.f32.mrf.mxu0
      %v535 = vadd.f32 0.0, %v534
      %536 = vmatmul.bf16.gmra.mxu0 %v507
      %v537 = vpop.f32.mrf.mxu0
      %v538 = vadd.f32 0.0, %v537
      %v539 = vpop.f32.mrf.mxu0
      %540 = vdwg.mxu0
      %v541 = vmul.f32 %v327, 0.17677669
      %v542 = vmul.f32 %v329, 0.17677669
      %v543 = vmul.f32 %v332, 0.17677669
      %v544 = vmul.f32 %v334, 0.17677669
      %v545 = vmul.f32 %v337, 0.17677669
      %v546 = vmul.f32 %v394, 0.17677669
      %v547 = vmul.f32 %v396, 0.17677669
      %v548 = vmul.f32 %v399, 0.17677669
      %v549 = vmul.f32 %v401, 0.17677669
      %v550 = vmul.f32 %v404, 0.17677669
      %v551 = vmul.f32 %v461, 0.17677669
      %v552 = vmul.f32 %v463, 0.17677669
      %v553 = vmul.f32 %v466, 0.17677669
      %v554 = vmul.f32 %v468, 0.17677669
      %v555 = vmul.f32 %v471, 0.17677669
      %v556 = vmul.f32 %v528, 0.17677669
      %v557 = vmul.f32 %v530, 0.17677669
      %v558 = vmul.f32 %v533, 0.17677669
      %v559 = vmul.f32 %v535, 0.17677669
      %v560 = vmul.f32 %v538, 0.17677669
      %v561 = vlaneseq
      %v562 = vshrl.u32 %v561, 7
      %v563 = vadd.s32 %v562, 8
      %v564 = vadd.s32 %v562, 16
      %v565 = vadd.s32 %v562, 24
      %v566 = vadd.s32 %v562, 32
      %v567 = vlaneseq
      %v568 = vand.u32 %v567, 127
      %vm569 = vcmp.ge.s32.totalorder %v562, %v568
      %vm570 = vcmp.ge.s32.totalorder %v563, %v568
      %vm571 = vcmp.ge.s32.totalorder %v564, %v568
      %vm572 = vcmp.ge.s32.totalorder %v565, %v568
      %vm573 = vcmp.ge.s32.totalorder %v566, %v568
      %v574 = vsel %vm569, 1, 0
      %v575 = vsel %vm570, 1, 0
      %v576 = vsel %vm571, 1, 0
      %v577 = vsel %vm572, 1, 0
      %v578 = vsel %vm573, 1, 0
      %vm579 = vcmp.eq.s32.totalorder %v574, 1
      %vm580 = vcmp.eq.s32.totalorder %v575, 1
      %vm581 = vcmp.eq.s32.totalorder %v576, 1
      %vm582 = vcmp.eq.s32.totalorder %v577, 1
      %vm583 = vcmp.eq.s32.totalorder %v578, 1
      %v584 = vsel %vm579, %v541, -1e+30
      %v585 = vsel %vm580, %v542, -1e+30
      %v586 = vsel %vm581, %v543, -1e+30
      %v587 = vsel %vm582, %v544, -1e+30
      %v588 = vsel %vm583, %v545, -1e+30
      %v589 = vsel %vm579, %v546, -1e+30
      %v590 = vsel %vm580, %v547, -1e+30
      %v591 = vsel %vm581, %v548, -1e+30
      %v592 = vsel %vm582, %v549, -1e+30
      %v593 = vsel %vm583, %v550, -1e+30
      %v594 = vsel %vm579, %v551, -1e+30
      %v595 = vsel %vm580, %v552, -1e+30
      %v596 = vsel %vm581, %v553, -1e+30
      %v597 = vsel %vm582, %v554, -1e+30
      %v598 = vsel %vm583, %v555, -1e+30
      %v599 = vsel %vm579, %v556, -1e+30
      %v600 = vsel %vm580, %v557, -1e+30
      %v601 = vsel %vm581, %v558, -1e+30
      %v602 = vsel %vm582, %v559, -1e+30
      %v603 = vsel %vm583, %v560, -1e+30
      %vm604 = vcmask 277504
      %v605 = vsel %vm604, %v584, -inf
      %606 = vmax.xlane.f32.xlu0 %v605
      %v607 = vpop.xlane.xlu0 %606
      %v608 = vsel %vm604, %v585, -inf
      %609 = vmax.xlane.f32.xlu0 %v608
      %v610 = vpop.xlane.xlu0 %609
      %v611 = vsel %vm604, %v586, -inf
      %612 = vmax.xlane.f32.xlu0 %v611
      %v613 = vpop.xlane.xlu0 %612
      %v614 = vsel %vm604, %v587, -inf
      %615 = vmax.xlane.f32.xlu0 %v614
      %v616 = vpop.xlane.xlu0 %615
      %vm617 = vcmask 271360
      %v618 = vsel %vm617, %v588, -inf
      %619 = vmax.xlane.f32.xlu0 %v618
      %v620 = vpop.xlane.xlu0 %619
      %v621 = vsel %vm604, %v589, -inf
      %622 = vmax.xlane.f32.xlu0 %v621
      %v623 = vpop.xlane.xlu0 %622
      %v624 = vsel %vm604, %v590, -inf
      %625 = vmax.xlane.f32.xlu0 %v624
      %v626 = vpop.xlane.xlu0 %625
      %v627 = vsel %vm604, %v591, -inf
      %628 = vmax.xlane.f32.xlu0 %v627
      %v629 = vpop.xlane.xlu0 %628
      %v630 = vsel %vm604, %v592, -inf
      %631 = vmax.xlane.f32.xlu0 %v630
      %v632 = vpop.xlane.xlu0 %631
      %v633 = vsel %vm617, %v593, -inf
      %634 = vmax.xlane.f32.xlu0 %v633
      %v635 = vpop.xlane.xlu0 %634
      %v636 = vsel %vm604, %v594, -inf
      %637 = vmax.xlane.f32.xlu0 %v636
      %v638 = vpop.xlane.xlu0 %637
      %v639 = vsel %vm604, %v595, -inf
      %640 = vmax.xlane.f32.xlu0 %v639
      %v641 = vpop.xlane.xlu0 %640
      %v642 = vsel %vm604, %v596, -inf
      %643 = vmax.xlane.f32.xlu0 %v642
      %v644 = vpop.xlane.xlu0 %643
      %v645 = vsel %vm604, %v597, -inf
      %646 = vmax.xlane.f32.xlu0 %v645
      %v647 = vpop.xlane.xlu0 %646
      %v648 = vsel %vm617, %v598, -inf
      %649 = vmax.xlane.f32.xlu0 %v648
      %v650 = vpop.xlane.xlu0 %649
      %v651 = vsel %vm604, %v599, -inf
      %652 = vmax.xlane.f32.xlu0 %v651
      %v653 = vpop.xlane.xlu0 %652
      %v654 = vsel %vm604, %v600, -inf
      %655 = vmax.xlane.f32.xlu0 %v654
      %v656 = vpop.xlane.xlu0 %655
      %v657 = vsel %vm604, %v601, -inf
      %658 = vmax.xlane.f32.xlu0 %v657
      %v659 = vpop.xlane.xlu0 %658
      %v660 = vsel %vm604, %v602, -inf
      %661 = vmax.xlane.f32.xlu0 %v660
      %v662 = vpop.xlane.xlu0 %661
      %v663 = vsel %vm617, %v603, -inf
      %664 = vmax.xlane.f32.xlu0 %v663
      %v665 = vpop.xlane.xlu0 %664
      %v666 = vsub.f32 %v584, %v607
      %v667 = vsub.f32 %v585, %v610
      %v668 = vsub.f32 %v586, %v613
      %v669 = vsub.f32 %v587, %v616
      %v670 = vsub.f32 %v588, %v620
      %v671 = vsub.f32 %v589, %v623
      %v672 = vsub.f32 %v590, %v626
      %v673 = vsub.f32 %v591, %v629
      %v674 = vsub.f32 %v592, %v632
      %v675 = vsub.f32 %v593, %v635
      %v676 = vsub.f32 %v594, %v638
      %v677 = vsub.f32 %v595, %v641
      %v678 = vsub.f32 %v596, %v644
      %v679 = vsub.f32 %v597, %v647
      %v680 = vsub.f32 %v598, %v650
      %v681 = vsub.f32 %v599, %v653
      %v682 = vsub.f32 %v600, %v656
      %v683 = vsub.f32 %v601, %v659
      %v684 = vsub.f32 %v602, %v662
      %v685 = vsub.f32 %v603, %v665
      %v686 = vmul.f32 %v666, 1.442695
      %v687 = vpow.pop %v686
      %v688 = vmul.f32 %v667, 1.442695
      %v689 = vpow.pop %v688
      %v690 = vmul.f32 %v668, 1.442695
      %v691 = vpow.pop %v690
      %v692 = vmul.f32 %v669, 1.442695
      %v693 = vpow.pop %v692
      %v694 = vmul.f32 %v670, 1.442695
      %v695 = vpow.pop %v694
      %v696 = vmul.f32 %v671, 1.442695
      %v697 = vpow.pop %v696
      %v698 = vmul.f32 %v672, 1.442695
      %v699 = vpow.pop %v698
      %v700 = vmul.f32 %v673, 1.442695
      %v701 = vpow.pop %v700
      %v702 = vmul.f32 %v674, 1.442695
      %v703 = vpow.pop %v702
      %v704 = vmul.f32 %v675, 1.442695
      %v705 = vpow.pop %v704
      %v706 = vmul.f32 %v676, 1.442695
      %v707 = vpow.pop %v706
      %v708 = vmul.f32 %v677, 1.442695
      %v709 = vpow.pop %v708
      %v710 = vmul.f32 %v678, 1.442695
      %v711 = vpow.pop %v710
      %v712 = vmul.f32 %v679, 1.442695
      %v713 = vpow.pop %v712
      %v714 = vmul.f32 %v680, 1.442695
      %v715 = vpow.pop %v714
      %v716 = vmul.f32 %v681, 1.442695
      %v717 = vpow.pop %v716
      %v718 = vmul.f32 %v682, 1.442695
      %v719 = vpow.pop %v718
      %v720 = vmul.f32 %v683, 1.442695
      %v721 = vpow.pop %v720
      %v722 = vmul.f32 %v684, 1.442695
      %v723 = vpow.pop %v722
      %v724 = vmul.f32 %v685, 1.442695
      %v725 = vpow.pop %v724
      %v726 = vsel %vm604, %v687, 0.0
      %727 = vadd.xlane.f32.xlu0 %v726
      %v728 = vpop.xlane.xlu0 %727
      %v729 = vsel %vm604, %v689, 0.0
      %730 = vadd.xlane.f32.xlu0 %v729
      %v731 = vpop.xlane.xlu0 %730
      %v732 = vsel %vm604, %v691, 0.0
      %733 = vadd.xlane.f32.xlu0 %v732
      %v734 = vpop.xlane.xlu0 %733
      %v735 = vsel %vm604, %v693, 0.0
      %736 = vadd.xlane.f32.xlu0 %v735
      %v737 = vpop.xlane.xlu0 %736
      %v738 = vsel %vm617, %v695, 0.0
      %739 = vadd.xlane.f32.xlu0 %v738
      %v740 = vpop.xlane.xlu0 %739
      %v741 = vsel %vm604, %v697, 0.0
      %742 = vadd.xlane.f32.xlu0 %v741
      %v743 = vpop.xlane.xlu0 %742
      %v744 = vsel %vm604, %v699, 0.0
      %745 = vadd.xlane.f32.xlu0 %v744
      %v746 = vpop.xlane.xlu0 %745
      %v747 = vsel %vm604, %v701, 0.0
      %748 = vadd.xlane.f32.xlu0 %v747
      %v749 = vpop.xlane.xlu0 %748
      %v750 = vsel %vm604, %v703, 0.0
      %751 = vadd.xlane.f32.xlu0 %v750
      %v752 = vpop.xlane.xlu0 %751
      %v753 = vsel %vm617, %v705, 0.0
      %754 = vadd.xlane.f32.xlu0 %v753
      %v755 = vpop.xlane.xlu0 %754
      %v756 = vsel %vm604, %v707, 0.0
      %757 = vadd.xlane.f32.xlu0 %v756
      %v758 = vpop.xlane.xlu0 %757
      %v759 = vsel %vm604, %v709, 0.0
      %760 = vadd.xlane.f32.xlu0 %v759
      %v761 = vpop.xlane.xlu0 %760
      %v762 = vsel %vm604, %v711, 0.0
      %763 = vadd.xlane.f32.xlu0 %v762
      %v764 = vpop.xlane.xlu0 %763
      %v765 = vsel %vm604, %v713, 0.0
      %766 = vadd.xlane.f32.xlu0 %v765
      %v767 = vpop.xlane.xlu0 %766
      %v768 = vsel %vm617, %v715, 0.0
      %769 = vadd.xlane.f32.xlu0 %v768
      %v770 = vpop.xlane.xlu0 %769
      %v771 = vsel %vm604, %v717, 0.0
      %772 = vadd.xlane.f32.xlu0 %v771
      %v773 = vpop.xlane.xlu0 %772
      %v774 = vsel %vm604, %v719, 0.0
      %775 = vadd.xlane.f32.xlu0 %v774
      %v776 = vpop.xlane.xlu0 %775
      %v777 = vsel %vm604, %v721, 0.0
      %778 = vadd.xlane.f32.xlu0 %v777
      %v779 = vpop.xlane.xlu0 %778
      %v780 = vsel %vm604, %v723, 0.0
      %781 = vadd.xlane.f32.xlu0 %v780
      %v782 = vpop.xlane.xlu0 %781
      %v783 = vsel %vm617, %v725, 0.0
      %784 = vadd.xlane.f32.xlu0 %v783
      %v785 = vpop.xlane.xlu0 %784
      %v786 = vrcp.pop %v728
      %v787 = vrcp.pop %v731
      %v788 = vrcp.pop %v734
      %v789 = vrcp.pop %v737
      %v790 = vrcp.pop %v740
      %v791 = vrcp.pop %v743
      %v792 = vrcp.pop %v746
      %v793 = vrcp.pop %v749
      %v794 = vrcp.pop %v752
      %v795 = vrcp.pop %v755
      %v796 = vrcp.pop %v758
      %v797 = vrcp.pop %v761
      %v798 = vrcp.pop %v764
      %v799 = vrcp.pop %v767
      %v800 = vrcp.pop %v770
      %v801 = vrcp.pop %v773
      %v802 = vrcp.pop %v776
      %v803 = vrcp.pop %v779
      %v804 = vrcp.pop %v782
      %v805 = vrcp.pop %v785
      %v806 = vmul.f32 %v687, %v786
      %v807 = vmul.f32 %v689, %v787
      %v808 = vmul.f32 %v691, %v788
      %v809 = vmul.f32 %v693, %v789
      %v810 = vmul.f32 %v695, %v790
      %v811 = vmul.f32 %v697, %v791
      %v812 = vmul.f32 %v699, %v792
      %v813 = vmul.f32 %v701, %v793
      %v814 = vmul.f32 %v703, %v794
      %v815 = vmul.f32 %v705, %v795
      %v816 = vmul.f32 %v707, %v796
      %v817 = vmul.f32 %v709, %v797
      %v818 = vmul.f32 %v711, %v798
      %v819 = vmul.f32 %v713, %v799
      %v820 = vmul.f32 %v715, %v800
      %v821 = vmul.f32 %v717, %v801
      %v822 = vmul.f32 %v719, %v802
      %v823 = vmul.f32 %v721, %v803
      %v824 = vmul.f32 %v723, %v804
      %v825 = vmul.f32 %v725, %v805
      %v826 = vpack.c.bf16 %v806, %v806
      %v827 = vpack.c.bf16 %v807, %v807
      %v828 = vpack.c.bf16 %v808, %v808
      %v829 = vpack.c.bf16 %v809, %v809
      %v830 = vpack.c.bf16 %v810, %v810
      %v831 = vpack.c.bf16 %v811, %v811
      %v832 = vpack.c.bf16 %v812, %v812
      %v833 = vpack.c.bf16 %v813, %v813
      %v834 = vpack.c.bf16 %v814, %v814
      %v835 = vpack.c.bf16 %v815, %v815
      %v836 = vpack.c.bf16 %v816, %v816
      %v837 = vpack.c.bf16 %v817, %v817
      %v838 = vpack.c.bf16 %v818, %v818
      %v839 = vpack.c.bf16 %v819, %v819
      %v840 = vpack.c.bf16 %v820, %v820
      %v841 = vpack.c.bf16 %v821, %v821
      %v842 = vpack.c.bf16 %v822, %v822
      %v843 = vpack.c.bf16 %v823, %v823
      %v844 = vpack.c.bf16 %v824, %v824
      %v845 = vpack.c.bf16 %v825, %v825
      %v851 = vunpack.c.l.b16 %v826
      %v852 = vunpack.c.l.b16 %v827
      %v853 = vunpack.c.l.b16 %v828
      %v854 = vunpack.c.l.b16 %v829
      %v855 = vunpack.c.l.b16 %v830
      %v856 = vpack.c.b16 %v852, %v851
      %v857 = vpack.c.b16 %v854, %v853
      %v858 = vpack.c.b16 %v855, %v855
      %v864 = vunpack.c.l.b16 %v252
      %v865 = vunpack.c.l.b16 %v253
      %v866 = vunpack.c.l.b16 %v254
      %v867 = vunpack.c.l.b16 %v255
      %v868 = vunpack.c.l.b16 %v256
      %v869 = vpack.c.b16 %v865, %v864
      %v870 = vpack.c.b16 %v867, %v866
      %v871 = vpack.c.b16 %v868, %v868
      %v875 = vsel %vm604, %v856, 0
      %v878 = vsel %vm604, %v857, 0
      %v881 = vsel %vm604, %v858, 0
      %vm883 = vcmask 1040384
      %v885 = vsel %vm883, %v871, 0
      %887 = vmatpush.bf16.msra.mxu0 0
      %888 = vmatpush.bf16.msra.mxu0 0
      %889 = vmatpush.bf16.msra.mxu0 0
      %890 = vmatpush.bf16.msra.mxu0 0
      %891 = vmatpush.bf16.msra.mxu0 0
      %892 = vmatpush.bf16.msra.mxu0 %v885
      %893 = vmatpush.bf16.msra.mxu0 %v870
      %894 = vmatpush.bf16.msra.mxu0 %v869
      %895 = vmatmul.bf16.gmra.mxu0 %v875
      %v896 = vpop.f32.mrf.mxu0
      %v897 = vadd.f32 0.0, %v896
      %v898 = vpop.f32.mrf.mxu0
      %v899 = vadd.f32 0.0, %v898
      %900 = vmatmul.bf16.gmra.mxu0 %v878
      %v901 = vpop.f32.mrf.mxu0
      %v902 = vadd.f32 0.0, %v901
      %v903 = vpop.f32.mrf.mxu0
      %v904 = vadd.f32 0.0, %v903
      %905 = vmatmul.bf16.gmra.mxu0 %v881
      %v906 = vpop.f32.mrf.mxu0
      %v907 = vadd.f32 0.0, %v906
      %v908 = vpop.f32.mrf.mxu0
      %909 = vdwg.mxu0
      %v915 = vunpack.c.l.b16 %v831
      %v916 = vunpack.c.l.b16 %v832
      %v917 = vunpack.c.l.b16 %v833
      %v918 = vunpack.c.l.b16 %v834
      %v919 = vunpack.c.l.b16 %v835
      %v920 = vpack.c.b16 %v916, %v915
      %v921 = vpack.c.b16 %v918, %v917
      %v922 = vpack.c.b16 %v919, %v919
      %v928 = vunpack.c.l.b16 %v257
      %v929 = vunpack.c.l.b16 %v258
      %v930 = vunpack.c.l.b16 %v259
      %v931 = vunpack.c.l.b16 %v260
      %v932 = vunpack.c.l.b16 %v261
      %v933 = vpack.c.b16 %v929, %v928
      %v934 = vpack.c.b16 %v931, %v930
      %v935 = vpack.c.b16 %v932, %v932
      %v939 = vsel %vm604, %v920, 0
      %v942 = vsel %vm604, %v921, 0
      %v945 = vsel %vm604, %v922, 0
      %v948 = vsel %vm883, %v935, 0
      %950 = vmatpush.bf16.msra.mxu0 0
      %951 = vmatpush.bf16.msra.mxu0 0
      %952 = vmatpush.bf16.msra.mxu0 0
      %953 = vmatpush.bf16.msra.mxu0 0
      %954 = vmatpush.bf16.msra.mxu0 0
      %955 = vmatpush.bf16.msra.mxu0 %v948
      %956 = vmatpush.bf16.msra.mxu0 %v934
      %957 = vmatpush.bf16.msra.mxu0 %v933
      %958 = vmatmul.bf16.gmra.mxu0 %v939
      %v959 = vpop.f32.mrf.mxu0
      %v960 = vadd.f32 0.0, %v959
      %v961 = vpop.f32.mrf.mxu0
      %v962 = vadd.f32 0.0, %v961
      %963 = vmatmul.bf16.gmra.mxu0 %v942
      %v964 = vpop.f32.mrf.mxu0
      %v965 = vadd.f32 0.0, %v964
      %v966 = vpop.f32.mrf.mxu0
      %v967 = vadd.f32 0.0, %v966
      %968 = vmatmul.bf16.gmra.mxu0 %v945
      %v969 = vpop.f32.mrf.mxu0
      %v970 = vadd.f32 0.0, %v969
      %v971 = vpop.f32.mrf.mxu0
      %972 = vdwg.mxu0
      %v978 = vunpack.c.l.b16 %v836
      %v979 = vunpack.c.l.b16 %v837
      %v980 = vunpack.c.l.b16 %v838
      %v981 = vunpack.c.l.b16 %v839
      %v982 = vunpack.c.l.b16 %v840
      %v983 = vpack.c.b16 %v979, %v978
      %v984 = vpack.c.b16 %v981, %v980
      %v985 = vpack.c.b16 %v982, %v982
      %v991 = vunpack.c.l.b16 %v262
      %v992 = vunpack.c.l.b16 %v263
      %v993 = vunpack.c.l.b16 %v264
      %v994 = vunpack.c.l.b16 %v265
      %v995 = vunpack.c.l.b16 %v266
      %v996 = vpack.c.b16 %v992, %v991
      %v997 = vpack.c.b16 %v994, %v993
      %v998 = vpack.c.b16 %v995, %v995
      %v1002 = vsel %vm604, %v983, 0
      %v1005 = vsel %vm604, %v984, 0
      %v1008 = vsel %vm604, %v985, 0
      %v1011 = vsel %vm883, %v998, 0
      %1013 = vmatpush.bf16.msra.mxu0 0
      %1014 = vmatpush.bf16.msra.mxu0 0
      %1015 = vmatpush.bf16.msra.mxu0 0
      %1016 = vmatpush.bf16.msra.mxu0 0
      %1017 = vmatpush.bf16.msra.mxu0 0
      %1018 = vmatpush.bf16.msra.mxu0 %v1011
      %1019 = vmatpush.bf16.msra.mxu0 %v997
      %1020 = vmatpush.bf16.msra.mxu0 %v996
      %1021 = vmatmul.bf16.gmra.mxu0 %v1002
      %v1022 = vpop.f32.mrf.mxu0
      %v1023 = vadd.f32 0.0, %v1022
      %v1024 = vpop.f32.mrf.mxu0
      %v1025 = vadd.f32 0.0, %v1024
      %1026 = vmatmul.bf16.gmra.mxu0 %v1005
      %v1027 = vpop.f32.mrf.mxu0
      %v1028 = vadd.f32 0.0, %v1027
      %v1029 = vpop.f32.mrf.mxu0
      %v1030 = vadd.f32 0.0, %v1029
      %1031 = vmatmul.bf16.gmra.mxu0 %v1008
      %v1032 = vpop.f32.mrf.mxu0
      %v1033 = vadd.f32 0.0, %v1032
      %v1034 = vpop.f32.mrf.mxu0
      %1035 = vdwg.mxu0
      %v1041 = vunpack.c.l.b16 %v841
      %v1042 = vunpack.c.l.b16 %v842
      %v1043 = vunpack.c.l.b16 %v843
      %v1044 = vunpack.c.l.b16 %v844
      %v1045 = vunpack.c.l.b16 %v845
      %v1046 = vpack.c.b16 %v1042, %v1041
      %v1047 = vpack.c.b16 %v1044, %v1043
      %v1048 = vpack.c.b16 %v1045, %v1045
      %v1054 = vunpack.c.l.b16 %v267
      %v1055 = vunpack.c.l.b16 %v268
      %v1056 = vunpack.c.l.b16 %v269
      %v1057 = vunpack.c.l.b16 %v270
      %v1058 = vunpack.c.l.b16 %v271
      %v1059 = vpack.c.b16 %v1055, %v1054
      %v1060 = vpack.c.b16 %v1057, %v1056
      %v1061 = vpack.c.b16 %v1058, %v1058
      %v1065 = vsel %vm604, %v1046, 0
      %v1068 = vsel %vm604, %v1047, 0
      %v1071 = vsel %vm604, %v1048, 0
      %v1074 = vsel %vm883, %v1061, 0
      %1076 = vmatpush.bf16.msra.mxu0 0
      %1077 = vmatpush.bf16.msra.mxu0 0
      %1078 = vmatpush.bf16.msra.mxu0 0
      %1079 = vmatpush.bf16.msra.mxu0 0
      %1080 = vmatpush.bf16.msra.mxu0 0
      %1081 = vmatpush.bf16.msra.mxu0 %v1074
      %1082 = vmatpush.bf16.msra.mxu0 %v1060
      %1083 = vmatpush.bf16.msra.mxu0 %v1059
      %1084 = vmatmul.bf16.gmra.mxu0 %v1065
      %v1085 = vpop.f32.mrf.mxu0
      %v1086 = vadd.f32 0.0, %v1085
      %v1087 = vpop.f32.mrf.mxu0
      %v1088 = vadd.f32 0.0, %v1087
      %1089 = vmatmul.bf16.gmra.mxu0 %v1068
      %v1090 = vpop.f32.mrf.mxu0
      %v1091 = vadd.f32 0.0, %v1090
      %v1092 = vpop.f32.mrf.mxu0
      %v1093 = vadd.f32 0.0, %v1092
      %1094 = vmatmul.bf16.gmra.mxu0 %v1071
      %v1095 = vpop.f32.mrf.mxu0
      %v1096 = vadd.f32 0.0, %v1095
      %v1097 = vpop.f32.mrf.mxu0
      %1098 = vdwg.mxu0
      %v1099 = vpack.c.bf16 %v897, %v897
      %v1100 = vpack.c.bf16 %v899, %v899
      %v1101 = vpack.c.bf16 %v902, %v902
      %v1102 = vpack.c.bf16 %v904, %v904
      %v1103 = vpack.c.bf16 %v907, %v907
      %v1104 = vpack.c.bf16 %v960, %v960
      %v1105 = vpack.c.bf16 %v962, %v962
      %v1106 = vpack.c.bf16 %v965, %v965
      %v1107 = vpack.c.bf16 %v967, %v967
      %v1108 = vpack.c.bf16 %v970, %v970
      %v1109 = vpack.c.bf16 %v1023, %v1023
      %v1110 = vpack.c.bf16 %v1025, %v1025
      %v1111 = vpack.c.bf16 %v1028, %v1028
      %v1112 = vpack.c.bf16 %v1030, %v1030
      %v1113 = vpack.c.bf16 %v1033, %v1033
      %v1114 = vpack.c.bf16 %v1086, %v1086
      %v1115 = vpack.c.bf16 %v1088, %v1088
      %v1116 = vpack.c.bf16 %v1091, %v1091
      %v1117 = vpack.c.bf16 %v1093, %v1093
      %v1118 = vpack.c.bf16 %v1096, %v1096
      %vm1119 = vcmask 257024
      %1120 = vst.msk [vmem:[%s210] sm:$0xf] %vm1119, %v1099
      %1121 = vst.msk [vmem:[%s210 + $0x4] sm:$0xf] %vm1119, %v1100
      %1122 = vst.msk [vmem:[%s210 + $0x8] sm:$0xf] %vm1119, %v1101
      %1123 = vst.msk [vmem:[%s210 + $0xc] sm:$0xf] %vm1119, %v1102
      %vm1124 = vcmask 253952
      %1125 = vst.msk [vmem:[%s210 + $0x10] sm:$0x1] %vm1124, %v1103
      %1126 = vst.msk [vmem:[%s210 + $0x14] sm:$0xf] %vm1119, %v1104
      %1127 = vst.msk [vmem:[%s210 + $0x18] sm:$0xf] %vm1119, %v1105
      %1128 = vst.msk [vmem:[%s210 + $0x1c] sm:$0xf] %vm1119, %v1106
      %1129 = vst.msk [vmem:[%s210 + $0x20] sm:$0xf] %vm1119, %v1107
      %1130 = vst.msk [vmem:[%s210 + $0x24] sm:$0x1] %vm1124, %v1108
      %1131 = vst.msk [vmem:[%s210 + $0x28] sm:$0xf] %vm1119, %v1109
      %1132 = vst.msk [vmem:[%s210 + $0x2c] sm:$0xf] %vm1119, %v1110
      %1133 = vst.msk [vmem:[%s210 + $0x30] sm:$0xf] %vm1119, %v1111
      %1134 = vst.msk [vmem:[%s210 + $0x34] sm:$0xf] %vm1119, %v1112
      %1135 = vst.msk [vmem:[%s210 + $0x38] sm:$0x1] %vm1124, %v1113
      %1136 = vst.msk [vmem:[%s210 + $0x3c] sm:$0xf] %vm1119, %v1114
      %1137 = vst.msk [vmem:[%s210 + $0x40] sm:$0xf] %vm1119, %v1115
      %1138 = vst.msk [vmem:[%s210 + $0x44] sm:$0xf] %vm1119, %v1116
      %1139 = vst.msk [vmem:[%s210 + $0x48] sm:$0xf] %vm1119, %v1117
      %1140 = vst.msk [vmem:[%s210 + $0x4c] sm:$0x1] %vm1124, %v1118
      %p1141 = scmp.lt.s32.totalorder %s14, 1
      %s1142 = scalar_select %p1141, %s14, 1
      %s1143 = smul.addr %s1142, 20
      %s1144 = smul.addr %s1143, 4
      %s1145 = scalar_lea.vmem %s3, %s1144
      // Predicated region
      $region33: #{jvp__.123} parent=31 // pred_check
        %p1146 = pneg %p110
      $region34: #{jvp__.123} parent=31 // pred_check_branch
        %1148 = sbr.rel (%p1146) target = $region36
      $region35: #{jvp__.123} parent=31 // pred_region
        _
      $region36: #{jvp__.123} parent=31 // pred_fallthru
        _
    $region32: #{jvp__.123} parent=5 // pred_fallthru
      _
    %p1149 = scmp.le.s32.totalorder 2, %s9
    // Predicated region
    $region37: #{jvp__.123} parent=5 // pred_check
      %p1150 = pneg %p1149
    $region38: #{jvp__.123} parent=5 // pred_check_branch
      %1152 = sbr.rel (%p1150) target = $region40
    $region39: #{jvp__.123} parent=5 // pred_region
      %s1153 = ssub.s32 %s9, 2
      // Predicated region
      $region41: #{jvp__.123} parent=39 // pred_check
        %p1154 = pneg %p116
      $region42: #{jvp__.123} parent=39 // pred_check_branch
        %1156 = sbr.rel (%p1154) target = $region44
      $region43: #{jvp__.123} parent=39 // pred_region
        %p1157 = scmp.lt.s32.totalorder %s15, 1
        %s1158 = scalar_select %p1157, %s15, 1
        %s1159 = smul.addr %s1158, 20
        %s1160 = smul.addr %s1159, 4
        %s1161 = scalar_lea.vmem %s3, %s1160
      $region44: #{jvp__.123} parent=39 // pred_fallthru
        _
    $region40: #{jvp__.123} parent=5 // pred_fallthru
      _
  $region6: #{jvp__.123} parent=0 // loop_footer
    %s13 = sadd.s32 1, %s9
  $region7: #{jvp__.123} parent=0 // loop_footer_branch
    %8 = sbr.rel target = $region3
  $region8: #{jvp__.123} parent=0 // loop_exit
    _

// kernel: jvp__.125
$region0: #{jvp__.125}
  #allocation0 [shape = 'u32[]', space=smem, size = 0x4, offset = 0x4, fixed_abs, tag = 'smem constant byte address 0x4 - core index']
  #allocation1 [shape = 'u32[72,128]{1,0:T(1,128)}', space=vmem, size = 0x9000, scoped, tag = 'internal scratch']
  #allocation2 [shape = 'f32[72,512]{1,0:T(8,128)}', space=vmem, size = 0x24000, scoped, tag = 'scratch operand']
  %s0 = inlined_call_operand.vmem [shape: bf16[72,128], index: 0, kind: input, shape index: {}]
  %s1 = inlined_call_operand.vmem [shape: bf16[128,1024], index: 1, kind: input, shape index: {}]
  %s2 = inlined_call_operand.vmem [shape: f32[1,1024], index: 2, kind: input, shape index: {}]
  %s3 = inlined_call_operand.vmem [shape: bf16[72,1024], index: 3, kind: output, shape index: {}]
  %s4 = sld [smem:[#allocation0]]
  $region95: #{jvp__.125} parent=0
    _
  %s6 = ssub.s32 1, %s4
  %s7 = scalar_select 0, %s6, %s4
  $region1: #{jvp__.125} parent=0
    #allocation3 [shape = 'u8[262144]{0}', space=vmem, size = 0x40000, scoped, tag = 'input window, operand 1']
    #allocation4 [shape = 'u8[147456]{0}', space=vmem, size = 0x24000, scoped, tag = 'output window, operand 0']
    loop: start=0, step=1, limit=4
    $region2: #{jvp__.125} parent=1 // loop_pre_header
      _
    $region3: #{jvp__.125} parent=1 // loop_header
      %s9 = sphi 0, %s13
      %p10 = scmp.ge.s32.totalorder %s9, 4
      %s16 = sphi 0, %s35
      %s17 = sphi 0, %s31
      %s18 = sphi 0, %s27
      %s19 = sphi 0, %s16
      %s20 = sphi 0, %s17
      %s21 = sphi 0, %s18
      %s22 = sphi 0, %s19
      %s23 = sphi 0, %s20
      %s24 = sphi 0, %s21
      %s40 = sphi 0, %s42
      %s43 = sphi 0, %s40
      %s44 = sphi 0, %s43
      %s60 = sphi 0, %s44
      %s68 = sphi 0, %s70
      %s71 = sphi 0, %s68
      %s72 = sphi 0, %s71
      %s88 = sphi 0, %s72
      %s94 = sphi 0, %s96
      %s97 = sphi 0, %s94
      %s98 = sphi 0, %s97
      %s114 = sphi 0, %s98
      %s122 = sphi 0, %s124
      %s125 = sphi 0, %s122
      %s126 = sphi 0, %s125
      %s142 = sphi 0, %s126
    $region4: #{jvp__.125} parent=1 // loop_header_branch
      %12 = sbr.rel (%p10) target = $region8
    $region5: #{jvp__.125} parent=1 // loop_body
      %s14 = ssub.s32 %s9, 1
      %s15 = ssub.s32 %s9, 2
      %s25 = sadd.s32 1, %s18
      %p26 = scmp.ge.s32.totalorder %s25, 1
      %s27 = scalar_select %p26, 0, %s25
      %s28 = sadd.s32 1, %s17
      %s29 = scalar_select %p26, %s28, %s17
      %p30 = scmp.ge.s32.totalorder %s29, 2
      %s31 = scalar_select %p30, 0, %s29
      %s32 = sadd.s32 1, %s16
      %s33 = scalar_select %p30, %s32, %s16
      %p34 = scmp.ge.s32.totalorder %s33, 1
      %s35 = scalar_select %p34, 0, %s33
      %s36 = ssub.s32 %s16, %s35
      %s37 = ssub.s32 %s18, %s27
      %s38 = sor.u32 %s36, %s37
      %p39 = scmp.eq.s32.totalorder %s38, 0
      %s41 = sadd.s32 %s40, 1
      %s42 = scalar_select %p39, %s40, %s41
      %p45 = pneg %p39
      %p46 = scmp.eq.s32.totalorder %s9, 1
      %p47 = por %p45, %p46
      %p48 = scmp.ne.s32.totalorder %s40, %s43
      %p49 = scmp.eq.s32.totalorder %s9, 0
      %p50 = por %p48, %p49
      %p51 = scmp.ne.s32.totalorder %s40, %s43
      %p52 = scmp.eq.s32.totalorder %s14, 1
      %p53 = por %p51, %p52
      %p54 = scmp.ne.s32.totalorder %s43, %s44
      %p55 = scmp.eq.s32.totalorder %s14, 0
      %p56 = por %p54, %p55
      %p57 = scmp.ne.s32.totalorder %s43, %s44
      %p58 = scmp.eq.s32.totalorder %s15, 1
      %p59 = por %p57, %p58
      %p61 = scmp.ne.s32.totalorder %s44, %s60
      %p62 = scmp.eq.s32.totalorder %s15, 0
      %p63 = por %p61, %p62
      %s64 = ssub.s32 %s18, %s27
      %s65 = ssub.s32 %s17, %s31
      %s66 = sor.u32 %s64, %s65
      %p67 = scmp.eq.s32.totalorder %s66, 0
      %s69 = sadd.s32 %s68, 1
      %s70 = scalar_select %p67, %s68, %s69
      %p73 = pneg %p67
      %p74 = scmp.eq.s32.totalorder %s9, 1
      %p75 = por %p73, %p74
      %p76 = scmp.ne.s32.totalorder %s68, %s71
      %p77 = scmp.eq.s32.totalorder %s9, 0
      %p78 = por %p76, %p77
      %p79 = scmp.ne.s32.totalorder %s68, %s71
      %p80 = scmp.eq.s32.totalorder %s14, 1
      %p81 = por %p79, %p80
      %p82 = scmp.ne.s32.totalorder %s71, %s72
      %p83 = scmp.eq.s32.totalorder %s14, 0
      %p84 = por %p82, %p83
      %p85 = scmp.ne.s32.totalorder %s71, %s72
      %p86 = scmp.eq.s32.totalorder %s15, 1
      %p87 = por %p85, %p86
      %p89 = scmp.ne.s32.totalorder %s72, %s88
      %p90 = scmp.eq.s32.totalorder %s15, 0
      %p91 = por %p89, %p90
      %s92 = ssub.s32 %s17, %s31
      %p93 = scmp.eq.s32.totalorder %s92, 0
      %s95 = sadd.s32 %s94, 1
      %s96 = scalar_select %p93, %s94, %s95
      %p99 = pneg %p93
      %p100 = scmp.eq.s32.totalorder %s9, 1
      %p101 = por %p99, %p100
      %p102 = scmp.ne.s32.totalorder %s94, %s97
      %p103 = scmp.eq.s32.totalorder %s9, 0
      %p104 = por %p102, %p103
      %p105 = scmp.ne.s32.totalorder %s94, %s97
      %p106 = scmp.eq.s32.totalorder %s14, 1
      %p107 = por %p105, %p106
      %p108 = scmp.ne.s32.totalorder %s97, %s98
      %p109 = scmp.eq.s32.totalorder %s14, 0
      %p110 = por %p108, %p109
      %p111 = scmp.ne.s32.totalorder %s97, %s98
      %p112 = scmp.eq.s32.totalorder %s15, 1
      %p113 = por %p111, %p112
      %p115 = scmp.ne.s32.totalorder %s98, %s114
      %p116 = scmp.eq.s32.totalorder %s15, 0
      %p117 = por %p115, %p116
      %s118 = ssub.s32 %s16, %s35
      %s119 = ssub.s32 %s17, %s31
      %s120 = sor.u32 %s118, %s119
      %p121 = scmp.eq.s32.totalorder %s120, 0
      %s123 = sadd.s32 %s122, 1
      %s124 = scalar_select %p121, %s122, %s123
      %p127 = pneg %p121
      %p128 = scmp.eq.s32.totalorder %s9, 1
      %p129 = por %p127, %p128
      %p130 = scmp.ne.s32.totalorder %s122, %s125
      %p131 = scmp.eq.s32.totalorder %s9, 0
      %p132 = por %p130, %p131
      %p133 = scmp.ne.s32.totalorder %s122, %s125
      %p134 = scmp.eq.s32.totalorder %s14, 1
      %p135 = por %p133, %p134
      %p136 = scmp.ne.s32.totalorder %s125, %s126
      %p137 = scmp.eq.s32.totalorder %s14, 0
      %p138 = por %p136, %p137
      %p139 = scmp.ne.s32.totalorder %s125, %s126
      %p140 = scmp.eq.s32.totalorder %s15, 1
      %p141 = por %p139, %p140
      %p143 = scmp.ne.s32.totalorder %s126, %s142
      %p144 = scmp.eq.s32.totalorder %s15, 0
      %p145 = por %p143, %p144
      %p146 = scmp.le.s32.totalorder 1, %s9
      %p147 = scmp.lt.s32.totalorder %s9, 3
      %p148 = pnand %p146, %p147
      %p149 = pneg %p148
      // Predicated region
      $region9: #{jvp__.125} parent=5 // pred_check
        _
      $region10: #{jvp__.125} parent=5 // pred_check_branch
        %151 = sbr.rel (%p148) target = $region12
      $region11: #{jvp__.125} parent=5 // pred_region
        %s152 = ssub.s32 %s9, 1
        // Predicated region
        $region13: #{jvp__.125} parent=11 // pred_check
          %p153 = pneg %p56
        $region14: #{jvp__.125} parent=11 // pred_check_branch
          %155 = sbr.rel (%p153) target = $region16
        $region15: #{jvp__.125} parent=11 // pred_region
          %s156 = smul.u32 9, %s19
          %p157 = scmp.lt.s32.totalorder %s156, 8
          %s158 = scalar_select %p157, %s156, 8
          %p159 = scmp.lt.s32.totalorder %s21, 0
          %s160 = scalar_select %p159, %s21, 0
          %s161 = sadd.s32 %s160, %s158
          %s162 = smul.addr %s161, 4
          %s163 = scalar_lea.vmem %s0, %s162
          %s164 = smul.u32 9, %s19
        $region16: #{jvp__.125} parent=11 // pred_fallthru
          _
      $region12: #{jvp__.125} parent=5 // pred_fallthru
        _
      %p165 = scmp.lt.s32.totalorder %s9, 2
      // Predicated region
      $region17: #{jvp__.125} parent=5 // pred_check
        %p166 = pneg %p165
      $region18: #{jvp__.125} parent=5 // pred_check_branch
        %168 = sbr.rel (%p166) target = $region20
      $region19: #{jvp__.125} parent=5 // pred_region
        // Predicated region
        $region21: #{jvp__.125} parent=19 // pred_check
          %p169 = pneg %p78
        $region22: #{jvp__.125} parent=19 // pred_check_branch
          %171 = sbr.rel (%p169) target = $region24
        $region23: #{jvp__.125} parent=19 // pred_region
          %s172 = sand.u32 %s68, 1
          %s173 = sand.u32 %s68, 1
          %s174 = smul.addr %s173, 256
          %s175 = scalar_lea.vmem [#allocation3], %s174
          %s176 = smul.u32 16, %s18
          %s177 = smul.u32 4, %s17
          %s178 = smul.addr %s176, 8
          %s179 = sadd.s32 %s177, %s178
          %s180 = smul.addr %s179, 4
          %s181 = scalar_lea.vmem %s1, %s180
          // Predicated region
          $region25: #{jvp__.125} parent=23 // pred_check
            _
          $region26: #{jvp__.125} parent=23 // pred_check_branch
            %183 = sbr.rel (0) target = $region28
          $region27: #{jvp__.125} parent=23 // pred_region
            // Predicated region
            $region29: #{jvp__.125} parent=27 // pred_check
              _
            $region30: #{jvp__.125} parent=27 // pred_check_branch
              %185 = sbr.rel (0) target = $region32
            $region31: #{jvp__.125} parent=27 // pred_region
              loop: start=0, step=1, limit=1
              $region33: #{jvp__.125} parent=31 // loop_pre_header
                _
              $region34: #{jvp__.125} parent=31 // loop_header
                %s187 = sphi 0, %s191
                %p188 = scmp.ge.s32.totalorder %s187, 1
                %s192 = sphi %s181, %s181
                %s193 = sphi %s175, %s175
              $region35: #{jvp__.125} parent=31 // loop_header_branch
                %190 = sbr.rel (%p188) target = $region39
              $region36: #{jvp__.125} parent=31 // loop_body
                %v194 = vld [vmem:[%s192] sm:$0xff]
                %195 = vst [vmem:[%s193] sm:$0xff] %v194
                %v196 = vld [vmem:[%s192 + $0x8] sm:$0xff]
                %197 = vst [vmem:[%s193 + $0x8] sm:$0xff] %v196
                %v198 = vld [vmem:[%s192 + $0x20] sm:$0xff]
                %199 = vst [vmem:[%s193 + $0x10] sm:$0xff] %v198
                %v200 = vld [vmem:[%s192 + $0x28] sm:$0xff]
                %201 = vst [vmem:[%s193 + $0x18] sm:$0xff] %v200
                %v202 = vld [vmem:[%s192 + $0x40] sm:$0xff]
                %203 = vst [vmem:[%s193 + $0x20] sm:$0xff] %v202
                %v204 = vld [vmem:[%s192 + $0x48] sm:$0xff]
                %205 = vst [vmem:[%s193 + $0x28] sm:$0xff] %v204
                %v206 = vld [vmem:[%s192 + $0x60] sm:$0xff]
                %207 = vst [vmem:[%s193 + $0x30] sm:$0xff] %v206
                %v208 = vld [vmem:[%s192 + $0x68] sm:$0xff]
                %209 = vst [vmem:[%s193 + $0x38] sm:$0xff] %v208
                %v210 = vld [vmem:[%s192 + $0x80] sm:$0xff]
                %211 = vst [vmem:[%s193 + $0x40] sm:$0xff] %v210
                %v212 = vld [vmem:[%s192 + $0x88] sm:$0xff]
                %213 = vst [vmem:[%s193 + $0x48] sm:$0xff] %v212
                %v214 = vld [vmem:[%s192 + $0xa0] sm:$0xff]
                %215 = vst [vmem:[%s193 + $0x50] sm:$0xff] %v214
                %v216 = vld [vmem:[%s192 + $0xa8] sm:$0xff]
                %217 = vst [vmem:[%s193 + $0x58] sm:$0xff] %v216
                %v218 = vld [vmem:[%s192 + $0xc0] sm:$0xff]
                %219 = vst [vmem:[%s193 + $0x60] sm:$0xff] %v218
                %v220 = vld [vmem:[%s192 + $0xc8] sm:$0xff]
                %221 = vst [vmem:[%s193 + $0x68] sm:$0xff] %v220
                %v222 = vld [vmem:[%s192 + $0xe0] sm:$0xff]
                %223 = vst [vmem:[%s193 + $0x70] sm:$0xff] %v222
                %v224 = vld [vmem:[%s192 + $0xe8] sm:$0xff]
                %225 = vst [vmem:[%s193 + $0x78] sm:$0xff] %v224
                %v226 = vld [vmem:[%s192 + $0x100] sm:$0xff]
                %227 = vst [vmem:[%s193 + $0x80] sm:$0xff] %v226
                %v228 = vld [vmem:[%s192 + $0x108] sm:$0xff]
                %229 = vst [vmem:[%s193 + $0x88] sm:$0xff] %v228
                %v230 = vld [vmem:[%s192 + $0x120] sm:$0xff]
                %231 = vst [vmem:[%s193 + $0x90] sm:$0xff] %v230
                %v232 = vld [vmem:[%s192 + $0x128] sm:$0xff]
                %233 = vst [vmem:[%s193 + $0x98] sm:$0xff] %v232
                %v234 = vld [vmem:[%s192 + $0x140] sm:$0xff]
                %235 = vst [vmem:[%s193 + $0xa0] sm:$0xff] %v234
                %v236 = vld [vmem:[%s192 + $0x148] sm:$0xff]
                %237 = vst [vmem:[%s193 + $0xa8] sm:$0xff] %v236
                %v238 = vld [vmem:[%s192 + $0x160] sm:$0xff]
                %239 = vst [vmem:[%s193 + $0xb0] sm:$0xff] %v238
                %v240 = vld [vmem:[%s192 + $0x168] sm:$0xff]
                %241 = vst [vmem:[%s193 + $0xb8] sm:$0xff] %v240
                %v242 = vld [vmem:[%s192 + $0x180] sm:$0xff]
                %243 = vst [vmem:[%s193 + $0xc0] sm:$0xff] %v242
                %v244 = vld [vmem:[%s192 + $0x188] sm:$0xff]
                %245 = vst [vmem:[%s193 + $0xc8] sm:$0xff] %v244
                %v246 = vld [vmem:[%s192 + $0x1a0] sm:$0xff]
                %247 = vst [vmem:[%s193 + $0xd0] sm:$0xff] %v246
                %v248 = vld [vmem:[%s192 + $0x1a8] sm:$0xff]
                %249 = vst [vmem:[%s193 + $0xd8] sm:$0xff] %v248
                %v250 = vld [vmem:[%s192 + $0x1c0] sm:$0xff]
                %251 = vst [vmem:[%s193 + $0xe0] sm:$0xff] %v250
                %v252 = vld [vmem:[%s192 + $0x1c8] sm:$0xff]
                %253 = vst [vmem:[%s193 + $0xe8] sm:$0xff] %v252
                %v254 = vld [vmem:[%s192 + $0x1e0] sm:$0xff]
                %255 = vst [vmem:[%s193 + $0xf0] sm:$0xff] %v254
                %v256 = vld [vmem:[%s192 + $0x1e8] sm:$0xff]
                %257 = vst [vmem:[%s193 + $0xf8] sm:$0xff] %v256
              $region37: #{jvp__.125} parent=31 // loop_footer
                %s191 = sadd.s32 1, %s187
              $region38: #{jvp__.125} parent=31 // loop_footer_branch
                %186 = sbr.rel target = $region34
              $region39: #{jvp__.125} parent=31 // loop_exit
                _
            $region32: #{jvp__.125} parent=27 // pred_fallthru
              _
            // Predicated region
            $region40: #{jvp__.125} parent=27 // pred_check
              _
            $region41: #{jvp__.125} parent=27 // pred_check_branch
              %259 = sbr.rel target = $region43
            $region42: #{jvp__.125} parent=27 // pred_region
              _
            $region43: #{jvp__.125} parent=27 // pred_fallthru
              _
          $region28: #{jvp__.125} parent=23 // pred_fallthru
            _
          %260 = vnop
        $region24: #{jvp__.125} parent=19 // pred_fallthru
          _
        // Predicated region
        $region44: #{jvp__.125} parent=19 // pred_check
          %p261 = pneg %p104
        $region45: #{jvp__.125} parent=19 // pred_check_branch
          %263 = sbr.rel (%p261) target = $region47
        $region46: #{jvp__.125} parent=19 // pred_region
          %s264 = smul.u32 4, %s17
          %p265 = scmp.lt.s32.totalorder %s264, 7
          %s266 = scalar_select %p265, %s264, 7
          %s267 = scalar_lea.vmem %s2, %s266
          %s268 = smul.u32 4, %s17
        $region47: #{jvp__.125} parent=19 // pred_fallthru
          _
      $region20: #{jvp__.125} parent=5 // pred_fallthru
        _
      %p269 = scmp.le.s32.totalorder 1, %s9
      %p270 = scmp.lt.s32.totalorder %s9, 3
      %p271 = pnand %p269, %p270
      %p272 = pneg %p271
      // Predicated region
      $region48: #{jvp__.125} parent=5 // pred_check
        _
      $region49: #{jvp__.125} parent=5 // pred_check_branch
        %274 = sbr.rel (%p271) target = $region51
      $region50: #{jvp__.125} parent=5 // pred_region
        %s275 = ssub.s32 %s9, 1
        %s276 = sand.u32 %s71, 1
        %s277 = sand.u32 %s71, 1
        %s278 = smul.addr %s277, 256
        %s279 = scalar_lea.vmem [#allocation3], %s278
        // Predicated region
        $region52: #{jvp__.125} parent=50 // pred_check
          %p280 = pneg %p84
        $region53: #{jvp__.125} parent=50 // pred_check_branch
          %282 = sbr.rel (%p280) target = $region55
        $region54: #{jvp__.125} parent=50 // pred_region
          _
        $region55: #{jvp__.125} parent=50 // pred_fallthru
          _
        %s283 = smul.u32 9, %s19
        %p284 = scmp.lt.s32.totalorder %s283, 8
        %s285 = scalar_select %p284, %s283, 8
        %p286 = scmp.lt.s32.totalorder %s21, 0
        %s287 = scalar_select %p286, %s21, 0
        %s288 = sadd.s32 %s287, %s285
        %s289 = smul.addr %s288, 4
        %s290 = scalar_lea.vmem %s0, %s289
        %p291 = pneg %p56
        %p292 = pneg %p53
        %s293 = sand.u32 %s71, 1
        %s294 = sand.u32 %s71, 1
        %s295 = smul.addr %s294, 256
        %s296 = scalar_lea.vmem [#allocation3], %s295
        %p297 = pneg %p84
        %p298 = pneg %p81
        %s299 = smul.u32 4, %s20
        %p300 = scmp.lt.s32.totalorder %s299, 7
        %s301 = scalar_select %p300, %s299, 7
        %s302 = scalar_lea.vmem %s2, %s301
        %p303 = pneg %p110
        %p304 = pneg %p107
        %p305 = pneg %p138
        %p306 = pneg %p135
        %s307 = sand.u32 %s125, 1
        %s308 = sand.u32 %s125, 1
        %s309 = smul.addr %s308, 144
        %s310 = scalar_lea.vmem [#allocation4], %s309
        %s311 = smul.u32 9, %s19
        %p312 = scmp.lt.s32.totalorder %s311, 8
        %s313 = scalar_select %p312, %s311, 8
        %p314 = scmp.lt.s32.totalorder %s21, 0
        %s315 = scalar_select %p314, %s21, 0
        %s316 = sadd.s32 %s315, %s313
        %s317 = smul.addr %s316, 4
        %s318 = scalar_lea.vmem %s0, %s317
        %s319 = smul.u32 9, %s19
        %s320 = smul.u32 16, %s21
        %s321 = smul.u32 4, %s20
        %s322 = smul.u32 4, %s20
        %p323 = scmp.lt.s32.totalorder %s322, 7
        %s324 = scalar_select %p323, %s322, 7
        %s325 = scalar_lea.vmem %s2, %s324
        %s326 = smul.u32 4, %s20
        %s327 = smul.u32 9, %s19
        %s328 = smul.u32 4, %s20
        %p329 = scmp.eq.s32.totalorder %s21, 0
        // Predicated region
        $region56: #{jvp__.125} parent=50 // pred_check
          %p330 = pneg %p329
        $region57: #{jvp__.125} parent=50 // pred_check_branch
          %332 = sbr.rel (%p330) target = $region59
        $region58: #{jvp__.125} parent=50 // pred_region
          %333 = vst [vmem:[#allocation2] sm:$0xff] 0.0
          %334 = vst [vmem:[#allocation2 + $0x8] sm:$0xff] 0.0
          %335 = vst [vmem:[#allocation2 + $0x10] sm:$0xff] 0.0
          %336 = vst [vmem:[#allocation2 + $0x18] sm:$0xff] 0.0
          %337 = vst [vmem:[#allocation2 + $0x20] sm:$0xff] 0.0
          %338 = vst [vmem:[#allocation2 + $0x28] sm:$0xff] 0.0
          %339 = vst [vmem:[#allocation2 + $0x30] sm:$0xff] 0.0
          %340 = vst [vmem:[#allocation2 + $0x38] sm:$0xff] 0.0
          %341 = vst [vmem:[#allocation2 + $0x40] sm:$0xff] 0.0
          %342 = vst [vmem:[#allocation2 + $0x48] sm:$0xff] 0.0
          %343 = vst [vmem:[#allocation2 + $0x50] sm:$0xff] 0.0
          %344 = vst [vmem:[#allocation2 + $0x58] sm:$0xff] 0.0
          %345 = vst [vmem:[#allocation2 + $0x60] sm:$0xff] 0.0
          %346 = vst [vmem:[#allocation2 + $0x68] sm:$0xff] 0.0
          %347 = vst [vmem:[#allocation2 + $0x70] sm:$0xff] 0.0
          %348 = vst [vmem:[#allocation2 + $0x78] sm:$0xff] 0.0
          %349 = vst [vmem:[#allocation2 + $0x80] sm:$0xff] 0.0
          %350 = vst [vmem:[#allocation2 + $0x88] sm:$0xff] 0.0
          %351 = vst [vmem:[#allocation2 + $0x90] sm:$0xff] 0.0
          %352 = vst [vmem:[#allocation2 + $0x98] sm:$0xff] 0.0
          %353 = vst [vmem:[#allocation2 + $0xa0] sm:$0xff] 0.0
          %354 = vst [vmem:[#allocation2 + $0xa8] sm:$0xff] 0.0
          %355 = vst [vmem:[#allocation2 + $0xb0] sm:$0xff] 0.0
          %356 = vst [vmem:[#allocation2 + $0xb8] sm:$0xff] 0.0
          %357 = vst [vmem:[#allocation2 + $0xc0] sm:$0xff] 0.0
          %358 = vst [vmem:[#allocation2 + $0xc8] sm:$0xff] 0.0
          %359 = vst [vmem:[#allocation2 + $0xd0] sm:$0xff] 0.0
          %360 = vst [vmem:[#allocation2 + $0xd8] sm:$0xff] 0.0
          %361 = vst [vmem:[#allocation2 + $0xe0] sm:$0xff] 0.0
          %362 = vst [vmem:[#allocation2 + $0xe8] sm:$0xff] 0.0
          %363 = vst [vmem:[#allocation2 + $0xf0] sm:$0xff] 0.0
          %364 = vst [vmem:[#allocation2 + $0xf8] sm:$0xff] 0.0
          %365 = vst [vmem:[#allocation2 + $0x100] sm:$0xff] 0.0
          %366 = vst [vmem:[#allocation2 + $0x108] sm:$0xff] 0.0
          %367 = vst [vmem:[#allocation2 + $0x110] sm:$0xff] 0.0
          %368 = vst [vmem:[#allocation2 + $0x118] sm:$0xff] 0.0
        $region59: #{jvp__.125} parent=50 // pred_fallthru
          _
        %v369 = vld [vmem:[#allocation2] sm:$0xff]
        %v370 = vld [vmem:[#allocation2 + $0x8] sm:$0xff]
        %v371 = vld [vmem:[#allocation2 + $0x10] sm:$0xff]
        %v372 = vld [vmem:[#allocation2 + $0x18] sm:$0xff]
        %v373 = vld [vmem:[#allocation2 + $0x20] sm:$0xff]
        %v374 = vld [vmem:[#allocation2 + $0x28] sm:$0xff]
        %v375 = vld [vmem:[#allocation2 + $0x30] sm:$0xff]
        %v376 = vld [vmem:[#allocation2 + $0x38] sm:$0xff]
        %v377 = vld [vmem:[#allocation2 + $0x40] sm:$0xff]
        %v378 = vld [vmem:[#allocation2 + $0x48] sm:$0xff]
        %v379 = vld [vmem:[#allocation2 + $0x50] sm:$0xff]
        %v380 = vld [vmem:[#allocation2 + $0x58] sm:$0xff]
        %v381 = vld [vmem:[#allocation2 + $0x60] sm:$0xff]
        %v382 = vld [vmem:[#allocation2 + $0x68] sm:$0xff]
        %v383 = vld [vmem:[#allocation2 + $0x70] sm:$0xff]
        %v384 = vld [vmem:[#allocation2 + $0x78] sm:$0xff]
        %v385 = vld [vmem:[#allocation2 + $0x80] sm:$0xff]
        %v386 = vld [vmem:[#allocation2 + $0x88] sm:$0xff]
        %v387 = vld [vmem:[#allocation2 + $0x90] sm:$0xff]
        %v388 = vld [vmem:[#allocation2 + $0x98] sm:$0xff]
        %v389 = vld [vmem:[#allocation2 + $0xa0] sm:$0xff]
        %v390 = vld [vmem:[#allocation2 + $0xa8] sm:$0xff]
        %v391 = vld [vmem:[#allocation2 + $0xb0] sm:$0xff]
        %v392 = vld [vmem:[#allocation2 + $0xb8] sm:$0xff]
        %v393 = vld [vmem:[#allocation2 + $0xc0] sm:$0xff]
        %v394 = vld [vmem:[#allocation2 + $0xc8] sm:$0xff]
        %v395 = vld [vmem:[#allocation2 + $0xd0] sm:$0xff]
        %v396 = vld [vmem:[#allocation2 + $0xd8] sm:$0xff]
        %v397 = vld [vmem:[#allocation2 + $0xe0] sm:$0xff]
        %v398 = vld [vmem:[#allocation2 + $0xe8] sm:$0xff]
        %v399 = vld [vmem:[#allocation2 + $0xf0] sm:$0xff]
        %v400 = vld [vmem:[#allocation2 + $0xf8] sm:$0xff]
        %v401 = vld [vmem:[#allocation2 + $0x100] sm:$0xff]
        %v402 = vld [vmem:[#allocation2 + $0x108] sm:$0xff]
        %v403 = vld [vmem:[#allocation2 + $0x110] sm:$0xff]
        %v404 = vld [vmem:[#allocation2 + $0x118] sm:$0xff]
        %v405 = vld [vmem:[%s318] sm:$0xf]
        %v406 = vld [vmem:[%s318 + $0x4] sm:$0xf]
        %v407 = vld [vmem:[%s318 + $0x8] sm:$0xf]
        %v408 = vld [vmem:[%s318 + $0xc] sm:$0xf]
        %v409 = vld [vmem:[%s318 + $0x10] sm:$0xf]
        %v410 = vld [vmem:[%s318 + $0x14] sm:$0xf]
        %v411 = vld [vmem:[%s318 + $0x18] sm:$0xf]
        %v412 = vld [vmem:[%s318 + $0x1c] sm:$0xf]
        %v413 = vld [vmem:[%s318 + $0x20] sm:$0xf]
        %v414 = vld [vmem:[%s279] sm:$0xff]
        %v415 = vld [vmem:[%s279 + $0x8] sm:$0xff]
        %v416 = vld [vmem:[%s279 + $0x10] sm:$0xff]
        %v417 = vld [vmem:[%s279 + $0x18] sm:$0xff]
        %v418 = vld [vmem:[%s279 + $0x20] sm:$0xff]
        %v419 = vld [vmem:[%s279 + $0x28] sm:$0xff]
        %v420 = vld [vmem:[%s279 + $0x30] sm:$0xff]
        %v421 = vld [vmem:[%s279 + $0x38] sm:$0xff]
        %v422 = vld [vmem:[%s279 + $0x40] sm:$0xff]
        %v423 = vld [vmem:[%s279 + $0x48] sm:$0xff]
        %v424 = vld [vmem:[%s279 + $0x50] sm:$0xff]
        %v425 = vld [vmem:[%s279 + $0x58] sm:$0xff]
        %v426 = vld [vmem:[%s279 + $0x60] sm:$0xff]
        %v427 = vld [vmem:[%s279 + $0x68] sm:$0xff]
        %v428 = vld [vmem:[%s279 + $0x70] sm:$0xff]
        %v429 = vld [vmem:[%s279 + $0x78] sm:$0xff]
        %v430 = vld [vmem:[%s279 + $0x80] sm:$0xff]
        %v431 = vld [vmem:[%s279 + $0x88] sm:$0xff]
        %v432 = vld [vmem:[%s279 + $0x90] sm:$0xff]
        %v433 = vld [vmem:[%s279 + $0x98] sm:$0xff]
        %v434 = vld [vmem:[%s279 + $0xa0] sm:$0xff]
        %v435 = vld [vmem:[%s279 + $0xa8] sm:$0xff]
        %v436 = vld [vmem:[%s279 + $0xb0] sm:$0xff]
        %v437 = vld [vmem:[%s279 + $0xb8] sm:$0xff]
        %v438 = vld [vmem:[%s279 + $0xc0] sm:$0xff]
        %v439 = vld [vmem:[%s279 + $0xc8] sm:$0xff]
        %v440 = vld [vmem:[%s279 + $0xd0] sm:$0xff]
        %v441 = vld [vmem:[%s279 + $0xd8] sm:$0xff]
        %v442 = vld [vmem:[%s279 + $0xe0] sm:$0xff]
        %v443 = vld [vmem:[%s279 + $0xe8] sm:$0xff]
        %v444 = vld [vmem:[%s279 + $0xf0] sm:$0xff]
        %v445 = vld [vmem:[%s279 + $0xf8] sm:$0xff]
        %v455 = vunpack.c.l.b16 %v405
        %v456 = vunpack.c.l.b16 %v406
        %v457 = vunpack.c.l.b16 %v407
        %v458 = vunpack.c.l.b16 %v408
        %v459 = vunpack.c.l.b16 %v409
        %v460 = vunpack.c.l.b16 %v410
        %v461 = vunpack.c.l.b16 %v411
        %v462 = vunpack.c.l.b16 %v412
        %v463 = vunpack.c.l.b16 %v413
        %v464 = vpack.c.b16 %v456, %v455
        %v465 = vpack.c.b16 %v458, %v457
        %v466 = vpack.c.b16 %v460, %v459
        %v467 = vpack.c.b16 %v462, %v461
        %v468 = vpack.c.b16 %v463, %v463
        %v506 = vunpack.c.l.b16 %v414
        %v507 = vunpack.c.h.b16 %v414
        %v508 = vunpack.c.l.b16 %v415
        %v509 = vunpack.c.h.b16 %v415
        %v510 = vunpack.c.l.b16 %v416
        %v511 = vunpack.c.h.b16 %v416
        %v512 = vunpack.c.l.b16 %v417
        %v513 = vunpack.c.h.b16 %v417
        %v514 = vunpack.c.l.b16 %v418
        %v515 = vunpack.c.h.b16 %v418
        %v516 = vunpack.c.l.b16 %v419
        %v517 = vunpack.c.h.b16 %v419
        %v518 = vunpack.c.l.b16 %v420
        %v519 = vunpack.c.h.b16 %v420
        %v520 = vunpack.c.l.b16 %v421
        %v521 = vunpack.c.h.b16 %v421
        %v522 = vunpack.c.l.b16 %v422
        %v523 = vunpack.c.h.b16 %v422
        %v524 = vunpack.c.l.b16 %v423
        %v525 = vunpack.c.h.b16 %v423
        %v526 = vunpack.c.l.b16 %v424
        %v527 = vunpack.c.h.b16 %v424
        %v528 = vunpack.c.l.b16 %v425
        %v529 = vunpack.c.h.b16 %v425
        %v530 = vunpack.c.l.b16 %v426
        %v531 = vunpack.c.h.b16 %v426
        %v532 = vunpack.c.l.b16 %v427
        %v533 = vunpack.c.h.b16 %v427
        %v534 = vunpack.c.l.b16 %v428
        %v535 = vunpack.c.h.b16 %v428
        %v536 = vunpack.c.l.b16 %v429
        %v537 = vunpack.c.h.b16 %v429
        %v538 = vunpack.c.l.b16 %v430
        %v539 = vunpack.c.h.b16 %v430
        %v540 = vunpack.c.l.b16 %v431
        %v541 = vunpack.c.h.b16 %v431
        %v542 = vunpack.c.l.b16 %v432
        %v543 = vunpack.c.h.b16 %v432
        %v544 = vunpack.c.l.b16 %v433
        %v545 = vunpack.c.h.b16 %v433
        %v546 = vunpack.c.l.b16 %v434
        %v547 = vunpack.c.h.b16 %v434
        %v548 = vunpack.c.l.b16 %v435
        %v549 = vunpack.c.h.b16 %v435
        %v550 = vunpack.c.l.b16 %v436
        %v551 = vunpack.c.h.b16 %v436
        %v552 = vunpack.c.l.b16 %v437
        %v553 = vunpack.c.h.b16 %v437
        %v554 = vunpack.c.l.b16 %v438
        %v555 = vunpack.c.h.b16 %v438
        %v556 = vunpack.c.l.b16 %v439
        %v557 = vunpack.c.h.b16 %v439
        %v558 = vunpack.c.l.b16 %v440
        %v559 = vunpack.c.h.b16 %v440
        %v560 = vunpack.c.l.b16 %v441
        %v561 = vunpack.c.h.b16 %v441
        %v562 = vunpack.c.l.b16 %v442
        %v563 = vunpack.c.h.b16 %v442
        %v564 = vunpack.c.l.b16 %v443
        %v565 = vunpack.c.h.b16 %v443
        %v566 = vunpack.c.l.b16 %v444
        %v567 = vunpack.c.h.b16 %v444
        %v568 = vunpack.c.l.b16 %v445
        %v569 = vunpack.c.h.b16 %v445
        %v570 = vpack.c.b16 %v510, %v506
        %v571 = vpack.c.b16 %v511, %v507
        %v572 = vpack.c.b16 %v512, %v508
        %v573 = vpack.c.b16 %v513, %v509
        %v574 = vpack.c.b16 %v518, %v514
        %v575 = vpack.c.b16 %v519, %v515
        %v576 = vpack.c.b16 %v520, %v516
        %v577 = vpack.c.b16 %v521, %v517
        %v578 = vpack.c.b16 %v526, %v522
        %v579 = vpack.c.b16 %v527, %v523
        %v580 = vpack.c.b16 %v528, %v524
        %v581 = vpack.c.b16 %v529, %v525
        %v582 = vpack.c.b16 %v534, %v530
        %v583 = vpack.c.b16 %v535, %v531
        %v584 = vpack.c.b16 %v536, %v532
        %v585 = vpack.c.b16 %v537, %v533
        %v586 = vpack.c.b16 %v542, %v538
        %v587 = vpack.c.b16 %v543, %v539
        %v588 = vpack.c.b16 %v544, %v540
        %v589 = vpack.c.b16 %v545, %v541
        %v590 = vpack.c.b16 %v550, %v546
        %v591 = vpack.c.b16 %v551, %v547
        %v592 = vpack.c.b16 %v552, %v548
        %v593 = vpack.c.b16 %v553, %v549
        %v594 = vpack.c.b16 %v558, %v554
        %v595 = vpack.c.b16 %v559, %v555
        %v596 = vpack.c.b16 %v560, %v556
        %v597 = vpack.c.b16 %v561, %v557
        %v598 = vpack.c.b16 %v566, %v562
        %v599 = vpack.c.b16 %v567, %v563
        %v600 = vpack.c.b16 %v568, %v564
        %v601 = vpack.c.b16 %v569, %v565
        %634 = vmatpush.bf16.msra.mxu0 %v598
        %635 = vmatpush.bf16.msra.mxu0 %v594
        %636 = vmatpush.bf16.msra.mxu0 %v590
        %637 = vmatpush.bf16.msra.mxu0 %v586
        %638 = vmatpush.bf16.msra.mxu0 %v582
        %639 = vmatpush.bf16.msra.mxu0 %v578
        %640 = vmatpush.bf16.msra.mxu0 %v574
        %641 = vmatpush.bf16.msra.mxu0 %v570
        %642 = vmatmul.bf16.gmra.mxu0 %v464
        %v643 = vpop.f32.mrf.mxu0
        %v644 = vadd.f32 0.0, %v643
        %v645 = vpop.f32.mrf.mxu0
        %v646 = vadd.f32 0.0, %v645
        %647 = vmatmul.bf16.gmra.mxu0 %v465
        %v648 = vpop.f32.mrf.mxu0
        %v649 = vadd.f32 0.0, %v648
        %v650 = vpop.f32.mrf.mxu0
        %v651 = vadd.f32 0.0, %v650
        %652 = vmatmul.bf16.gmra.mxu0 %v466
        %v653 = vpop.f32.mrf.mxu0
        %v654 = vadd.f32 0.0, %v653
        %v655 = vpop.f32.mrf.mxu0
        %v656 = vadd.f32 0.0, %v655
        %657 = vmatmul.bf16.gmra.mxu0 %v467
        %v658 = vpop.f32.mrf.mxu0
        %v659 = vadd.f32 0.0, %v658
        %v660 = vpop.f32.mrf.mxu0
        %v661 = vadd.f32 0.0, %v660
        %662 = vmatmul.bf16.gmra.mxu0 %v468
        %v663 = vpop.f32.mrf.mxu0
        %v664 = vadd.f32 0.0, %v663
        %v665 = vpop.f32.mrf.mxu0
        %666 = vdwg.mxu0
        %667 = vmatpush.bf16.msra.mxu0 %v599
        %668 = vmatpush.bf16.msra.mxu0 %v595
        %669 = vmatpush.bf16.msra.mxu0 %v591
        %670 = vmatpush.bf16.msra.mxu0 %v587
        %671 = vmatpush.bf16.msra.mxu0 %v583
        %672 = vmatpush.bf16.msra.mxu0 %v579
        %673 = vmatpush.bf16.msra.mxu0 %v575
        %674 = vmatpush.bf16.msra.mxu0 %v571
        %675 = vmatmul.bf16.gmra.mxu0 %v464
        %v676 = vpop.f32.mrf.mxu0
        %v677 = vadd.f32 0.0, %v676
        %v678 = vpop.f32.mrf.mxu0
        %v679 = vadd.f32 0.0, %v678
        %680 = vmatmul.bf16.gmra.mxu0 %v465
        %v681 = vpop.f32.mrf.mxu0
        %v682 = vadd.f32 0.0, %v681
        %v683 = vpop.f32.mrf.mxu0
        %v684 = vadd.f32 0.0, %v683
        %685 = vmatmul.bf16.gmra.mxu0 %v466
        %v686 = vpop.f32.mrf.mxu0
        %v687 = vadd.f32 0.0, %v686
        %v688 = vpop.f32.mrf.mxu0
        %v689 = vadd.f32 0.0, %v688
        %690 = vmatmul.bf16.gmra.mxu0 %v467
        %v691 = vpop.f32.mrf.mxu0
        %v692 = vadd.f32 0.0, %v691
        %v693 = vpop.f32.mrf.mxu0
        %v694 = vadd.f32 0.0, %v693
        %695 = vmatmul.bf16.gmra.mxu0 %v468
        %v696 = vpop.f32.mrf.mxu0
        %v697 = vadd.f32 0.0, %v696
        %v698 = vpop.f32.mrf.mxu0
        %699 = vdwg.mxu0
        %700 = vmatpush.bf16.msra.mxu0 %v600
        %701 = vmatpush.bf16.msra.mxu0 %v596
        %702 = vmatpush.bf16.msra.mxu0 %v592
        %703 = vmatpush.bf16.msra.mxu0 %v588
        %704 = vmatpush.bf16.msra.mxu0 %v584
        %705 = vmatpush.bf16.msra.mxu0 %v580
        %706 = vmatpush.bf16.msra.mxu0 %v576
        %707 = vmatpush.bf16.msra.mxu0 %v572
        %708 = vmatmul.bf16.gmra.mxu0 %v464
        %v709 = vpop.f32.mrf.mxu0
        %v710 = vadd.f32 0.0, %v709
        %v711 = vpop.f32.mrf.mxu0
        %v712 = vadd.f32 0.0, %v711
        %713 = vmatmul.bf16.gmra.mxu0 %v465
        %v714 = vpop.f32.mrf.mxu0
        %v715 = vadd.f32 0.0, %v714
        %v716 = vpop.f32.mrf.mxu0
        %v717 = vadd.f32 0.0, %v716
        %718 = vmatmul.bf16.gmra.mxu0 %v466
        %v719 = vpop.f32.mrf.mxu0
        %v720 = vadd.f32 0.0, %v719
        %v721 = vpop.f32.mrf.mxu0
        %v722 = vadd.f32 0.0, %v721
        %723 = vmatmul.bf16.gmra.mxu0 %v467
        %v724 = vpop.f32.mrf.mxu0
        %v725 = vadd.f32 0.0, %v724
        %v726 = vpop.f32.mrf.mxu0
        %v727 = vadd.f32 0.0, %v726
        %728 = vmatmul.bf16.gmra.mxu0 %v468
        %v729 = vpop.f32.mrf.mxu0
        %v730 = vadd.f32 0.0, %v729
        %v731 = vpop.f32.mrf.mxu0
        %732 = vdwg.mxu0
        %733 = vmatpush.bf16.msra.mxu0 %v601
        %734 = vmatpush.bf16.msra.mxu0 %v597
        %735 = vmatpush.bf16.msra.mxu0 %v593
        %736 = vmatpush.bf16.msra.mxu0 %v589
        %737 = vmatpush.bf16.msra.mxu0 %v585
        %738 = vmatpush.bf16.msra.mxu0 %v581
        %739 = vmatpush.bf16.msra.mxu0 %v577
        %740 = vmatpush.bf16.msra.mxu0 %v573
        %741 = vmatmul.bf16.gmra.mxu0 %v464
        %v742 = vpop.f32.mrf.mxu0
        %v743 = vadd.f32 0.0, %v742
        %v744 = vpop.f32.mrf.mxu0
        %v745 = vadd.f32 0.0, %v744
        %746 = vmatmul.bf16.gmra.mxu0 %v465
        %v747 = vpop.f32.mrf.mxu0
        %v748 = vadd.f32 0.0, %v747
        %v749 = vpop.f32.mrf.mxu0
        %v750 = vadd.f32 0.0, %v749
        %751 = vmatmul.bf16.gmra.mxu0 %v466
        %v752 = vpop.f32.mrf.mxu0
        %v753 = vadd.f32 0.0, %v752
        %v754 = vpop.f32.mrf.mxu0
        %v755 = vadd.f32 0.0, %v754
        %756 = vmatmul.bf16.gmra.mxu0 %v467
        %v757 = vpop.f32.mrf.mxu0
        %v758 = vadd.f32 0.0, %v757
        %v759 = vpop.f32.mrf.mxu0
        %v760 = vadd.f32 0.0, %v759
        %761 = vmatmul.bf16.gmra.mxu0 %v468
        %v762 = vpop.f32.mrf.mxu0
        %v763 = vadd.f32 0.0, %v762
        %v764 = vpop.f32.mrf.mxu0
        %765 = vdwg.mxu0
        %v766 = vadd.f32 %v369, %v644
        %v767 = vadd.f32 %v370, %v677
        %v768 = vadd.f32 %v371, %v710
        %v769 = vadd.f32 %v372, %v743
        %v770 = vadd.f32 %v373, %v646
        %v771 = vadd.f32 %v374, %v679
        %v772 = vadd.f32 %v375, %v712
        %v773 = vadd.f32 %v376, %v745
        %v774 = vadd.f32 %v377, %v649
        %v775 = vadd.f32 %v378, %v682
        %v776 = vadd.f32 %v379, %v715
        %v777 = vadd.f32 %v380, %v748
        %v778 = vadd.f32 %v381, %v651
        %v779 = vadd.f32 %v382, %v684
        %v780 = vadd.f32 %v383, %v717
        %v781 = vadd.f32 %v384, %v750
        %v782 = vadd.f32 %v385, %v654
        %v783 = vadd.f32 %v386, %v687
        %v784 = vadd.f32 %v387, %v720
        %v785 = vadd.f32 %v388, %v753
        %v786 = vadd.f32 %v389, %v656
        %v787 = vadd.f32 %v390, %v689
        %v788 = vadd.f32 %v391, %v722
        %v789 = vadd.f32 %v392, %v755
        %v790 = vadd.f32 %v393, %v659
        %v791 = vadd.f32 %v394, %v692
        %v792 = vadd.f32 %v395, %v725
        %v793 = vadd.f32 %v396, %v758
        %v794 = vadd.f32 %v397, %v661
        %v795 = vadd.f32 %v398, %v694
        %v796 = vadd.f32 %v399, %v727
        %v797 = vadd.f32 %v400, %v760
        %v798 = vadd.f32 %v401, %v664
        %v799 = vadd.f32 %v402, %v697
        %v800 = vadd.f32 %v403, %v730
        %v801 = vadd.f32 %v404, %v763
        %802 = vst [vmem:[#allocation2] sm:$0xff] %v766
        %803 = vst [vmem:[#allocation2 + $0x8] sm:$0xff] %v767
        %804 = vst [vmem:[#allocation2 + $0x10] sm:$0xff] %v768
        %805 = vst [vmem:[#allocation2 + $0x18] sm:$0xff] %v769
        %806 = vst [vmem:[#allocation2 + $0x20] sm:$0xff] %v770
        %807 = vst [vmem:[#allocation2 + $0x28] sm:$0xff] %v771
        %808 = vst [vmem:[#allocation2 + $0x30] sm:$0xff] %v772
        %809 = vst [vmem:[#allocation2 + $0x38] sm:$0xff] %v773
        %810 = vst [vmem:[#allocation2 + $0x40] sm:$0xff] %v774
        %811 = vst [vmem:[#allocation2 + $0x48] sm:$0xff] %v775
        %812 = vst [vmem:[#allocation2 + $0x50] sm:$0xff] %v776
        %813 = vst [vmem:[#allocation2 + $0x58] sm:$0xff] %v777
        %814 = vst [vmem:[#allocation2 + $0x60] sm:$0xff] %v778
        %815 = vst [vmem:[#allocation2 + $0x68] sm:$0xff] %v779
        %816 = vst [vmem:[#allocation2 + $0x70] sm:$0xff] %v780
        %817 = vst [vmem:[#allocation2 + $0x78] sm:$0xff] %v781
        %818 = vst [vmem:[#allocation2 + $0x80] sm:$0xff] %v782
        %819 = vst [vmem:[#allocation2 + $0x88] sm:$0xff] %v783
        %820 = vst [vmem:[#allocation2 + $0x90] sm:$0xff] %v784
        %821 = vst [vmem:[#allocation2 + $0x98] sm:$0xff] %v785
        %822 = vst [vmem:[#allocation2 + $0xa0] sm:$0xff] %v786
        %823 = vst [vmem:[#allocation2 + $0xa8] sm:$0xff] %v787
        %824 = vst [vmem:[#allocation2 + $0xb0] sm:$0xff] %v788
        %825 = vst [vmem:[#allocation2 + $0xb8] sm:$0xff] %v789
        %826 = vst [vmem:[#allocation2 + $0xc0] sm:$0xff] %v790
        %827 = vst [vmem:[#allocation2 + $0xc8] sm:$0xff] %v791
        %828 = vst [vmem:[#allocation2 + $0xd0] sm:$0xff] %v792
        %829 = vst [vmem:[#allocation2 + $0xd8] sm:$0xff] %v793
        %830 = vst [vmem:[#allocation2 + $0xe0] sm:$0xff] %v794
        %831 = vst [vmem:[#allocation2 + $0xe8] sm:$0xff] %v795
        %832 = vst [vmem:[#allocation2 + $0xf0] sm:$0xff] %v796
        %833 = vst [vmem:[#allocation2 + $0xf8] sm:$0xff] %v797
        %834 = vst [vmem:[#allocation2 + $0x100] sm:$0xff] %v798
        %835 = vst [vmem:[#allocation2 + $0x108] sm:$0xff] %v799
        %836 = vst [vmem:[#allocation2 + $0x110] sm:$0xff] %v800
        %837 = vst [vmem:[#allocation2 + $0x118] sm:$0xff] %v801
        // Predicated region
        $region60: #{jvp__.125} parent=50 // pred_check
          %p838 = pneg %p329
        $region61: #{jvp__.125} parent=50 // pred_check_branch
          %840 = sbr.rel (%p838) target = $region63
        $region62: #{jvp__.125} parent=50 // pred_region
          %v841 = vld [vmem:[#allocation2] sm:$0xff]
          %v842 = vld [vmem:[#allocation2 + $0x8] sm:$0xff]
          %v843 = vld [vmem:[#allocation2 + $0x10] sm:$0xff]
          %v844 = vld [vmem:[#allocation2 + $0x18] sm:$0xff]
          %v845 = vld [vmem:[#allocation2 + $0x20] sm:$0xff]
          %v846 = vld [vmem:[#allocation2 + $0x28] sm:$0xff]
          %v847 = vld [vmem:[#allocation2 + $0x30] sm:$0xff]
          %v848 = vld [vmem:[#allocation2 + $0x38] sm:$0xff]
          %v849 = vld [vmem:[#allocation2 + $0x40] sm:$0xff]
          %v850 = vld [vmem:[#allocation2 + $0x48] sm:$0xff]
          %v851 = vld [vmem:[#allocation2 + $0x50] sm:$0xff]
          %v852 = vld [vmem:[#allocation2 + $0x58] sm:$0xff]
          %v853 = vld [vmem:[#allocation2 + $0x60] sm:$0xff]
          %v854 = vld [vmem:[#allocation2 + $0x68] sm:$0xff]
          %v855 = vld [vmem:[#allocation2 + $0x70] sm:$0xff]
          %v856 = vld [vmem:[#allocation2 + $0x78] sm:$0xff]
          %v857 = vld [vmem:[#allocation2 + $0x80] sm:$0xff]
          %v858 = vld [vmem:[#allocation2 + $0x88] sm:$0xff]
          %v859 = vld [vmem:[#allocation2 + $0x90] sm:$0xff]
          %v860 = vld [vmem:[#allocation2 + $0x98] sm:$0xff]
          %v861 = vld [vmem:[#allocation2 + $0xa0] sm:$0xff]
          %v862 = vld [vmem:[#allocation2 + $0xa8] sm:$0xff]
          %v863 = vld [vmem:[#allocation2 + $0xb0] sm:$0xff]
          %v864 = vld [vmem:[#allocation2 + $0xb8] sm:$0xff]
          %v865 = vld [vmem:[#allocation2 + $0xc0] sm:$0xff]
          %v866 = vld [vmem:[#allocation2 + $0xc8] sm:$0xff]
          %v867 = vld [vmem:[#allocation2 + $0xd0] sm:$0xff]
          %v868 = vld [vmem:[#allocation2 + $0xd8] sm:$0xff]
          %v869 = vld [vmem:[#allocation2 + $0xe0] sm:$0xff]
          %v870 = vld [vmem:[#allocation2 + $0xe8] sm:$0xff]
          %v871 = vld [vmem:[#allocation2 + $0xf0] sm:$0xff]
          %v872 = vld [vmem:[#allocation2 + $0xf8] sm:$0xff]
          %v873 = vld [vmem:[#allocation2 + $0x100] sm:$0xff]
          %v874 = vld [vmem:[#allocation2 + $0x108] sm:$0xff]
          %v875 = vld [vmem:[#allocation2 + $0x110] sm:$0xff]
          %v876 = vld [vmem:[#allocation2 + $0x118] sm:$0xff]
          %v877 = vld [vmem:[%s325] sm:$0xf]
          %v879 = vperm.slane %v877, 0
          %v880 = vperm.slane %v877, 1
          %v881 = vperm.slane %v877, 2
          %v882 = vperm.slane %v877, 3
          %v887 = vadd.f32 %v841, %v879
          %v888 = vadd.f32 %v842, %v880
          %v889 = vadd.f32 %v843, %v881
          %v890 = vadd.f32 %v844, %v882
          %v891 = vadd.f32 %v845, %v879
          %v892 = vadd.f32 %v846, %v880
          %v893 = vadd.f32 %v847, %v881
          %v894 = vadd.f32 %v848, %v882
          %v895 = vadd.f32 %v849, %v879
          %v896 = vadd.f32 %v850, %v880
          %v897 = vadd.f32 %v851, %v881
          %v898 = vadd.f32 %v852, %v882
          %v899 = vadd.f32 %v853, %v879
          %v900 = vadd.f32 %v854, %v880
          %v901 = vadd.f32 %v855, %v881
          %v902 = vadd.f32 %v856, %v882
          %v903 = vadd.f32 %v857, %v879
          %v904 = vadd.f32 %v858, %v880
          %v905 = vadd.f32 %v859, %v881
          %v906 = vadd.f32 %v860, %v882
          %v907 = vadd.f32 %v861, %v879
          %v908 = vadd.f32 %v862, %v880
          %v909 = vadd.f32 %v863, %v881
          %v910 = vadd.f32 %v864, %v882
          %v911 = vadd.f32 %v865, %v879
          %v912 = vadd.f32 %v866, %v880
          %v913 = vadd.f32 %v867, %v881
          %v914 = vadd.f32 %v868, %v882
          %v915 = vadd.f32 %v869, %v879
          %v916 = vadd.f32 %v870, %v880
          %v917 = vadd.f32 %v871, %v881
          %v918 = vadd.f32 %v872, %v882
          %v919 = vadd.f32 %v873, %v879
          %v920 = vadd.f32 %v874, %v880
          %v921 = vadd.f32 %v875, %v881
          %v922 = vadd.f32 %v876, %v882
          %v923 = vpack.c.bf16 %v888, %v887
          %v924 = vpack.c.bf16 %v890, %v889
          %v925 = vpack.c.bf16 %v892, %v891
          %v926 = vpack.c.bf16 %v894, %v893
          %v927 = vpack.c.bf16 %v896, %v895
          %v928 = vpack.c.bf16 %v898, %v897
          %v929 = vpack.c.bf16 %v900, %v899
          %v930 = vpack.c.bf16 %v902, %v901
          %v931 = vpack.c.bf16 %v904, %v903
          %v932 = vpack.c.bf16 %v906, %v905
          %v933 = vpack.c.bf16 %v908, %v907
          %v934 = vpack.c.bf16 %v910, %v909
          %v935 = vpack.c.bf16 %v912, %v911
          %v936 = vpack.c.bf16 %v914, %v913
          %v937 = vpack.c.bf16 %v916, %v915
          %v938 = vpack.c.bf16 %v918, %v917
          %v939 = vpack.c.bf16 %v920, %v919
          %v940 = vpack.c.bf16 %v922, %v921
          %941 = vst [vmem:[%s310] sm:$0xff] %v923
          %942 = vst [vmem:[%s310 + $0x8] sm:$0xff] %v924
          %943 = vst [vmem:[%s310 + $0x10] sm:$0xff] %v925
          %944 = vst [vmem:[%s310 + $0x18] sm:$0xff] %v926
          %945 = vst [vmem:[%s310 + $0x20] sm:$0xff] %v927
          %946 = vst [vmem:[%s310 + $0x28] sm:$0xff] %v928
          %947 = vst [vmem:[%s310 + $0x30] sm:$0xff] %v929
          %948 = vst [vmem:[%s310 + $0x38] sm:$0xff] %v930
          %949 = vst [vmem:[%s310 + $0x40] sm:$0xff] %v931
          %950 = vst [vmem:[%s310 + $0x48] sm:$0xff] %v932
          %951 = vst [vmem:[%s310 + $0x50] sm:$0xff] %v933
          %952 = vst [vmem:[%s310 + $0x58] sm:$0xff] %v934
          %953 = vst [vmem:[%s310 + $0x60] sm:$0xff] %v935
          %954 = vst [vmem:[%s310 + $0x68] sm:$0xff] %v936
          %955 = vst [vmem:[%s310 + $0x70] sm:$0xff] %v937
          %956 = vst [vmem:[%s310 + $0x78] sm:$0xff] %v938
          %957 = vst [vmem:[%s310 + $0x80] sm:$0xff] %v939
          %958 = vst [vmem:[%s310 + $0x88] sm:$0xff] %v940
        $region63: #{jvp__.125} parent=50 // pred_fallthru
          _
        %s959 = sand.u32 %s125, 1
        %s960 = sand.u32 %s125, 1
        %s961 = smul.addr %s960, 144
        %s962 = scalar_lea.vmem [#allocation4], %s961
        // Predicated region
        $region64: #{jvp__.125} parent=50 // pred_check
          %p963 = pneg %p135
        $region65: #{jvp__.125} parent=50 // pred_check_branch
          %965 = sbr.rel (%p963) target = $region67
        $region66: #{jvp__.125} parent=50 // pred_region
          %s966 = smul.u32 9, %s19
          %s967 = smul.u32 4, %s20
          %s968 = smul.addr %s966, 8
          %s969 = sadd.s32 %s967, %s968
          %s970 = smul.addr %s969, 4
          %s971 = scalar_lea.vmem %s3, %s970
          // Predicated region
          $region68: #{jvp__.125} parent=66 // pred_check
            _
          $region69: #{jvp__.125} parent=66 // pred_check_branch
            %973 = sbr.rel (0) target = $region71
          $region70: #{jvp__.125} parent=66 // pred_region
            // Predicated region
            $region72: #{jvp__.125} parent=70 // pred_check
              _
            $region73: #{jvp__.125} parent=70 // pred_check_branch
              %975 = sbr.rel (0) target = $region75
            $region74: #{jvp__.125} parent=70 // pred_region
              loop: start=0, step=1, limit=1
              $region76: #{jvp__.125} parent=74 // loop_pre_header
                _
              $region77: #{jvp__.125} parent=74 // loop_header
                %s977 = sphi 0, %s981
                %p978 = scmp.ge.s32.totalorder %s977, 1
                %s982 = sphi %s962, %s962
                %s983 = sphi %s971, %s971
              $region78: #{jvp__.125} parent=74 // loop_header_branch
                %980 = sbr.rel (%p978) target = $region82
              $region79: #{jvp__.125} parent=74 // loop_body
                %v984 = vld [vmem:[%s982] sm:$0xff]
                %985 = vst [vmem:[%s983] sm:$0xff] %v984
                %v986 = vld [vmem:[%s982 + $0x8] sm:$0xff]
                %987 = vst [vmem:[%s983 + $0x8] sm:$0xff] %v986
                %v988 = vld [vmem:[%s982 + $0x10] sm:$0xff]
                %989 = vst [vmem:[%s983 + $0x20] sm:$0xff] %v988
                %v990 = vld [vmem:[%s982 + $0x18] sm:$0xff]
                %991 = vst [vmem:[%s983 + $0x28] sm:$0xff] %v990
                %v992 = vld [vmem:[%s982 + $0x20] sm:$0xff]
                %993 = vst [vmem:[%s983 + $0x40] sm:$0xff] %v992
                %v994 = vld [vmem:[%s982 + $0x28] sm:$0xff]
                %995 = vst [vmem:[%s983 + $0x48] sm:$0xff] %v994
                %v996 = vld [vmem:[%s982 + $0x30] sm:$0xff]
                %997 = vst [vmem:[%s983 + $0x60] sm:$0xff] %v996
                %v998 = vld [vmem:[%s982 + $0x38] sm:$0xff]
                %999 = vst [vmem:[%s983 + $0x68] sm:$0xff] %v998
                %v1000 = vld [vmem:[%s982 + $0x40] sm:$0xff]
                %1001 = vst [vmem:[%s983 + $0x80] sm:$0xff] %v1000
                %v1002 = vld [vmem:[%s982 + $0x48] sm:$0xff]
                %1003 = vst [vmem:[%s983 + $0x88] sm:$0xff] %v1002
                %v1004 = vld [vmem:[%s982 + $0x50] sm:$0xff]
                %1005 = vst [vmem:[%s983 + $0xa0] sm:$0xff] %v1004
                %v1006 = vld [vmem:[%s982 + $0x58] sm:$0xff]
                %1007 = vst [vmem:[%s983 + $0xa8] sm:$0xff] %v1006
                %v1008 = vld [vmem:[%s982 + $0x60] sm:$0xff]
                %1009 = vst [vmem:[%s983 + $0xc0] sm:$0xff] %v1008
                %v1010 = vld [vmem:[%s982 + $0x68] sm:$0xff]
                %1011 = vst [vmem:[%s983 + $0xc8] sm:$0xff] %v1010
                %v1012 = vld [vmem:[%s982 + $0x70] sm:$0xff]
                %1013 = vst [vmem:[%s983 + $0xe0] sm:$0xff] %v1012
                %v1014 = vld [vmem:[%s982 + $0x78] sm:$0xff]
                %1015 = vst [vmem:[%s983 + $0xe8] sm:$0xff] %v1014
                %v1016 = vld [vmem:[%s982 + $0x80] sm:$0xff]
                %1017 = vst [vmem:[%s983 + $0x100] sm:$0xff] %v1016
                %v1018 = vld [vmem:[%s982 + $0x88] sm:$0xff]
                %1019 = vst [vmem:[%s983 + $0x108] sm:$0xff] %v1018
              $region80: #{jvp__.125} parent=74 // loop_footer
                %s981 = sadd.s32 1, %s977
              $region81: #{jvp__.125} parent=74 // loop_footer_branch
                %976 = sbr.rel target = $region77
              $region82: #{jvp__.125} parent=74 // loop_exit
                _
            $region75: #{jvp__.125} parent=70 // pred_fallthru
              _
            // Predicated region
            $region83: #{jvp__.125} parent=70 // pred_check
              _
            $region84: #{jvp__.125} parent=70 // pred_check_branch
              %1021 = sbr.rel target = $region86
            $region85: #{jvp__.125} parent=70 // pred_region
              _
            $region86: #{jvp__.125} parent=70 // pred_fallthru
              _
          $region71: #{jvp__.125} parent=66 // pred_fallthru
            _
          %1022 = vnop
        $region67: #{jvp__.125} parent=50 // pred_fallthru
          _
      $region51: #{jvp__.125} parent=5 // pred_fallthru
        _
      %p1023 = scmp.le.s32.totalorder 2, %s9
      // Predicated region
      $region87: #{jvp__.125} parent=5 // pred_check
        %p1024 = pneg %p1023
      $region88: #{jvp__.125} parent=5 // pred_check_branch
        %1026 = sbr.rel (%p1024) target = $region90
      $region89: #{jvp__.125} parent=5 // pred_region
        %s1027 = ssub.s32 %s9, 2
        // Predicated region
        $region91: #{jvp__.125} parent=89 // pred_check
          %p1028 = pneg %p141
        $region92: #{jvp__.125} parent=89 // pred_check_branch
          %1030 = sbr.rel (%p1028) target = $region94
        $region93: #{jvp__.125} parent=89 // pred_region
          %s1031 = sand.u32 %s126, 1
          %s1032 = sand.u32 %s126, 1
          %s1033 = smul.addr %s1032, 144
          %s1034 = scalar_lea.vmem [#allocation4], %s1033
        $region94: #{jvp__.125} parent=89 // pred_fallthru
          _
      $region90: #{jvp__.125} parent=5 // pred_fallthru
        _
    $region6: #{jvp__.125} parent=1 // loop_footer
      %s13 = sadd.s32 1, %s9
    $region7: #{jvp__.125} parent=1 // loop_footer_branch
      %8 = sbr.rel target = $region3
    $region8: #{jvp__.125} parent=1 // loop_exit
      _

// kernel: jvp__.126
$region0: #{jvp__.126}
  #allocation0 [shape = 'u32[]', space=smem, size = 0x4, offset = 0x4, fixed_abs, tag = 'smem constant byte address 0x4 - core index']
  #allocation1 [shape = 'u32[72,128]{1,0:T(1,128)}', space=vmem, size = 0x9000, scoped, tag = 'internal scratch']
  #allocation2 [shape = 'f32[72,128]{1,0:T(8,128)}', space=vmem, size = 0x9000, scoped, tag = 'scratch operand']
  %s0 = inlined_call_operand.vmem [shape: bf16[72,512], index: 0, kind: input, shape index: {}]
  %s1 = inlined_call_operand.vmem [shape: bf16[512,128], index: 1, kind: input, shape index: {}]
  %s2 = inlined_call_operand.vmem [shape: f32[1,128], index: 2, kind: input, shape index: {}]
  %s3 = inlined_call_operand.vmem [shape: bf16[72,128], index: 3, kind: output, shape index: {}]
  %s4 = sld [smem:[#allocation0]]
  $region30: #{jvp__.126} parent=0
    _
  %s6 = ssub.s32 1, %s4
  %s7 = scalar_select 0, %s6, %s4
  // Predicated region
  $region2: #{jvp__.126} parent=0 // pred_check
    _
  $region3: #{jvp__.126} parent=0 // pred_check_branch
    %9 = sbr.rel (0) target = $region5
  $region4: #{jvp__.126} parent=0 // pred_region
    _
  $region5: #{jvp__.126} parent=0 // pred_fallthru
    _
  // Predicated region
  $region6: #{jvp__.126} parent=0 // pred_check
    _
  $region7: #{jvp__.126} parent=0 // pred_check_branch
    %11 = sbr.rel (0) target = $region9
  $region8: #{jvp__.126} parent=0 // pred_region
    _
  $region9: #{jvp__.126} parent=0 // pred_fallthru
    _
  // Predicated region
  $region10: #{jvp__.126} parent=0 // pred_check
    _
  $region11: #{jvp__.126} parent=0 // pred_check_branch
    %13 = sbr.rel (0) target = $region13
  $region12: #{jvp__.126} parent=0 // pred_region
    _
  $region13: #{jvp__.126} parent=0 // pred_fallthru
    _
  %p14 = scmp.eq.s32.totalorder 0, 0
  // Predicated region
  $region14: #{jvp__.126} parent=0 // pred_check
    %p15 = pneg %p14
  $region15: #{jvp__.126} parent=0 // pred_check_branch
    %17 = sbr.rel (%p15) target = $region17
  $region16: #{jvp__.126} parent=0 // pred_region
    %18 = vst [vmem:[#allocation2] sm:$0xff] 0.0
    %19 = vst [vmem:[#allocation2 + $0x8] sm:$0xff] 0.0
    %20 = vst [vmem:[#allocation2 + $0x10] sm:$0xff] 0.0
    %21 = vst [vmem:[#allocation2 + $0x18] sm:$0xff] 0.0
    %22 = vst [vmem:[#allocation2 + $0x20] sm:$0xff] 0.0
    %23 = vst [vmem:[#allocation2 + $0x28] sm:$0xff] 0.0
    %24 = vst [vmem:[#allocation2 + $0x30] sm:$0xff] 0.0
    %25 = vst [vmem:[#allocation2 + $0x38] sm:$0xff] 0.0
    %26 = vst [vmem:[#allocation2 + $0x40] sm:$0xff] 0.0
  $region17: #{jvp__.126} parent=0 // pred_fallthru
    _
  %v27 = vld [vmem:[#allocation2] sm:$0xff]
  %v28 = vld [vmem:[#allocation2 + $0x8] sm:$0xff]
  %v29 = vld [vmem:[#allocation2 + $0x10] sm:$0xff]
  %v30 = vld [vmem:[#allocation2 + $0x18] sm:$0xff]
  %v31 = vld [vmem:[#allocation2 + $0x20] sm:$0xff]
  %v32 = vld [vmem:[#allocation2 + $0x28] sm:$0xff]
  %v33 = vld [vmem:[#allocation2 + $0x30] sm:$0xff]
  %v34 = vld [vmem:[#allocation2 + $0x38] sm:$0xff]
  %v35 = vld [vmem:[#allocation2 + $0x40] sm:$0xff]
  %v36 = vld [vmem:[%s0] sm:$0xff]
  %v37 = vld [vmem:[%s0 + $0x8] sm:$0xff]
  %v38 = vld [vmem:[%s0 + $0x10] sm:$0xff]
  %v39 = vld [vmem:[%s0 + $0x18] sm:$0xff]
  %v40 = vld [vmem:[%s0 + $0x20] sm:$0xff]
  %v41 = vld [vmem:[%s0 + $0x28] sm:$0xff]
  %v42 = vld [vmem:[%s0 + $0x30] sm:$0xff]
  %v43 = vld [vmem:[%s0 + $0x38] sm:$0xff]
  %v44 = vld [vmem:[%s0 + $0x40] sm:$0xff]
  %v45 = vld [vmem:[%s0 + $0x48] sm:$0xff]
  %v46 = vld [vmem:[%s0 + $0x50] sm:$0xff]
  %v47 = vld [vmem:[%s0 + $0x58] sm:$0xff]
  %v48 = vld [vmem:[%s0 + $0x60] sm:$0xff]
  %v49 = vld [vmem:[%s0 + $0x68] sm:$0xff]
  %v50 = vld [vmem:[%s0 + $0x70] sm:$0xff]
  %v51 = vld [vmem:[%s0 + $0x78] sm:$0xff]
  %v52 = vld [vmem:[%s0 + $0x80] sm:$0xff]
  %v53 = vld [vmem:[%s0 + $0x88] sm:$0xff]
  %v54 = vld [vmem:[%s1] sm:$0xf]
  %v55 = vld [vmem:[%s1 + $0x4] sm:$0xf]
  %v56 = vld [vmem:[%s1 + $0x8] sm:$0xf]
  %v57 = vld [vmem:[%s1 + $0xc] sm:$0xf]
  %v58 = vld [vmem:[%s1 + $0x10] sm:$0xf]
  %v59 = vld [vmem:[%s1 + $0x14] sm:$0xf]
  %v60 = vld [vmem:[%s1 + $0x18] sm:$0xf]
  %v61 = vld [vmem:[%s1 + $0x1c] sm:$0xf]
  %v62 = vld [vmem:[%s1 + $0x20] sm:$0xf]
  %v63 = vld [vmem:[%s1 + $0x24] sm:$0xf]
  %v64 = vld [vmem:[%s1 + $0x28] sm:$0xf]
  %v65 = vld [vmem:[%s1 + $0x2c] sm:$0xf]
  %v66 = vld [vmem:[%s1 + $0x30] sm:$0xf]
  %v67 = vld [vmem:[%s1 + $0x34] sm:$0xf]
  %v68 = vld [vmem:[%s1 + $0x38] sm:$0xf]
  %v69 = vld [vmem:[%s1 + $0x3c] sm:$0xf]
  %v70 = vld [vmem:[%s1 + $0x40] sm:$0xf]
  %v71 = vld [vmem:[%s1 + $0x44] sm:$0xf]
  %v72 = vld [vmem:[%s1 + $0x48] sm:$0xf]
  %v73 = vld [vmem:[%s1 + $0x4c] sm:$0xf]
  %v74 = vld [vmem:[%s1 + $0x50] sm:$0xf]
  %v75 = vld [vmem:[%s1 + $0x54] sm:$0xf]
  %v76 = vld [vmem:[%s1 + $0x58] sm:$0xf]
  %v77 = vld [vmem:[%s1 + $0x5c] sm:$0xf]
  %v78 = vld [vmem:[%s1 + $0x60] sm:$0xf]
  %v79 = vld [vmem:[%s1 + $0x64] sm:$0xf]
  %v80 = vld [vmem:[%s1 + $0x68] sm:$0xf]
  %v81 = vld [vmem:[%s1 + $0x6c] sm:$0xf]
  %v82 = vld [vmem:[%s1 + $0x70] sm:$0xf]
  %v83 = vld [vmem:[%s1 + $0x74] sm:$0xf]
  %v84 = vld [vmem:[%s1 + $0x78] sm:$0xf]
  %v85 = vld [vmem:[%s1 + $0x7c] sm:$0xf]
  %v86 = vld [vmem:[%s1 + $0x80] sm:$0xf]
  %v87 = vld [vmem:[%s1 + $0x84] sm:$0xf]
  %v88 = vld [vmem:[%s1 + $0x88] sm:$0xf]
  %v89 = vld [vmem:[%s1 + $0x8c] sm:$0xf]
  %v90 = vld [vmem:[%s1 + $0x90] sm:$0xf]
  %v91 = vld [vmem:[%s1 + $0x94] sm:$0xf]
  %v92 = vld [vmem:[%s1 + $0x98] sm:$0xf]
  %v93 = vld [vmem:[%s1 + $0x9c] sm:$0xf]
  %v94 = vld [vmem:[%s1 + $0xa0] sm:$0xf]
  %v95 = vld [vmem:[%s1 + $0xa4] sm:$0xf]
  %v96 = vld [vmem:[%s1 + $0xa8] sm:$0xf]
  %v97 = vld [vmem:[%s1 + $0xac] sm:$0xf]
  %v98 = vld [vmem:[%s1 + $0xb0] sm:$0xf]
  %v99 = vld [vmem:[%s1 + $0xb4] sm:$0xf]
  %v100 = vld [vmem:[%s1 + $0xb8] sm:$0xf]
  %v101 = vld [vmem:[%s1 + $0xbc] sm:$0xf]
  %v102 = vld [vmem:[%s1 + $0xc0] sm:$0xf]
  %v103 = vld [vmem:[%s1 + $0xc4] sm:$0xf]
  %v104 = vld [vmem:[%s1 + $0xc8] sm:$0xf]
  %v105 = vld [vmem:[%s1 + $0xcc] sm:$0xf]
  %v106 = vld [vmem:[%s1 + $0xd0] sm:$0xf]
  %v107 = vld [vmem:[%s1 + $0xd4] sm:$0xf]
  %v108 = vld [vmem:[%s1 + $0xd8] sm:$0xf]
  %v109 = vld [vmem:[%s1 + $0xdc] sm:$0xf]
  %v110 = vld [vmem:[%s1 + $0xe0] sm:$0xf]
  %v111 = vld [vmem:[%s1 + $0xe4] sm:$0xf]
  %v112 = vld [vmem:[%s1 + $0xe8] sm:$0xf]
  %v113 = vld [vmem:[%s1 + $0xec] sm:$0xf]
  %v114 = vld [vmem:[%s1 + $0xf0] sm:$0xf]
  %v115 = vld [vmem:[%s1 + $0xf4] sm:$0xf]
  %v116 = vld [vmem:[%s1 + $0xf8] sm:$0xf]
  %v117 = vld [vmem:[%s1 + $0xfc] sm:$0xf]
  %v136 = vunpack.c.l.b16 %v36
  %v137 = vunpack.c.h.b16 %v36
  %v138 = vunpack.c.l.b16 %v37
  %v139 = vunpack.c.h.b16 %v37
  %v140 = vunpack.c.l.b16 %v38
  %v141 = vunpack.c.h.b16 %v38
  %v142 = vunpack.c.l.b16 %v39
  %v143 = vunpack.c.h.b16 %v39
  %v144 = vunpack.c.l.b16 %v40
  %v145 = vunpack.c.h.b16 %v40
  %v146 = vunpack.c.l.b16 %v41
  %v147 = vunpack.c.h.b16 %v41
  %v148 = vunpack.c.l.b16 %v42
  %v149 = vunpack.c.h.b16 %v42
  %v150 = vunpack.c.l.b16 %v43
  %v151 = vunpack.c.h.b16 %v43
  %v152 = vunpack.c.l.b16 %v44
  %v153 = vunpack.c.h.b16 %v44
  %v154 = vunpack.c.l.b16 %v45
  %v155 = vunpack.c.h.b16 %v45
  %v156 = vunpack.c.l.b16 %v46
  %v157 = vunpack.c.h.b16 %v46
  %v158 = vunpack.c.l.b16 %v47
  %v159 = vunpack.c.h.b16 %v47
  %v160 = vunpack.c.l.b16 %v48
  %v161 = vunpack.c.h.b16 %v48
  %v162 = vunpack.c.l.b16 %v49
  %v163 = vunpack.c.h.b16 %v49
  %v164 = vunpack.c.l.b16 %v50
  %v165 = vunpack.c.h.b16 %v50
  %v166 = vunpack.c.l.b16 %v51
  %v167 = vunpack.c.h.b16 %v51
  %v168 = vunpack.c.l.b16 %v52
  %v169 = vunpack.c.h.b16 %v52
  %v170 = vunpack.c.l.b16 %v53
  %v171 = vunpack.c.h.b16 %v53
  %v172 = vpack.c.b16 %v140, %v136
  %v173 = vpack.c.b16 %v141, %v137
  %v174 = vpack.c.b16 %v142, %v138
  %v175 = vpack.c.b16 %v143, %v139
  %v176 = vpack.c.b16 %v148, %v144
  %v177 = vpack.c.b16 %v149, %v145
  %v178 = vpack.c.b16 %v150, %v146
  %v179 = vpack.c.b16 %v151, %v147
  %v180 = vpack.c.b16 %v156, %v152
  %v181 = vpack.c.b16 %v157, %v153
  %v182 = vpack.c.b16 %v158, %v154
  %v183 = vpack.c.b16 %v159, %v155
  %v184 = vpack.c.b16 %v164, %v160
  %v185 = vpack.c.b16 %v165, %v161
  %v186 = vpack.c.b16 %v166, %v162
  %v187 = vpack.c.b16 %v167, %v163
  %v188 = vpack.c.b16 %v168, %v168
  %v189 = vpack.c.b16 %v169, %v169
  %v190 = vpack.c.b16 %v170, %v170
  %v191 = vpack.c.b16 %v171, %v171
  %v276 = vunpack.c.l.b16 %v54
  %v277 = vunpack.c.l.b16 %v55
  %v278 = vunpack.c.l.b16 %v56
  %v279 = vunpack.c.l.b16 %v57
  %v280 = vunpack.c.l.b16 %v58
  %v281 = vunpack.c.l.b16 %v59
  %v282 = vunpack.c.l.b16 %v60
  %v283 = vunpack.c.l.b16 %v61
  %v284 = vunpack.c.l.b16 %v62
  %v285 = vunpack.c.l.b16 %v63
  %v286 = vunpack.c.l.b16 %v64
  %v287 = vunpack.c.l.b16 %v65
  %v288 = vunpack.c.l.b16 %v66
  %v289 = vunpack.c.l.b16 %v67
  %v290 = vunpack.c.l.b16 %v68
  %v291 = vunpack.c.l.b16 %v69
  %v292 = vunpack.c.l.b16 %v70
  %v293 = vunpack.c.l.b16 %v71
  %v294 = vunpack.c.l.b16 %v72
  %v295 = vunpack.c.l.b16 %v73
  %v296 = vunpack.c.l.b16 %v74
  %v297 = vunpack.c.l.b16 %v75
  %v298 = vunpack.c.l.b16 %v76
  %v299 = vunpack.c.l.b16 %v77
  %v300 = vunpack.c.l.b16 %v78
  %v301 = vunpack.c.l.b16 %v79
  %v302 = vunpack.c.l.b16 %v80
  %v303 = vunpack.c.l.b16 %v81
  %v304 = vunpack.c.l.b16 %v82
  %v305 = vunpack.c.l.b16 %v83
  %v306 = vunpack.c.l.b16 %v84
  %v307 = vunpack.c.l.b16 %v85
  %v308 = vunpack.c.l.b16 %v86
  %v309 = vunpack.c.l.b16 %v87
  %v310 = vunpack.c.l.b16 %v88
  %v311 = vunpack.c.l.b16 %v89
  %v312 = vunpack.c.l.b16 %v90
  %v313 = vunpack.c.l.b16 %v91
  %v314 = vunpack.c.l.b16 %v92
  %v315 = vunpack.c.l.b16 %v93
  %v316 = vunpack.c.l.b16 %v94
  %v317 = vunpack.c.l.b16 %v95
  %v318 = vunpack.c.l.b16 %v96
  %v319 = vunpack.c.l.b16 %v97
  %v320 = vunpack.c.l.b16 %v98
  %v321 = vunpack.c.l.b16 %v99
  %v322 = vunpack.c.l.b16 %v100
  %v323 = vunpack.c.l.b16 %v101
  %v324 = vunpack.c.l.b16 %v102
  %v325 = vunpack.c.l.b16 %v103
  %v326 = vunpack.c.l.b16 %v104
  %v327 = vunpack.c.l.b16 %v105
  %v328 = vunpack.c.l.b16 %v106
  %v329 = vunpack.c.l.b16 %v107
  %v330 = vunpack.c.l.b16 %v108
  %v331 = vunpack.c.l.b16 %v109
  %v332 = vunpack.c.l.b16 %v110
  %v333 = vunpack.c.l.b16 %v111
  %v334 = vunpack.c.l.b16 %v112
  %v335 = vunpack.c.l.b16 %v113
  %v336 = vunpack.c.l.b16 %v114
  %v337 = vunpack.c.l.b16 %v115
  %v338 = vunpack.c.l.b16 %v116
  %v339 = vunpack.c.l.b16 %v117
  %v340 = vpack.c.b16 %v277, %v276
  %v341 = vpack.c.b16 %v279, %v278
  %v342 = vpack.c.b16 %v281, %v280
  %v343 = vpack.c.b16 %v283, %v282
  %v344 = vpack.c.b16 %v285, %v284
  %v345 = vpack.c.b16 %v287, %v286
  %v346 = vpack.c.b16 %v289, %v288
  %v347 = vpack.c.b16 %v291, %v290
  %v348 = vpack.c.b16 %v293, %v292
  %v349 = vpack.c.b16 %v295, %v294
  %v350 = vpack.c.b16 %v297, %v296
  %v351 = vpack.c.b16 %v299, %v298
  %v352 = vpack.c.b16 %v301, %v300
  %v353 = vpack.c.b16 %v303, %v302
  %v354 = vpack.c.b16 %v305, %v304
  %v355 = vpack.c.b16 %v307, %v306
  %v356 = vpack.c.b16 %v309, %v308
  %v357 = vpack.c.b16 %v311, %v310
  %v358 = vpack.c.b16 %v313, %v312
  %v359 = vpack.c.b16 %v315, %v314
  %v360 = vpack.c.b16 %v317, %v316
  %v361 = vpack.c.b16 %v319, %v318
  %v362 = vpack.c.b16 %v321, %v320
  %v363 = vpack.c.b16 %v323, %v322
  %v364 = vpack.c.b16 %v325, %v324
  %v365 = vpack.c.b16 %v327, %v326
  %v366 = vpack.c.b16 %v329, %v328
  %v367 = vpack.c.b16 %v331, %v330
  %v368 = vpack.c.b16 %v333, %v332
  %v369 = vpack.c.b16 %v335, %v334
  %v370 = vpack.c.b16 %v337, %v336
  %v371 = vpack.c.b16 %v339, %v338
  %404 = vmatpush.bf16.msra.mxu0 %v347
  %405 = vmatpush.bf16.msra.mxu0 %v346
  %406 = vmatpush.bf16.msra.mxu0 %v345
  %407 = vmatpush.bf16.msra.mxu0 %v344
  %408 = vmatpush.bf16.msra.mxu0 %v343
  %409 = vmatpush.bf16.msra.mxu0 %v342
  %410 = vmatpush.bf16.msra.mxu0 %v341
  %411 = vmatpush.bf16.msra.mxu0 %v340
  %412 = vmatmul.bf16.gmra.mxu0 %v172
  %v413 = vpop.f32.mrf.mxu0
  %v414 = vadd.f32 0.0, %v413
  %v415 = vpop.f32.mrf.mxu0
  %v416 = vadd.f32 0.0, %v415
  %417 = vmatmul.bf16.gmra.mxu0 %v176
  %v418 = vpop.f32.mrf.mxu0
  %v419 = vadd.f32 0.0, %v418
  %v420 = vpop.f32.mrf.mxu0
  %v421 = vadd.f32 0.0, %v420
  %422 = vmatmul.bf16.gmra.mxu0 %v180
  %v423 = vpop.f32.mrf.mxu0
  %v424 = vadd.f32 0.0, %v423
  %v425 = vpop.f32.mrf.mxu0
  %v426 = vadd.f32 0.0, %v425
  %427 = vmatmul.bf16.gmra.mxu0 %v184
  %v428 = vpop.f32.mrf.mxu0
  %v429 = vadd.f32 0.0, %v428
  %v430 = vpop.f32.mrf.mxu0
  %v431 = vadd.f32 0.0, %v430
  %432 = vmatmul.bf16.gmra.mxu0 %v188
  %v433 = vpop.f32.mrf.mxu0
  %v434 = vadd.f32 0.0, %v433
  %v435 = vpop.f32.mrf.mxu0
  %436 = vdwg.mxu0
  %437 = vmatpush.bf16.msra.mxu0 %v355
  %438 = vmatpush.bf16.msra.mxu0 %v354
  %439 = vmatpush.bf16.msra.mxu0 %v353
  %440 = vmatpush.bf16.msra.mxu0 %v352
  %441 = vmatpush.bf16.msra.mxu0 %v351
  %442 = vmatpush.bf16.msra.mxu0 %v350
  %443 = vmatpush.bf16.msra.mxu0 %v349
  %444 = vmatpush.bf16.msra.mxu0 %v348
  %445 = vmatmul.bf16.gmra.mxu0 %v173
  %v446 = vpop.f32.mrf.mxu0
  %v447 = vadd.f32 %v414, %v446
  %v448 = vpop.f32.mrf.mxu0
  %v449 = vadd.f32 %v416, %v448
  %450 = vmatmul.bf16.gmra.mxu0 %v177
  %v451 = vpop.f32.mrf.mxu0
  %v452 = vadd.f32 %v419, %v451
  %v453 = vpop.f32.mrf.mxu0
  %v454 = vadd.f32 %v421, %v453
  %455 = vmatmul.bf16.gmra.mxu0 %v181
  %v456 = vpop.f32.mrf.mxu0
  %v457 = vadd.f32 %v424, %v456
  %v458 = vpop.f32.mrf.mxu0
  %v459 = vadd.f32 %v426, %v458
  %460 = vmatmul.bf16.gmra.mxu0 %v185
  %v461 = vpop.f32.mrf.mxu0
  %v462 = vadd.f32 %v429, %v461
  %v463 = vpop.f32.mrf.mxu0
  %v464 = vadd.f32 %v431, %v463
  %465 = vmatmul.bf16.gmra.mxu0 %v189
  %v466 = vpop.f32.mrf.mxu0
  %v467 = vadd.f32 %v434, %v466
  %v468 = vpop.f32.mrf.mxu0
  %469 = vdwg.mxu0
  %470 = vmatpush.bf16.msra.mxu0 %v363
  %471 = vmatpush.bf16.msra.mxu0 %v362
  %472 = vmatpush.bf16.msra.mxu0 %v361
  %473 = vmatpush.bf16.msra.mxu0 %v360
  %474 = vmatpush.bf16.msra.mxu0 %v359
  %475 = vmatpush.bf16.msra.mxu0 %v358
  %476 = vmatpush.bf16.msra.mxu0 %v357
  %477 = vmatpush.bf16.msra.mxu0 %v356
  %478 = vmatmul.bf16.gmra.mxu0 %v174
  %v479 = vpop.f32.mrf.mxu0
  %v480 = vadd.f32 %v447, %v479
  %v481 = vpop.f32.mrf.mxu0
  %v482 = vadd.f32 %v449, %v481
  %483 = vmatmul.bf16.gmra.mxu0 %v178
  %v484 = vpop.f32.mrf.mxu0
  %v485 = vadd.f32 %v452, %v484
  %v486 = vpop.f32.mrf.mxu0
  %v487 = vadd.f32 %v454, %v486
  %488 = vmatmul.bf16.gmra.mxu0 %v182
  %v489 = vpop.f32.mrf.mxu0
  %v490 = vadd.f32 %v457, %v489
  %v491 = vpop.f32.mrf.mxu0
  %v492 = vadd.f32 %v459, %v491
  %493 = vmatmul.bf16.gmra.mxu0 %v186
  %v494 = vpop.f32.mrf.mxu0
  %v495 = vadd.f32 %v462, %v494
  %v496 = vpop.f32.mrf.mxu0
  %v497 = vadd.f32 %v464, %v496
  %498 = vmatmul.bf16.gmra.mxu0 %v190
  %v499 = vpop.f32.mrf.mxu0
  %v500 = vadd.f32 %v467, %v499
  %v501 = vpop.f32.mrf.mxu0
  %502 = vdwg.mxu0
  %503 = vmatpush.bf16.msra.mxu0 %v371
  %504 = vmatpush.bf16.msra.mxu0 %v370
  %505 = vmatpush.bf16.msra.mxu0 %v369
  %506 = vmatpush.bf16.msra.mxu0 %v368
  %507 = vmatpush.bf16.msra.mxu0 %v367
  %508 = vmatpush.bf16.msra.mxu0 %v366
  %509 = vmatpush.bf16.msra.mxu0 %v365
  %510 = vmatpush.bf16.msra.mxu0 %v364
  %511 = vmatmul.bf16.gmra.mxu0 %v175
  %v512 = vpop.f32.mrf.mxu0
  %v513 = vadd.f32 %v480, %v512
  %v514 = vpop.f32.mrf.mxu0
  %v515 = vadd.f32 %v482, %v514
  %516 = vmatmul.bf16.gmra.mxu0 %v179
  %v517 = vpop.f32.mrf.mxu0
  %v518 = vadd.f32 %v485, %v517
  %v519 = vpop.f32.mrf.mxu0
  %v520 = vadd.f32 %v487, %v519
  %521 = vmatmul.bf16.gmra.mxu0 %v183
  %v522 = vpop.f32.mrf.mxu0
  %v523 = vadd.f32 %v490, %v522
  %v524 = vpop.f32.mrf.mxu0
  %v525 = vadd.f32 %v492, %v524
  %526 = vmatmul.bf16.gmra.mxu0 %v187
  %v527 = vpop.f32.mrf.mxu0
  %v528 = vadd.f32 %v495, %v527
  %v529 = vpop.f32.mrf.mxu0
  %v530 = vadd.f32 %v497, %v529
  %531 = vmatmul.bf16.gmra.mxu0 %v191
  %v532 = vpop.f32.mrf.mxu0
  %v533 = vadd.f32 %v500, %v532
  %v534 = vpop.f32.mrf.mxu0
  %535 = vdwg.mxu0
  %v536 = vadd.f32 %v27, %v513
  %v537 = vadd.f32 %v28, %v515
  %v538 = vadd.f32 %v29, %v518
  %v539 = vadd.f32 %v30, %v520
  %v540 = vadd.f32 %v31, %v523
  %v541 = vadd.f32 %v32, %v525
  %v542 = vadd.f32 %v33, %v528
  %v543 = vadd.f32 %v34, %v530
  %v544 = vadd.f32 %v35, %v533
  %545 = vst [vmem:[#allocation2] sm:$0xff] %v536
  %546 = vst [vmem:[#allocation2 + $0x8] sm:$0xff] %v537
  %547 = vst [vmem:[#allocation2 + $0x10] sm:$0xff] %v538
  %548 = vst [vmem:[#allocation2 + $0x18] sm:$0xff] %v539
  %549 = vst [vmem:[#allocation2 + $0x20] sm:$0xff] %v540
  %550 = vst [vmem:[#allocation2 + $0x28] sm:$0xff] %v541
  %551 = vst [vmem:[#allocation2 + $0x30] sm:$0xff] %v542
  %552 = vst [vmem:[#allocation2 + $0x38] sm:$0xff] %v543
  %553 = vst [vmem:[#allocation2 + $0x40] sm:$0xff] %v544
  // Predicated region
  $region18: #{jvp__.126} parent=0 // pred_check
    %p554 = pneg %p14
  $region19: #{jvp__.126} parent=0 // pred_check_branch
    %556 = sbr.rel (%p554) target = $region21
  $region20: #{jvp__.126} parent=0 // pred_region
    %v557 = vld [vmem:[#allocation2] sm:$0xff]
    %v558 = vld [vmem:[#allocation2 + $0x8] sm:$0xff]
    %v559 = vld [vmem:[#allocation2 + $0x10] sm:$0xff]
    %v560 = vld [vmem:[#allocation2 + $0x18] sm:$0xff]
    %v561 = vld [vmem:[#allocation2 + $0x20] sm:$0xff]
    %v562 = vld [vmem:[#allocation2 + $0x28] sm:$0xff]
    %v563 = vld [vmem:[#allocation2 + $0x30] sm:$0xff]
    %v564 = vld [vmem:[#allocation2 + $0x38] sm:$0xff]
    %v565 = vld [vmem:[#allocation2 + $0x40] sm:$0xff]
    %v566 = vld [vmem:[%s2] sm:$0x1]
    %v568 = vperm.slane %v566, 0
    %v570 = vadd.f32 %v557, %v568
    %v571 = vadd.f32 %v558, %v568
    %v572 = vadd.f32 %v559, %v568
    %v573 = vadd.f32 %v560, %v568
    %v574 = vadd.f32 %v561, %v568
    %v575 = vadd.f32 %v562, %v568
    %v576 = vadd.f32 %v563, %v568
    %v577 = vadd.f32 %v564, %v568
    %v578 = vadd.f32 %v565, %v568
    %v579 = vpack.c.bf16 %v570, %v570
    %v580 = vpack.c.bf16 %v571, %v571
    %v581 = vpack.c.bf16 %v572, %v572
    %v582 = vpack.c.bf16 %v573, %v573
    %v583 = vpack.c.bf16 %v574, %v574
    %v584 = vpack.c.bf16 %v575, %v575
    %v585 = vpack.c.bf16 %v576, %v576
    %v586 = vpack.c.bf16 %v577, %v577
    %v587 = vpack.c.bf16 %v578, %v578
    %588 = vst [vmem:[%s3] sm:$0xf] %v579
    %589 = vst [vmem:[%s3 + $0x4] sm:$0xf] %v580
    %590 = vst [vmem:[%s3 + $0x8] sm:$0xf] %v581
    %591 = vst [vmem:[%s3 + $0xc] sm:$0xf] %v582
    %592 = vst [vmem:[%s3 + $0x10] sm:$0xf] %v583
    %593 = vst [vmem:[%s3 + $0x14] sm:$0xf] %v584
    %594 = vst [vmem:[%s3 + $0x18] sm:$0xf] %v585
    %595 = vst [vmem:[%s3 + $0x1c] sm:$0xf] %v586
    %596 = vst [vmem:[%s3 + $0x20] sm:$0xf] %v587
  $region21: #{jvp__.126} parent=0 // pred_fallthru
    _
  // Predicated region
  $region22: #{jvp__.126} parent=0 // pred_check
    _
  $region23: #{jvp__.126} parent=0 // pred_check_branch
    %598 = sbr.rel (0) target = $region25
  $region24: #{jvp__.126} parent=0 // pred_region
    _
  $region25: #{jvp__.126} parent=0 // pred_fallthru
    _
  // Predicated region
  $region26: #{jvp__.126} parent=0 // pred_check
    _
  $region27: #{jvp__.126} parent=0 // pred_check_branch
    %600 = sbr.rel (0) target = $region29
  $region28: #{jvp__.126} parent=0 // pred_region
    _
  $region29: #{jvp__.126} parent=0 // pred_fallthru
    _

// kernel: debt_forward.5
$region0: #{debt_forward.5}
  #allocation0 [shape = 'u32[]', space=smem, size = 0x4, offset = 0x4, fixed_abs, tag = 'smem constant byte address 0x4 - core index']
  #allocation1 [shape = 'u32[72,128]{1,0:T(1,128)}', space=vmem, size = 0x9000, scoped, tag = 'internal scratch']
  %s0 = inlined_call_operand.vmem [shape: f32[8,128], index: 0, kind: input, shape index: {}]
  %s1 = inlined_call_operand.vmem [shape: f32[8,128], index: 1, kind: input, shape index: {}]
  %s2 = inlined_call_operand.hbm [shape: f32[1,1], index: 2, kind: output, shape index: {}]
  %s3 = sld [smem:[#allocation0]]
  $region22: #{debt_forward.5} parent=0
    _
  %s5 = ssub.s32 1, %s3
  %s6 = scalar_select 0, %s5, %s3
  $region1: #{debt_forward.5} parent=0
    #allocation2 [shape = 'u8[512]{0}', space=smem, size = 0x200, scoped, tag = 'output window, operand 0, single buffered']
    #allocation3 [shape = 's32[1]{0}', space=sflag, size = 0x4, scoped, tag = 'scoped memory for debt_forward.5']
    %7 = vsyncpa [#allocation3], 0
    // Predicated region
    $region2: #{debt_forward.5} parent=1 // pred_check
      _
    $region3: #{debt_forward.5} parent=1 // pred_check_branch
      %9 = sbr.rel (0) target = $region5
    $region4: #{debt_forward.5} parent=1 // pred_region
      _
    $region5: #{debt_forward.5} parent=1 // pred_fallthru
      _
    // Predicated region
    $region6: #{debt_forward.5} parent=1 // pred_check
      _
    $region7: #{debt_forward.5} parent=1 // pred_check_branch
      %11 = sbr.rel (0) target = $region9
    $region8: #{debt_forward.5} parent=1 // pred_region
      _
    $region9: #{debt_forward.5} parent=1 // pred_fallthru
      _
    %p12 = scmp.eq.s32.totalorder 0, 0
    // Predicated region
    $region10: #{debt_forward.5} parent=1 // pred_check
      %p13 = pneg %p12
    $region11: #{debt_forward.5} parent=1 // pred_check_branch
      %15 = sbr.rel (%p13) target = $region13
    $region12: #{debt_forward.5} parent=1 // pred_region
      %s16 = scalar_lea.smem [#allocation2], 0
      %17 = sst [smem:[%s16]] 0.0
    $region13: #{debt_forward.5} parent=1 // pred_fallthru
      _
    %v18 = vld [vmem:[%s0] sm:$0xff]
    %v19 = vld [vmem:[%s1] sm:$0xff]
    %v20 = vsub.f32 %v18, %v19
    %s21 = sld [smem:[#allocation2]]
    %v22 = vmul.f32 %v20, %v20
    %23 = vadd.xlane.f32.xlu0 %v22
    %v24 = vpop.xlane.xlu0 %23
    %v25 = vrot.slane %v24, 4
    %v26 = vadd.f32 %v24, %v25
    %v27 = vrot.slane %v26, 2
    %v28 = vadd.f32 %v26, %v27
    %v29 = vrot.slane %v28, 1
    %v30 = vadd.f32 %v28, %v29
    %s31 = vtos %v30
    %s32 = sadd.f32 %s21, %s31
    %s33 = scalar_lea.smem [#allocation2], 0
    %34 = sst [smem:[%s33]] %s32
    // Predicated region
    $region14: #{debt_forward.5} parent=1 // pred_check
      _
    $region15: #{debt_forward.5} parent=1 // pred_check_branch
      %36 = sbr.rel (0) target = $region17
    $region16: #{debt_forward.5} parent=1 // pred_region
      %38 = vsyncadd [#allocation3], 0
      %s40 = sshll.u32 %s2, 4
      %s41 = int_to_ptr.hbm [resolvable:$true] %s40
      %43 = dma.smem_to_hbm [#allocation2], 16, %s41, [#allocation3]
    $region17: #{debt_forward.5} parent=1 // pred_fallthru
      _
    // Predicated region
    $region18: #{debt_forward.5} parent=1 // pred_check
      _
    $region19: #{debt_forward.5} parent=1 // pred_check_branch
      %45 = sbr.rel (0) target = $region21
    $region20: #{debt_forward.5} parent=1 // pred_region
      %47 = dma.done [#allocation3], 16
    $region21: #{debt_forward.5} parent=1 // pred_fallthru
      _
    %48 = sfence
    %49 = vsyncpa [#allocation3], 1

</llo_original>
